<compile_context>
chip_gen: v6e
topology: v6e:2x2x1
jax: 0.10.0
libtpu: 0.0.40
codegen_flags: <defaults>
</compile_context>

<pallas_src>
import jax
import jax.numpy as jnp
import numpy as np
from jax.experimental import pallas as pl
from jax.experimental.pallas import tpu as pltpu

# ---------------- configuration (matches module defaults) ----------------
BATCH = 2
NUM_CHANNELS = 4          # "sequence length" seen by the transformer
SEQ_LEN = 16              # LSTM time steps
INPUT_SIZE = 1            # forward feeds (B, S, 1) per channel
LSTM_HIDDEN = 16          # 16 % 4 == 0, so the ctor fixup leaves it alone
HEADS = 4
D_MODEL = 2 * LSTM_HIDDEN                 # 32
HEAD_DIM = D_MODEL // HEADS               # 8
D_FF = LSTM_HIDDEN * 4                    # 64
N_LAYERS = 2
NUM_CLASSES = 2
LN_EPS = 1e-5


def _layernorm(x, w, b):
    mu = jnp.mean(x, axis=-1, keepdims=True)
    var = jnp.mean((x - mu) ** 2, axis=-1, keepdims=True)
    return (x - mu) * jax.lax.rsqrt(var + LN_EPS) * w + b


# ---------------------------------------------------------------------------
# Fused kernel: LSTM (last hidden state) -> duplicate to d_model ->
# 2-layer post-LN transformer encoder -> classifier on last "token".
# ---------------------------------------------------------------------------
def fused_forward_kernel(
    xt_ref,                                   # (S, N) time-major input, N = B*C
    wih_ref, whh_ref, b_ref,                  # LSTM weights, gate order (i,f,o,g)
    attn_bias_ref,                            # (R, R) static block-diagonal bias
    wqkv_ref, bqkv_ref, wo_ref, bo_ref, ln1w_ref, ln1b_ref,
    w1_ref, b1_ref, w2_ref, b2_ref, ln2w_ref, ln2b_ref,
    cw1_ref, cb1_ref, cw2_ref, cb2_ref,
    out_ref,
    xw_ref,                                   # VMEM scratch (S, N, 4H)
):
    S, N = xt_ref.shape
    H = LSTM_HIDDEN
    D = D_MODEL
    C = NUM_CHANNELS
    B = N // C

    # ---------------- LSTM (shared weights across all batch*channel rows) ----
    # Hoist the input-side contribution (and fused biases) out of the
    # recurrence; store it in VMEM scratch so the unrolled loop only keeps
    # h/c and one gate slab live in vregs.
    wih = wih_ref[...]                                   # (1, 4H)
    bias = b_ref[...]                                    # (1, 4H)
    xw_ref[...] = xt_ref[...][:, :, None] * wih[None, :, :] + bias[None, :, :]
    whh = whh_ref[...]                                   # (H, 4H)

    h = jnp.zeros((N, H), jnp.float32)
    c = jnp.zeros((N, H), jnp.float32)
    for t in range(S):                                   # fully unrolled (S static)
        gates = xw_ref[t] + jnp.dot(h, whh, preferred_element_type=jnp.float32)
        # staged gate order is (i, f, o, g): one sigmoid block + one tanh block
        sig = jax.nn.sigmoid(gates[:, 0:3 * H])
        g = jnp.tanh(gates[:, 3 * H:4 * H])
        i = sig[:, 0:H]
        f = sig[:, H:2 * H]
        o = sig[:, 2 * H:3 * H]
        c = f * c + i * g
        h = o * jnp.tanh(c)

    # d_model = 2*hidden via in-kernel duplication (matches torch.cat([h, h])).
    x = jnp.concatenate([h, h], axis=-1)                 # (N, D)

    attn_bias = attn_bias_ref[...]                       # 0 in-group, -1e30 out

    # ---------------- transformer encoder layers (post-LN) --------------------
    # NOTE: 1/sqrt(head_dim) is folded into the staged q columns of wqkv/bqkv.
    for l in range(N_LAYERS):
        qkv = (jnp.dot(x, wqkv_ref[l], preferred_element_type=jnp.float32)
               + bqkv_ref[l])                            # (N, 3D)
        q, k, v = qkv[:, 0:D], qkv[:, D:2 * D], qkv[:, 2 * D:3 * D]

        # stack heads along the sublane axis: rows ordered (head, batch, chan)
        qs = jnp.concatenate(
            [q[:, hh * HEAD_DIM:(hh + 1) * HEAD_DIM] for hh in range(HEADS)], axis=0)
        ks = jnp.concatenate(
            [k[:, hh * HEAD_DIM:(hh + 1) * HEAD_DIM] for hh in range(HEADS)], axis=0)
        vs = jnp.concatenate(
            [v[:, hh * HEAD_DIM:(hh + 1) * HEAD_DIM] for hh in range(HEADS)], axis=0)

        s = jax.lax.dot_general(qs, ks, (((1,), (1,)), ((), ())),
                                preferred_element_type=jnp.float32) + attn_bias
        s = s - jnp.max(s, axis=-1, keepdims=True)
        p = jnp.exp(s)
        denom = jnp.sum(p, axis=-1, keepdims=True)
        r = pl.reciprocal(denom, approx=True)            # EUP slot
        r = r * (2.0 - denom * r)                        # one Newton step (VPU, ~free)
        p = p * r
        ctx_s = jnp.dot(p, vs, preferred_element_type=jnp.float32)  # (R, HEAD_DIM)

        # sublane-aligned unstack (vreg selects) + lane concat back to (N, D)
        ctx = jnp.concatenate(
            [ctx_s[hh * N:(hh + 1) * N, :] for hh in range(HEADS)], axis=1)

        attn = (jnp.dot(ctx, wo_ref[l], preferred_element_type=jnp.float32)
                + bo_ref[l])
        x = _layernorm(x + attn, ln1w_ref[l], ln1b_ref[l])

        h1 = jnp.maximum(
            jnp.dot(x, w1_ref[l], preferred_element_type=jnp.float32) + b1_ref[l],
            0.0)                                                               # (N, F)
        ff = (jnp.dot(h1, w2_ref[l], preferred_element_type=jnp.float32)
              + b2_ref[l])                                                     # (N, D)
        x = _layernorm(x + ff, ln2w_ref[l], ln2b_ref[l])

    # ---------------- classifier: run on all N rows (free at 8 sublanes), ----
    # select the last-channel row per batch only when writing the output.
    hcls = jnp.maximum(
        jnp.dot(x, cw1_ref[...], preferred_element_type=jnp.float32)
        + cb1_ref[...], 0.0)                                                   # (N, D/2)
    logits = (jnp.dot(hcls, cw2_ref[...], preferred_element_type=jnp.float32)
              + cb2_ref[...])                                                  # (N, K)
    out_ref[...] = jnp.concatenate(
        [logits[b * C + C - 1: b * C + C, :] for b in range(B)], axis=0)       # (B, K)


# ---------------------------------------------------------------------------
# Parameter init (deterministic, PyTorch weight-shape conventions)
# ---------------------------------------------------------------------------
def init_params(key):
    keys = iter(jax.random.split(key, 64))

    def rnd(shape, scale=0.1):
        return scale * jax.random.normal(next(keys), shape, dtype=jnp.float32)

    H = LSTM_HIDDEN
    params = {
        "lstm": dict(
            w_ih=rnd((4 * H, INPUT_SIZE), 0.3),
            w_hh=rnd((4 * H, H), 0.3),
            b_ih=rnd((4 * H,), 0.1),
            b_hh=rnd((4 * H,), 0.1),
        ),
        "layers": [],
        "cls": dict(
            w1=rnd((D_MODEL // 2, D_MODEL)),
            b1=rnd((D_MODEL // 2,)),
            w2=rnd((NUM_CLASSES, D_MODEL // 2)),
            b2=rnd((NUM_CLASSES,)),
        ),
    }
    for _ in range(N_LAYERS):
        params["layers"].append(dict(
            in_proj_w=rnd((3 * D_MODEL, D_MODEL)),
            in_proj_b=rnd((3 * D_MODEL,)),
            out_w=rnd((D_MODEL, D_MODEL)),
            out_b=rnd((D_MODEL,)),
            ln1_w=1.0 + rnd((D_MODEL,)),
            ln1_b=rnd((D_MODEL,)),
            lin1_w=rnd((D_FF, D_MODEL)),
            lin1_b=rnd((D_FF,)),
            lin2_w=rnd((D_MODEL, D_FF)),
            lin2_b=rnd((D_MODEL,)),
            ln2_w=1.0 + rnd((D_MODEL,)),
            ln2_b=rnd((D_MODEL,)),
        ))
    return params


# ---------------------------------------------------------------------------
# One-time weight staging (transposes / stacks / gate reorder / scale folding)
# ---------------------------------------------------------------------------
def prepare_params(params, batch=BATCH):
    lp = params["lstm"]
    L = params["layers"]
    cp = params["cls"]
    H = LSTM_HIDDEN

    # PyTorch gate order (i, f, g, o)  ->  staged order (i, f, o, g)
    perm = np.concatenate(
        [np.arange(0, 2 * H), np.arange(3 * H, 4 * H), np.arange(2 * H, 3 * H)])

    # fold the 1/sqrt(head_dim) attention scale into the q columns of QKV
    scale = 1.0 / np.sqrt(HEAD_DIM)
    col_scale = jnp.asarray(
        np.concatenate([np.full(D_MODEL, scale), np.ones(2 * D_MODEL)])
        .astype(np.float32))

    # static block-diagonal additive attention bias over (head, batch) groups
    R = HEADS * batch * NUM_CHANNELS
    grp = np.arange(R) // NUM_CHANNELS
    attn_bias = np.where(grp[:, None] == grp[None, :], 0.0, -1e30).astype(np.float32)

    def stk(f):
        return jnp.stack([f(p) for p in L])

    return dict(
        wih=lp["w_ih"].T[:, perm],                       # (1, 4H) gates (i,f,o,g)
        whh=lp["w_hh"].T[:, perm],                       # (H, 4H)
        bias=(lp["b_ih"] + lp["b_hh"])[perm][None, :],   # (1, 4H)
        attn_bias=jnp.asarray(attn_bias),                # (R, R)
        wqkv=stk(lambda p: p["in_proj_w"].T * col_scale[None, :]),   # (L, D, 3D)
        bqkv=stk(lambda p: (p["in_proj_b"] * col_scale)[None, :]),   # (L, 1, 3D)
        wo=stk(lambda p: p["out_w"].T),
        bo=stk(lambda p: p["out_b"][None, :]),
        ln1w=stk(lambda p: p["ln1_w"][None, :]),
        ln1b=stk(lambda p: p["ln1_b"][None, :]),
        w1=stk(lambda p: p["lin1_w"].T),                 # (L, D, F)
        b1=stk(lambda p: p["lin1_b"][None, :]),
        w2=stk(lambda p: p["lin2_w"].T),                 # (L, F, D)
        b2=stk(lambda p: p["lin2_b"][None, :]),
        ln2w=stk(lambda p: p["ln2_w"][None, :]),
        ln2b=stk(lambda p: p["ln2_b"][None, :]),
        cw1=cp["w1"].T, cb1=cp["b1"][None, :],
        cw2=cp["w2"].T, cb2=cp["b2"][None, :],
    )


# ---------------------------------------------------------------------------
# Full forward pass (single fused Pallas kernel, no grid: footprint << VMEM)
# ---------------------------------------------------------------------------
def forward_pallas(x, pp):
    B, C, S = x.shape
    # time-major (S, B*C) so the per-step input slab is a leading-dim select
    xt = x.reshape(B * C, S).astype(jnp.float32).T

    args = (xt, pp["wih"], pp["whh"], pp["bias"], pp["attn_bias"],
            pp["wqkv"], pp["bqkv"], pp["wo"], pp["bo"], pp["ln1w"], pp["ln1b"],
            pp["w1"], pp["b1"], pp["w2"], pp["b2"], pp["ln2w"], pp["ln2b"],
            pp["cw1"], pp["cb1"], pp["cw2"], pp["cb2"])
    return pl.pallas_call(
        fused_forward_kernel,
        out_shape=jax.ShapeDtypeStruct((B, NUM_CLASSES), jnp.float32),
        in_specs=[pl.BlockSpec(memory_space=pltpu.MemorySpace.VMEM)] * len(args),
        out_specs=pl.BlockSpec(memory_space=pltpu.MemorySpace.VMEM),
        scratch_shapes=[pltpu.VMEM((S, B * C, 4 * LSTM_HIDDEN), jnp.float32)],
    )(*args)


# ---------------------------------------------------------------------------
# Pure-JAX reference (mirrors the PyTorch forward in eval mode)
# ---------------------------------------------------------------------------
def forward_reference(x, params):
    B, C, S = x.shape
    H = LSTM_HIDDEN
    lp = params["lstm"]
    x2d = x.reshape(B * C, S)
    h = jnp.zeros((B * C, H), jnp.float32)
    c = jnp.zeros((B * C, H), jnp.float32)
    for t in range(S):
        xt = x2d[:, t:t + 1]
        gates = xt @ lp["w_ih"].T + lp["b_ih"] + h @ lp["w_hh"].T + lp["b_hh"]
        i = jax.nn.sigmoid(gates[:, :H])
        f = jax.nn.sigmoid(gates[:, H:2 * H])
        g = jnp.tanh(gates[:, 2 * H:3 * H])
        o = jax.nn.sigmoid(gates[:, 3 * H:])
        c = f * c + i * g
        h = o * jnp.tanh(c)
    stacked = h.reshape(B, C, H)
    xe = jnp.concatenate([stacked, stacked], axis=-1)

    def layernorm(v, w, b):
        mu = jnp.mean(v, axis=-1, keepdims=True)
        var = jnp.mean((v - mu) ** 2, axis=-1, keepdims=True)
        return (v - mu) / jnp.sqrt(var + LN_EPS) * w + b

    for p in params["layers"]:
        qkv = xe @ p["in_proj_w"].T + p["in_proj_b"]
        q, k, v = jnp.split(qkv, 3, axis=-1)

        def split_heads(t):
            return t.reshape(B, C, HEADS, HEAD_DIM).transpose(0, 2, 1, 3)

        qh, kh, vh = split_heads(q), split_heads(k), split_heads(v)
        s = jnp.einsum("bhqd,bhkd->bhqk", qh, kh) / jnp.sqrt(float(HEAD_DIM))
        a = jax.nn.softmax(s, axis=-1)
        ctx = jnp.einsum("bhqk,bhkd->bhqd", a, vh)
        ctx = ctx.transpose(0, 2, 1, 3).reshape(B, C, D_MODEL)
        attn = ctx @ p["out_w"].T + p["out_b"]
        xe = layernorm(xe + attn, p["ln1_w"], p["ln1_b"])
        ff = jax.nn.relu(xe @ p["lin1_w"].T + p["lin1_b"]) @ p["lin2_w"].T + p["lin2_b"]
        xe = layernorm(xe + ff, p["ln2_w"], p["ln2_b"])

    out = xe[:, -1, :]
    cp = params["cls"]
    hcls = jax.nn.relu(out @ cp["w1"].T + cp["b1"])
    return hcls @ cp["w2"].T + cp["b2"]


if __name__ == "__main__":
    key = jax.random.PRNGKey(0)
    pkey, xkey = jax.random.split(key)
    params = init_params(pkey)
    prepped = prepare_params(params)          # weight staging done once
    x = jax.random.normal(xkey, (BATCH, NUM_CHANNELS, SEQ_LEN), dtype=jnp.float32)

    fwd = jax.jit(forward_pallas)
    out = fwd(x, prepped)
    out = jax.block_until_ready(out)

    ref = forward_reference(x, params)
    np.testing.assert_allclose(np.asarray(out), np.asarray(ref),
                               rtol=1e-3, atol=1e-3)
    print("KERNEL_OK")
</pallas_src>

<mosaic_0001>
module attributes {stable_mosaic.version = 11 : i64} {
  func.func @fused_forward_kernel(%arg0: memref<16x8xf32, #tpu.memory_space<vmem>>, %arg1: memref<1x64xf32, #tpu.memory_space<vmem>>, %arg2: memref<16x64xf32, #tpu.memory_space<vmem>>, %arg3: memref<1x64xf32, #tpu.memory_space<vmem>>, %arg4: memref<32x32xf32, #tpu.memory_space<vmem>>, %arg5: memref<2x32x96xf32, #tpu.memory_space<vmem>>, %arg6: memref<2x1x96xf32, #tpu.memory_space<vmem>>, %arg7: memref<2x32x32xf32, #tpu.memory_space<vmem>>, %arg8: memref<2x1x32xf32, #tpu.memory_space<vmem>>, %arg9: memref<2x1x32xf32, #tpu.memory_space<vmem>>, %arg10: memref<2x1x32xf32, #tpu.memory_space<vmem>>, %arg11: memref<2x32x64xf32, #tpu.memory_space<vmem>>, %arg12: memref<2x1x64xf32, #tpu.memory_space<vmem>>, %arg13: memref<2x64x32xf32, #tpu.memory_space<vmem>>, %arg14: memref<2x1x32xf32, #tpu.memory_space<vmem>>, %arg15: memref<2x1x32xf32, #tpu.memory_space<vmem>>, %arg16: memref<2x1x32xf32, #tpu.memory_space<vmem>>, %arg17: memref<32x16xf32, #tpu.memory_space<vmem>>, %arg18: memref<1x16xf32, #tpu.memory_space<vmem>>, %arg19: memref<16x2xf32, #tpu.memory_space<vmem>>, %arg20: memref<1x2xf32, #tpu.memory_space<vmem>>, %arg21: memref<2x2xf32, #tpu.memory_space<vmem>>, %arg22: memref<16x8x64xf32, #tpu.memory_space<vmem>>) attributes {dimension_semantics = [], scalar_prefetch = 0 : i64, scratch_operands = 1 : i64, tpu.core_type = #tpu.core_type<tc>} {
    %c0 = arith.constant 0 : index
    %c0_0 = arith.constant 0 : index
    %0 = vector.load %arg1[%c0, %c0_0] : memref<1x64xf32, #tpu.memory_space<vmem>>, vector<1x64xf32>
    %c0_1 = arith.constant 0 : index
    %c0_2 = arith.constant 0 : index
    %1 = vector.load %arg3[%c0_1, %c0_2] : memref<1x64xf32, #tpu.memory_space<vmem>>, vector<1x64xf32>
    %c0_3 = arith.constant 0 : index
    %c0_4 = arith.constant 0 : index
    %2 = vector.load %arg0[%c0_3, %c0_4] : memref<16x8xf32, #tpu.memory_space<vmem>>, vector<16x8xf32>
    %3 = vector.shape_cast %2 : vector<16x8xf32> to vector<16x8x1xf32>
    %4 = vector.shape_cast %0 : vector<1x64xf32> to vector<1x1x64xf32>
    %5 = vector.broadcast %3 : vector<16x8x1xf32> to vector<16x8x64xf32>
    %6 = vector.broadcast %4 : vector<1x1x64xf32> to vector<16x8x64xf32>
    %7 = arith.mulf %5, %6 : vector<16x8x64xf32>
    %8 = vector.shape_cast %1 : vector<1x64xf32> to vector<1x1x64xf32>
    %9 = vector.broadcast %8 : vector<1x1x64xf32> to vector<16x8x64xf32>
    %10 = arith.addf %7, %9 : vector<16x8x64xf32>
    %c0_5 = arith.constant 0 : index
    %c0_6 = arith.constant 0 : index
    %c0_7 = arith.constant 0 : index
    %11 = vector.load %arg22[%c0_5, %c0_6, %c0_7] : memref<16x8x64xf32, #tpu.memory_space<vmem>>, vector<16x8x64xf32>
    tpu.vector_store %arg22[%c0_5, %c0_6, %c0_7], %10 {strides = array<i32>} : memref<16x8x64xf32, #tpu.memory_space<vmem>>, vector<16x8x64xf32>,
    %c0_8 = arith.constant 0 : index
    %c0_9 = arith.constant 0 : index
    %12 = vector.load %arg2[%c0_8, %c0_9] : memref<16x64xf32, #tpu.memory_space<vmem>>, vector<16x64xf32>
    %cst = arith.constant 0.000000e+00 : f32
    %13 = vector.broadcast %cst : f32 to vector<8x16xf32>
    %cst_10 = arith.constant 0.000000e+00 : f32
    %14 = vector.broadcast %cst_10 : f32 to vector<8x16xf32>
    %c0_11 = arith.constant 0 : index
    %c0_12 = arith.constant 0 : index
    %c0_13 = arith.constant 0 : index
    %15 = vector.load %arg22[%c0_11, %c0_12, %c0_13] : memref<16x8x64xf32, #tpu.memory_space<vmem>>, vector<1x8x64xf32>
    %16 = vector.shape_cast %15 : vector<1x8x64xf32> to vector<8x64xf32>
    %cst_14 = arith.constant dense<0.000000e+00> : vector<8x64xf32>
    %17 = tpu.matmul %13, %12, %cst_14 {dimension_numbers = #tpu.dot_dimension_numbers<[1], [0], [0], [1], [0, 0, 1, 1], [], []>} : vector<8x16xf32>, vector<16x64xf32>, vector<8x64xf32> -> vector<8x64xf32>
    %18 = arith.addf %16, %17 : vector<8x64xf32>
    %19 = vector.extract_strided_slice %18 {offsets = [0, 0], sizes = [8, 48], strides = [1, 1]} : vector<8x64xf32> to vector<8x48xf32>
    %20 = arith.negf %19 : vector<8x48xf32>
    %21 = math.exp %20 : vector<8x48xf32>
    %cst_15 = arith.constant 1.000000e+00 : f32
    %22 = vector.broadcast %cst_15 : f32 to vector<8x48xf32>
    %23 = arith.addf %22, %21 : vector<8x48xf32>
    %24 = arith.divf %22, %23 : vector<8x48xf32>
    %25 = vector.extract_strided_slice %18 {offsets = [0, 48], sizes = [8, 16], strides = [1, 1]} : vector<8x64xf32> to vector<8x16xf32>
    %26 = math.tanh %25 : vector<8x16xf32>
    %27 = vector.extract_strided_slice %24 {offsets = [0, 0], sizes = [8, 16], strides = [1, 1]} : vector<8x48xf32> to vector<8x16xf32>
    %28 = vector.extract_strided_slice %24 {offsets = [0, 16], sizes = [8, 16], strides = [1, 1]} : vector<8x48xf32> to vector<8x16xf32>
    %29 = vector.extract_strided_slice %24 {offsets = [0, 32], sizes = [8, 16], strides = [1, 1]} : vector<8x48xf32> to vector<8x16xf32>
    %30 = arith.mulf %28, %14 : vector<8x16xf32>
    %31 = arith.mulf %27, %26 : vector<8x16xf32>
    %32 = arith.addf %30, %31 : vector<8x16xf32>
    %33 = math.tanh %32 : vector<8x16xf32>
    %34 = arith.mulf %29, %33 : vector<8x16xf32>
    %c1 = arith.constant 1 : index
    %c0_16 = arith.constant 0 : index
    %c0_17 = arith.constant 0 : index
    %35 = vector.load %arg22[%c1, %c0_16, %c0_17] : memref<16x8x64xf32, #tpu.memory_space<vmem>>, vector<1x8x64xf32>
    %36 = vector.shape_cast %35 : vector<1x8x64xf32> to vector<8x64xf32>
    %cst_18 = arith.constant dense<0.000000e+00> : vector<8x64xf32>
    %37 = tpu.matmul %34, %12, %cst_18 {dimension_numbers = #tpu.dot_dimension_numbers<[1], [0], [0], [1], [0, 0, 1, 1], [], []>} : vector<8x16xf32>, vector<16x64xf32>, vector<8x64xf32> -> vector<8x64xf32>
    %38 = arith.addf %36, %37 : vector<8x64xf32>
    %39 = vector.extract_strided_slice %38 {offsets = [0, 0], sizes = [8, 48], strides = [1, 1]} : vector<8x64xf32> to vector<8x48xf32>
    %40 = arith.negf %39 : vector<8x48xf32>
    %41 = math.exp %40 : vector<8x48xf32>
    %cst_19 = arith.constant 1.000000e+00 : f32
    %42 = vector.broadcast %cst_19 : f32 to vector<8x48xf32>
    %43 = arith.addf %42, %41 : vector<8x48xf32>
    %44 = arith.divf %42, %43 : vector<8x48xf32>
    %45 = vector.extract_strided_slice %38 {offsets = [0, 48], sizes = [8, 16], strides = [1, 1]} : vector<8x64xf32> to vector<8x16xf32>
    %46 = math.tanh %45 : vector<8x16xf32>
    %47 = vector.extract_strided_slice %44 {offsets = [0, 0], sizes = [8, 16], strides = [1, 1]} : vector<8x48xf32> to vector<8x16xf32>
    %48 = vector.extract_strided_slice %44 {offsets = [0, 16], sizes = [8, 16], strides = [1, 1]} : vector<8x48xf32> to vector<8x16xf32>
    %49 = vector.extract_strided_slice %44 {offsets = [0, 32], sizes = [8, 16], strides = [1, 1]} : vector<8x48xf32> to vector<8x16xf32>
    %50 = arith.mulf %48, %32 : vector<8x16xf32>
    %51 = arith.mulf %47, %46 : vector<8x16xf32>
    %52 = arith.addf %50, %51 : vector<8x16xf32>
    %53 = math.tanh %52 : vector<8x16xf32>
    %54 = arith.mulf %49, %53 : vector<8x16xf32>
    %c2 = arith.constant 2 : index
    %c0_20 = arith.constant 0 : index
    %c0_21 = arith.constant 0 : index
    %55 = vector.load %arg22[%c2, %c0_20, %c0_21] : memref<16x8x64xf32, #tpu.memory_space<vmem>>, vector<1x8x64xf32>
    %56 = vector.shape_cast %55 : vector<1x8x64xf32> to vector<8x64xf32>
    %cst_22 = arith.constant dense<0.000000e+00> : vector<8x64xf32>
    %57 = tpu.matmul %54, %12, %cst_22 {dimension_numbers = #tpu.dot_dimension_numbers<[1], [0], [0], [1], [0, 0, 1, 1], [], []>} : vector<8x16xf32>, vector<16x64xf32>, vector<8x64xf32> -> vector<8x64xf32>
    %58 = arith.addf %56, %57 : vector<8x64xf32>
    %59 = vector.extract_strided_slice %58 {offsets = [0, 0], sizes = [8, 48], strides = [1, 1]} : vector<8x64xf32> to vector<8x48xf32>
    %60 = arith.negf %59 : vector<8x48xf32>
    %61 = math.exp %60 : vector<8x48xf32>
    %cst_23 = arith.constant 1.000000e+00 : f32
    %62 = vector.broadcast %cst_23 : f32 to vector<8x48xf32>
    %63 = arith.addf %62, %61 : vector<8x48xf32>
    %64 = arith.divf %62, %63 : vector<8x48xf32>
    %65 = vector.extract_strided_slice %58 {offsets = [0, 48], sizes = [8, 16], strides = [1, 1]} : vector<8x64xf32> to vector<8x16xf32>
    %66 = math.tanh %65 : vector<8x16xf32>
    %67 = vector.extract_strided_slice %64 {offsets = [0, 0], sizes = [8, 16], strides = [1, 1]} : vector<8x48xf32> to vector<8x16xf32>
    %68 = vector.extract_strided_slice %64 {offsets = [0, 16], sizes = [8, 16], strides = [1, 1]} : vector<8x48xf32> to vector<8x16xf32>
    %69 = vector.extract_strided_slice %64 {offsets = [0, 32], sizes = [8, 16], strides = [1, 1]} : vector<8x48xf32> to vector<8x16xf32>
    %70 = arith.mulf %68, %52 : vector<8x16xf32>
    %71 = arith.mulf %67, %66 : vector<8x16xf32>
    %72 = arith.addf %70, %71 : vector<8x16xf32>
    %73 = math.tanh %72 : vector<8x16xf32>
    %74 = arith.mulf %69, %73 : vector<8x16xf32>
    %c3 = arith.constant 3 : index
    %c0_24 = arith.constant 0 : index
    %c0_25 = arith.constant 0 : index
    %75 = vector.load %arg22[%c3, %c0_24, %c0_25] : memref<16x8x64xf32, #tpu.memory_space<vmem>>, vector<1x8x64xf32>
    %76 = vector.shape_cast %75 : vector<1x8x64xf32> to vector<8x64xf32>
    %cst_26 = arith.constant dense<0.000000e+00> : vector<8x64xf32>
    %77 = tpu.matmul %74, %12, %cst_26 {dimension_numbers = #tpu.dot_dimension_numbers<[1], [0], [0], [1], [0, 0, 1, 1], [], []>} : vector<8x16xf32>, vector<16x64xf32>, vector<8x64xf32> -> vector<8x64xf32>
    %78 = arith.addf %76, %77 : vector<8x64xf32>
    %79 = vector.extract_strided_slice %78 {offsets = [0, 0], sizes = [8, 48], strides = [1, 1]} : vector<8x64xf32> to vector<8x48xf32>
    %80 = arith.negf %79 : vector<8x48xf32>
    %81 = math.exp %80 : vector<8x48xf32>
    %cst_27 = arith.constant 1.000000e+00 : f32
    %82 = vector.broadcast %cst_27 : f32 to vector<8x48xf32>
    %83 = arith.addf %82, %81 : vector<8x48xf32>
    %84 = arith.divf %82, %83 : vector<8x48xf32>
    %85 = vector.extract_strided_slice %78 {offsets = [0, 48], sizes = [8, 16], strides = [1, 1]} : vector<8x64xf32> to vector<8x16xf32>
    %86 = math.tanh %85 : vector<8x16xf32>
    %87 = vector.extract_strided_slice %84 {offsets = [0, 0], sizes = [8, 16], strides = [1, 1]} : vector<8x48xf32> to vector<8x16xf32>
    %88 = vector.extract_strided_slice %84 {offsets = [0, 16], sizes = [8, 16], strides = [1, 1]} : vector<8x48xf32> to vector<8x16xf32>
    %89 = vector.extract_strided_slice %84 {offsets = [0, 32], sizes = [8, 16], strides = [1, 1]} : vector<8x48xf32> to vector<8x16xf32>
    %90 = arith.mulf %88, %72 : vector<8x16xf32>
    %91 = arith.mulf %87, %86 : vector<8x16xf32>
    %92 = arith.addf %90, %91 : vector<8x16xf32>
    %93 = math.tanh %92 : vector<8x16xf32>
    %94 = arith.mulf %89, %93 : vector<8x16xf32>
    %c4 = arith.constant 4 : index
    %c0_28 = arith.constant 0 : index
    %c0_29 = arith.constant 0 : index
    %95 = vector.load %arg22[%c4, %c0_28, %c0_29] : memref<16x8x64xf32, #tpu.memory_space<vmem>>, vector<1x8x64xf32>
    %96 = vector.shape_cast %95 : vector<1x8x64xf32> to vector<8x64xf32>
    %cst_30 = arith.constant dense<0.000000e+00> : vector<8x64xf32>
    %97 = tpu.matmul %94, %12, %cst_30 {dimension_numbers = #tpu.dot_dimension_numbers<[1], [0], [0], [1], [0, 0, 1, 1], [], []>} : vector<8x16xf32>, vector<16x64xf32>, vector<8x64xf32> -> vector<8x64xf32>
    %98 = arith.addf %96, %97 : vector<8x64xf32>
    %99 = vector.extract_strided_slice %98 {offsets = [0, 0], sizes = [8, 48], strides = [1, 1]} : vector<8x64xf32> to vector<8x48xf32>
    %100 = arith.negf %99 : vector<8x48xf32>
    %101 = math.exp %100 : vector<8x48xf32>
    %cst_31 = arith.constant 1.000000e+00 : f32
    %102 = vector.broadcast %cst_31 : f32 to vector<8x48xf32>
    %103 = arith.addf %102, %101 : vector<8x48xf32>
    %104 = arith.divf %102, %103 : vector<8x48xf32>
    %105 = vector.extract_strided_slice %98 {offsets = [0, 48], sizes = [8, 16], strides = [1, 1]} : vector<8x64xf32> to vector<8x16xf32>
    %106 = math.tanh %105 : vector<8x16xf32>
    %107 = vector.extract_strided_slice %104 {offsets = [0, 0], sizes = [8, 16], strides = [1, 1]} : vector<8x48xf32> to vector<8x16xf32>
    %108 = vector.extract_strided_slice %104 {offsets = [0, 16], sizes = [8, 16], strides = [1, 1]} : vector<8x48xf32> to vector<8x16xf32>
    %109 = vector.extract_strided_slice %104 {offsets = [0, 32], sizes = [8, 16], strides = [1, 1]} : vector<8x48xf32> to vector<8x16xf32>
    %110 = arith.mulf %108, %92 : vector<8x16xf32>
    %111 = arith.mulf %107, %106 : vector<8x16xf32>
    %112 = arith.addf %110, %111 : vector<8x16xf32>
    %113 = math.tanh %112 : vector<8x16xf32>
    %114 = arith.mulf %109, %113 : vector<8x16xf32>
    %c5 = arith.constant 5 : index
    %c0_32 = arith.constant 0 : index
    %c0_33 = arith.constant 0 : index
    %115 = vector.load %arg22[%c5, %c0_32, %c0_33] : memref<16x8x64xf32, #tpu.memory_space<vmem>>, vector<1x8x64xf32>
    %116 = vector.shape_cast %115 : vector<1x8x64xf32> to vector<8x64xf32>
    %cst_34 = arith.constant dense<0.000000e+00> : vector<8x64xf32>
    %117 = tpu.matmul %114, %12, %cst_34 {dimension_numbers = #tpu.dot_dimension_numbers<[1], [0], [0], [1], [0, 0, 1, 1], [], []>} : vector<8x16xf32>, vector<16x64xf32>, vector<8x64xf32> -> vector<8x64xf32>
    %118 = arith.addf %116, %117 : vector<8x64xf32>
    %119 = vector.extract_strided_slice %118 {offsets = [0, 0], sizes = [8, 48], strides = [1, 1]} : vector<8x64xf32> to vector<8x48xf32>
    %120 = arith.negf %119 : vector<8x48xf32>
    %121 = math.exp %120 : vector<8x48xf32>
    %cst_35 = arith.constant 1.000000e+00 : f32
    %122 = vector.broadcast %cst_35 : f32 to vector<8x48xf32>
    %123 = arith.addf %122, %121 : vector<8x48xf32>
    %124 = arith.divf %122, %123 : vector<8x48xf32>
    %125 = vector.extract_strided_slice %118 {offsets = [0, 48], sizes = [8, 16], strides = [1, 1]} : vector<8x64xf32> to vector<8x16xf32>
    %126 = math.tanh %125 : vector<8x16xf32>
    %127 = vector.extract_strided_slice %124 {offsets = [0, 0], sizes = [8, 16], strides = [1, 1]} : vector<8x48xf32> to vector<8x16xf32>
    %128 = vector.extract_strided_slice %124 {offsets = [0, 16], sizes = [8, 16], strides = [1, 1]} : vector<8x48xf32> to vector<8x16xf32>
    %129 = vector.extract_strided_slice %124 {offsets = [0, 32], sizes = [8, 16], strides = [1, 1]} : vector<8x48xf32> to vector<8x16xf32>
    %130 = arith.mulf %128, %112 : vector<8x16xf32>
    %131 = arith.mulf %127, %126 : vector<8x16xf32>
    %132 = arith.addf %130, %131 : vector<8x16xf32>
    %133 = math.tanh %132 : vector<8x16xf32>
    %134 = arith.mulf %129, %133 : vector<8x16xf32>
    %c6 = arith.constant 6 : index
    %c0_36 = arith.constant 0 : index
    %c0_37 = arith.constant 0 : index
    %135 = vector.load %arg22[%c6, %c0_36, %c0_37] : memref<16x8x64xf32, #tpu.memory_space<vmem>>, vector<1x8x64xf32>
    %136 = vector.shape_cast %135 : vector<1x8x64xf32> to vector<8x64xf32>
    %cst_38 = arith.constant dense<0.000000e+00> : vector<8x64xf32>
    %137 = tpu.matmul %134, %12, %cst_38 {dimension_numbers = #tpu.dot_dimension_numbers<[1], [0], [0], [1], [0, 0, 1, 1], [], []>} : vector<8x16xf32>, vector<16x64xf32>, vector<8x64xf32> -> vector<8x64xf32>
    %138 = arith.addf %136, %137 : vector<8x64xf32>
    %139 = vector.extract_strided_slice %138 {offsets = [0, 0], sizes = [8, 48], strides = [1, 1]} : vector<8x64xf32> to vector<8x48xf32>
    %140 = arith.negf %139 : vector<8x48xf32>
    %141 = math.exp %140 : vector<8x48xf32>
    %cst_39 = arith.constant 1.000000e+00 : f32
    %142 = vector.broadcast %cst_39 : f32 to vector<8x48xf32>
    %143 = arith.addf %142, %141 : vector<8x48xf32>
    %144 = arith.divf %142, %143 : vector<8x48xf32>
    %145 = vector.extract_strided_slice %138 {offsets = [0, 48], sizes = [8, 16], strides = [1, 1]} : vector<8x64xf32> to vector<8x16xf32>
    %146 = math.tanh %145 : vector<8x16xf32>
    %147 = vector.extract_strided_slice %144 {offsets = [0, 0], sizes = [8, 16], strides = [1, 1]} : vector<8x48xf32> to vector<8x16xf32>
    %148 = vector.extract_strided_slice %144 {offsets = [0, 16], sizes = [8, 16], strides = [1, 1]} : vector<8x48xf32> to vector<8x16xf32>
    %149 = vector.extract_strided_slice %144 {offsets = [0, 32], sizes = [8, 16], strides = [1, 1]} : vector<8x48xf32> to vector<8x16xf32>
    %150 = arith.mulf %148, %132 : vector<8x16xf32>
    %151 = arith.mulf %147, %146 : vector<8x16xf32>
    %152 = arith.addf %150, %151 : vector<8x16xf32>
    %153 = math.tanh %152 : vector<8x16xf32>
    %154 = arith.mulf %149, %153 : vector<8x16xf32>
    %c7 = arith.constant 7 : index
    %c0_40 = arith.constant 0 : index
    %c0_41 = arith.constant 0 : index
    %155 = vector.load %arg22[%c7, %c0_40, %c0_41] : memref<16x8x64xf32, #tpu.memory_space<vmem>>, vector<1x8x64xf32>
    %156 = vector.shape_cast %155 : vector<1x8x64xf32> to vector<8x64xf32>
    %cst_42 = arith.constant dense<0.000000e+00> : vector<8x64xf32>
    %157 = tpu.matmul %154, %12, %cst_42 {dimension_numbers = #tpu.dot_dimension_numbers<[1], [0], [0], [1], [0, 0, 1, 1], [], []>} : vector<8x16xf32>, vector<16x64xf32>, vector<8x64xf32> -> vector<8x64xf32>
    %158 = arith.addf %156, %157 : vector<8x64xf32>
    %159 = vector.extract_strided_slice %158 {offsets = [0, 0], sizes = [8, 48], strides = [1, 1]} : vector<8x64xf32> to vector<8x48xf32>
    %160 = arith.negf %159 : vector<8x48xf32>
    %161 = math.exp %160 : vector<8x48xf32>
    %cst_43 = arith.constant 1.000000e+00 : f32
    %162 = vector.broadcast %cst_43 : f32 to vector<8x48xf32>
    %163 = arith.addf %162, %161 : vector<8x48xf32>
    %164 = arith.divf %162, %163 : vector<8x48xf32>
    %165 = vector.extract_strided_slice %158 {offsets = [0, 48], sizes = [8, 16], strides = [1, 1]} : vector<8x64xf32> to vector<8x16xf32>
    %166 = math.tanh %165 : vector<8x16xf32>
    %167 = vector.extract_strided_slice %164 {offsets = [0, 0], sizes = [8, 16], strides = [1, 1]} : vector<8x48xf32> to vector<8x16xf32>
    %168 = vector.extract_strided_slice %164 {offsets = [0, 16], sizes = [8, 16], strides = [1, 1]} : vector<8x48xf32> to vector<8x16xf32>
    %169 = vector.extract_strided_slice %164 {offsets = [0, 32], sizes = [8, 16], strides = [1, 1]} : vector<8x48xf32> to vector<8x16xf32>
    %170 = arith.mulf %168, %152 : vector<8x16xf32>
    %171 = arith.mulf %167, %166 : vector<8x16xf32>
    %172 = arith.addf %170, %171 : vector<8x16xf32>
    %173 = math.tanh %172 : vector<8x16xf32>
    %174 = arith.mulf %169, %173 : vector<8x16xf32>
    %c8 = arith.constant 8 : index
    %c0_44 = arith.constant 0 : index
    %c0_45 = arith.constant 0 : index
    %175 = vector.load %arg22[%c8, %c0_44, %c0_45] : memref<16x8x64xf32, #tpu.memory_space<vmem>>, vector<1x8x64xf32>
    %176 = vector.shape_cast %175 : vector<1x8x64xf32> to vector<8x64xf32>
    %cst_46 = arith.constant dense<0.000000e+00> : vector<8x64xf32>
    %177 = tpu.matmul %174, %12, %cst_46 {dimension_numbers = #tpu.dot_dimension_numbers<[1], [0], [0], [1], [0, 0, 1, 1], [], []>} : vector<8x16xf32>, vector<16x64xf32>, vector<8x64xf32> -> vector<8x64xf32>
    %178 = arith.addf %176, %177 : vector<8x64xf32>
    %179 = vector.extract_strided_slice %178 {offsets = [0, 0], sizes = [8, 48], strides = [1, 1]} : vector<8x64xf32> to vector<8x48xf32>
    %180 = arith.negf %179 : vector<8x48xf32>
    %181 = math.exp %180 : vector<8x48xf32>
    %cst_47 = arith.constant 1.000000e+00 : f32
    %182 = vector.broadcast %cst_47 : f32 to vector<8x48xf32>
    %183 = arith.addf %182, %181 : vector<8x48xf32>
    %184 = arith.divf %182, %183 : vector<8x48xf32>
    %185 = vector.extract_strided_slice %178 {offsets = [0, 48], sizes = [8, 16], strides = [1, 1]} : vector<8x64xf32> to vector<8x16xf32>
    %186 = math.tanh %185 : vector<8x16xf32>
    %187 = vector.extract_strided_slice %184 {offsets = [0, 0], sizes = [8, 16], strides = [1, 1]} : vector<8x48xf32> to vector<8x16xf32>
    %188 = vector.extract_strided_slice %184 {offsets = [0, 16], sizes = [8, 16], strides = [1, 1]} : vector<8x48xf32> to vector<8x16xf32>
    %189 = vector.extract_strided_slice %184 {offsets = [0, 32], sizes = [8, 16], strides = [1, 1]} : vector<8x48xf32> to vector<8x16xf32>
    %190 = arith.mulf %188, %172 : vector<8x16xf32>
    %191 = arith.mulf %187, %186 : vector<8x16xf32>
    %192 = arith.addf %190, %191 : vector<8x16xf32>
    %193 = math.tanh %192 : vector<8x16xf32>
    %194 = arith.mulf %189, %193 : vector<8x16xf32>
    %c9 = arith.constant 9 : index
    %c0_48 = arith.constant 0 : index
    %c0_49 = arith.constant 0 : index
    %195 = vector.load %arg22[%c9, %c0_48, %c0_49] : memref<16x8x64xf32, #tpu.memory_space<vmem>>, vector<1x8x64xf32>
    %196 = vector.shape_cast %195 : vector<1x8x64xf32> to vector<8x64xf32>
    %cst_50 = arith.constant dense<0.000000e+00> : vector<8x64xf32>
    %197 = tpu.matmul %194, %12, %cst_50 {dimension_numbers = #tpu.dot_dimension_numbers<[1], [0], [0], [1], [0, 0, 1, 1], [], []>} : vector<8x16xf32>, vector<16x64xf32>, vector<8x64xf32> -> vector<8x64xf32>
    %198 = arith.addf %196, %197 : vector<8x64xf32>
    %199 = vector.extract_strided_slice %198 {offsets = [0, 0], sizes = [8, 48], strides = [1, 1]} : vector<8x64xf32> to vector<8x48xf32>
    %200 = arith.negf %199 : vector<8x48xf32>
    %201 = math.exp %200 : vector<8x48xf32>
    %cst_51 = arith.constant 1.000000e+00 : f32
    %202 = vector.broadcast %cst_51 : f32 to vector<8x48xf32>
    %203 = arith.addf %202, %201 : vector<8x48xf32>
    %204 = arith.divf %202, %203 : vector<8x48xf32>
    %205 = vector.extract_strided_slice %198 {offsets = [0, 48], sizes = [8, 16], strides = [1, 1]} : vector<8x64xf32> to vector<8x16xf32>
    %206 = math.tanh %205 : vector<8x16xf32>
    %207 = vector.extract_strided_slice %204 {offsets = [0, 0], sizes = [8, 16], strides = [1, 1]} : vector<8x48xf32> to vector<8x16xf32>
    %208 = vector.extract_strided_slice %204 {offsets = [0, 16], sizes = [8, 16], strides = [1, 1]} : vector<8x48xf32> to vector<8x16xf32>
    %209 = vector.extract_strided_slice %204 {offsets = [0, 32], sizes = [8, 16], strides = [1, 1]} : vector<8x48xf32> to vector<8x16xf32>
    %210 = arith.mulf %208, %192 : vector<8x16xf32>
    %211 = arith.mulf %207, %206 : vector<8x16xf32>
    %212 = arith.addf %210, %211 : vector<8x16xf32>
    %213 = math.tanh %212 : vector<8x16xf32>
    %214 = arith.mulf %209, %213 : vector<8x16xf32>
    %c10 = arith.constant 10 : index
    %c0_52 = arith.constant 0 : index
    %c0_53 = arith.constant 0 : index
    %215 = vector.load %arg22[%c10, %c0_52, %c0_53] : memref<16x8x64xf32, #tpu.memory_space<vmem>>, vector<1x8x64xf32>
    %216 = vector.shape_cast %215 : vector<1x8x64xf32> to vector<8x64xf32>
    %cst_54 = arith.constant dense<0.000000e+00> : vector<8x64xf32>
    %217 = tpu.matmul %214, %12, %cst_54 {dimension_numbers = #tpu.dot_dimension_numbers<[1], [0], [0], [1], [0, 0, 1, 1], [], []>} : vector<8x16xf32>, vector<16x64xf32>, vector<8x64xf32> -> vector<8x64xf32>
    %218 = arith.addf %216, %217 : vector<8x64xf32>
    %219 = vector.extract_strided_slice %218 {offsets = [0, 0], sizes = [8, 48], strides = [1, 1]} : vector<8x64xf32> to vector<8x48xf32>
    %220 = arith.negf %219 : vector<8x48xf32>
    %221 = math.exp %220 : vector<8x48xf32>
    %cst_55 = arith.constant 1.000000e+00 : f32
    %222 = vector.broadcast %cst_55 : f32 to vector<8x48xf32>
    %223 = arith.addf %222, %221 : vector<8x48xf32>
    %224 = arith.divf %222, %223 : vector<8x48xf32>
    %225 = vector.extract_strided_slice %218 {offsets = [0, 48], sizes = [8, 16], strides = [1, 1]} : vector<8x64xf32> to vector<8x16xf32>
    %226 = math.tanh %225 : vector<8x16xf32>
    %227 = vector.extract_strided_slice %224 {offsets = [0, 0], sizes = [8, 16], strides = [1, 1]} : vector<8x48xf32> to vector<8x16xf32>
    %228 = vector.extract_strided_slice %224 {offsets = [0, 16], sizes = [8, 16], strides = [1, 1]} : vector<8x48xf32> to vector<8x16xf32>
    %229 = vector.extract_strided_slice %224 {offsets = [0, 32], sizes = [8, 16], strides = [1, 1]} : vector<8x48xf32> to vector<8x16xf32>
    %230 = arith.mulf %228, %212 : vector<8x16xf32>
    %231 = arith.mulf %227, %226 : vector<8x16xf32>
    %232 = arith.addf %230, %231 : vector<8x16xf32>
    %233 = math.tanh %232 : vector<8x16xf32>
    %234 = arith.mulf %229, %233 : vector<8x16xf32>
    %c11 = arith.constant 11 : index
    %c0_56 = arith.constant 0 : index
    %c0_57 = arith.constant 0 : index
    %235 = vector.load %arg22[%c11, %c0_56, %c0_57] : memref<16x8x64xf32, #tpu.memory_space<vmem>>, vector<1x8x64xf32>
    %236 = vector.shape_cast %235 : vector<1x8x64xf32> to vector<8x64xf32>
    %cst_58 = arith.constant dense<0.000000e+00> : vector<8x64xf32>
    %237 = tpu.matmul %234, %12, %cst_58 {dimension_numbers = #tpu.dot_dimension_numbers<[1], [0], [0], [1], [0, 0, 1, 1], [], []>} : vector<8x16xf32>, vector<16x64xf32>, vector<8x64xf32> -> vector<8x64xf32>
    %238 = arith.addf %236, %237 : vector<8x64xf32>
    %239 = vector.extract_strided_slice %238 {offsets = [0, 0], sizes = [8, 48], strides = [1, 1]} : vector<8x64xf32> to vector<8x48xf32>
    %240 = arith.negf %239 : vector<8x48xf32>
    %241 = math.exp %240 : vector<8x48xf32>
    %cst_59 = arith.constant 1.000000e+00 : f32
    %242 = vector.broadcast %cst_59 : f32 to vector<8x48xf32>
    %243 = arith.addf %242, %241 : vector<8x48xf32>
    %244 = arith.divf %242, %243 : vector<8x48xf32>
    %245 = vector.extract_strided_slice %238 {offsets = [0, 48], sizes = [8, 16], strides = [1, 1]} : vector<8x64xf32> to vector<8x16xf32>
    %246 = math.tanh %245 : vector<8x16xf32>
    %247 = vector.extract_strided_slice %244 {offsets = [0, 0], sizes = [8, 16], strides = [1, 1]} : vector<8x48xf32> to vector<8x16xf32>
    %248 = vector.extract_strided_slice %244 {offsets = [0, 16], sizes = [8, 16], strides = [1, 1]} : vector<8x48xf32> to vector<8x16xf32>
    %249 = vector.extract_strided_slice %244 {offsets = [0, 32], sizes = [8, 16], strides = [1, 1]} : vector<8x48xf32> to vector<8x16xf32>
    %250 = arith.mulf %248, %232 : vector<8x16xf32>
    %251 = arith.mulf %247, %246 : vector<8x16xf32>
    %252 = arith.addf %250, %251 : vector<8x16xf32>
    %253 = math.tanh %252 : vector<8x16xf32>
    %254 = arith.mulf %249, %253 : vector<8x16xf32>
    %c12 = arith.constant 12 : index
    %c0_60 = arith.constant 0 : index
    %c0_61 = arith.constant 0 : index
    %255 = vector.load %arg22[%c12, %c0_60, %c0_61] : memref<16x8x64xf32, #tpu.memory_space<vmem>>, vector<1x8x64xf32>
    %256 = vector.shape_cast %255 : vector<1x8x64xf32> to vector<8x64xf32>
    %cst_62 = arith.constant dense<0.000000e+00> : vector<8x64xf32>
    %257 = tpu.matmul %254, %12, %cst_62 {dimension_numbers = #tpu.dot_dimension_numbers<[1], [0], [0], [1], [0, 0, 1, 1], [], []>} : vector<8x16xf32>, vector<16x64xf32>, vector<8x64xf32> -> vector<8x64xf32>
    %258 = arith.addf %256, %257 : vector<8x64xf32>
    %259 = vector.extract_strided_slice %258 {offsets = [0, 0], sizes = [8, 48], strides = [1, 1]} : vector<8x64xf32> to vector<8x48xf32>
    %260 = arith.negf %259 : vector<8x48xf32>
    %261 = math.exp %260 : vector<8x48xf32>
    %cst_63 = arith.constant 1.000000e+00 : f32
    %262 = vector.broadcast %cst_63 : f32 to vector<8x48xf32>
    %263 = arith.addf %262, %261 : vector<8x48xf32>
    %264 = arith.divf %262, %263 : vector<8x48xf32>
    %265 = vector.extract_strided_slice %258 {offsets = [0, 48], sizes = [8, 16], strides = [1, 1]} : vector<8x64xf32> to vector<8x16xf32>
    %266 = math.tanh %265 : vector<8x16xf32>
    %267 = vector.extract_strided_slice %264 {offsets = [0, 0], sizes = [8, 16], strides = [1, 1]} : vector<8x48xf32> to vector<8x16xf32>
    %268 = vector.extract_strided_slice %264 {offsets = [0, 16], sizes = [8, 16], strides = [1, 1]} : vector<8x48xf32> to vector<8x16xf32>
    %269 = vector.extract_strided_slice %264 {offsets = [0, 32], sizes = [8, 16], strides = [1, 1]} : vector<8x48xf32> to vector<8x16xf32>
    %270 = arith.mulf %268, %252 : vector<8x16xf32>
    %271 = arith.mulf %267, %266 : vector<8x16xf32>
    %272 = arith.addf %270, %271 : vector<8x16xf32>
    %273 = math.tanh %272 : vector<8x16xf32>
    %274 = arith.mulf %269, %273 : vector<8x16xf32>
    %c13 = arith.constant 13 : index
    %c0_64 = arith.constant 0 : index
    %c0_65 = arith.constant 0 : index
    %275 = vector.load %arg22[%c13, %c0_64, %c0_65] : memref<16x8x64xf32, #tpu.memory_space<vmem>>, vector<1x8x64xf32>
    %276 = vector.shape_cast %275 : vector<1x8x64xf32> to vector<8x64xf32>
    %cst_66 = arith.constant dense<0.000000e+00> : vector<8x64xf32>
    %277 = tpu.matmul %274, %12, %cst_66 {dimension_numbers = #tpu.dot_dimension_numbers<[1], [0], [0], [1], [0, 0, 1, 1], [], []>} : vector<8x16xf32>, vector<16x64xf32>, vector<8x64xf32> -> vector<8x64xf32>
    %278 = arith.addf %276, %277 : vector<8x64xf32>
    %279 = vector.extract_strided_slice %278 {offsets = [0, 0], sizes = [8, 48], strides = [1, 1]} : vector<8x64xf32> to vector<8x48xf32>
    %280 = arith.negf %279 : vector<8x48xf32>
    %281 = math.exp %280 : vector<8x48xf32>
    %cst_67 = arith.constant 1.000000e+00 : f32
    %282 = vector.broadcast %cst_67 : f32 to vector<8x48xf32>
    %283 = arith.addf %282, %281 : vector<8x48xf32>
    %284 = arith.divf %282, %283 : vector<8x48xf32>
    %285 = vector.extract_strided_slice %278 {offsets = [0, 48], sizes = [8, 16], strides = [1, 1]} : vector<8x64xf32> to vector<8x16xf32>
    %286 = math.tanh %285 : vector<8x16xf32>
    %287 = vector.extract_strided_slice %284 {offsets = [0, 0], sizes = [8, 16], strides = [1, 1]} : vector<8x48xf32> to vector<8x16xf32>
    %288 = vector.extract_strided_slice %284 {offsets = [0, 16], sizes = [8, 16], strides = [1, 1]} : vector<8x48xf32> to vector<8x16xf32>
    %289 = vector.extract_strided_slice %284 {offsets = [0, 32], sizes = [8, 16], strides = [1, 1]} : vector<8x48xf32> to vector<8x16xf32>
    %290 = arith.mulf %288, %272 : vector<8x16xf32>
    %291 = arith.mulf %287, %286 : vector<8x16xf32>
    %292 = arith.addf %290, %291 : vector<8x16xf32>
    %293 = math.tanh %292 : vector<8x16xf32>
    %294 = arith.mulf %289, %293 : vector<8x16xf32>
    %c14 = arith.constant 14 : index
    %c0_68 = arith.constant 0 : index
    %c0_69 = arith.constant 0 : index
    %295 = vector.load %arg22[%c14, %c0_68, %c0_69] : memref<16x8x64xf32, #tpu.memory_space<vmem>>, vector<1x8x64xf32>
    %296 = vector.shape_cast %295 : vector<1x8x64xf32> to vector<8x64xf32>
    %cst_70 = arith.constant dense<0.000000e+00> : vector<8x64xf32>
    %297 = tpu.matmul %294, %12, %cst_70 {dimension_numbers = #tpu.dot_dimension_numbers<[1], [0], [0], [1], [0, 0, 1, 1], [], []>} : vector<8x16xf32>, vector<16x64xf32>, vector<8x64xf32> -> vector<8x64xf32>
    %298 = arith.addf %296, %297 : vector<8x64xf32>
    %299 = vector.extract_strided_slice %298 {offsets = [0, 0], sizes = [8, 48], strides = [1, 1]} : vector<8x64xf32> to vector<8x48xf32>
    %300 = arith.negf %299 : vector<8x48xf32>
    %301 = math.exp %300 : vector<8x48xf32>
    %cst_71 = arith.constant 1.000000e+00 : f32
    %302 = vector.broadcast %cst_71 : f32 to vector<8x48xf32>
    %303 = arith.addf %302, %301 : vector<8x48xf32>
    %304 = arith.divf %302, %303 : vector<8x48xf32>
    %305 = vector.extract_strided_slice %298 {offsets = [0, 48], sizes = [8, 16], strides = [1, 1]} : vector<8x64xf32> to vector<8x16xf32>
    %306 = math.tanh %305 : vector<8x16xf32>
    %307 = vector.extract_strided_slice %304 {offsets = [0, 0], sizes = [8, 16], strides = [1, 1]} : vector<8x48xf32> to vector<8x16xf32>
    %308 = vector.extract_strided_slice %304 {offsets = [0, 16], sizes = [8, 16], strides = [1, 1]} : vector<8x48xf32> to vector<8x16xf32>
    %309 = vector.extract_strided_slice %304 {offsets = [0, 32], sizes = [8, 16], strides = [1, 1]} : vector<8x48xf32> to vector<8x16xf32>
    %310 = arith.mulf %308, %292 : vector<8x16xf32>
    %311 = arith.mulf %307, %306 : vector<8x16xf32>
    %312 = arith.addf %310, %311 : vector<8x16xf32>
    %313 = math.tanh %312 : vector<8x16xf32>
    %314 = arith.mulf %309, %313 : vector<8x16xf32>
    %c15 = arith.constant 15 : index
    %c0_72 = arith.constant 0 : index
    %c0_73 = arith.constant 0 : index
    %315 = vector.load %arg22[%c15, %c0_72, %c0_73] : memref<16x8x64xf32, #tpu.memory_space<vmem>>, vector<1x8x64xf32>
    %316 = vector.shape_cast %315 : vector<1x8x64xf32> to vector<8x64xf32>
    %cst_74 = arith.constant dense<0.000000e+00> : vector<8x64xf32>
    %317 = tpu.matmul %314, %12, %cst_74 {dimension_numbers = #tpu.dot_dimension_numbers<[1], [0], [0], [1], [0, 0, 1, 1], [], []>} : vector<8x16xf32>, vector<16x64xf32>, vector<8x64xf32> -> vector<8x64xf32>
    %318 = arith.addf %316, %317 : vector<8x64xf32>
    %319 = vector.extract_strided_slice %318 {offsets = [0, 0], sizes = [8, 48], strides = [1, 1]} : vector<8x64xf32> to vector<8x48xf32>
    %320 = arith.negf %319 : vector<8x48xf32>
    %321 = math.exp %320 : vector<8x48xf32>
    %cst_75 = arith.constant 1.000000e+00 : f32
    %322 = vector.broadcast %cst_75 : f32 to vector<8x48xf32>
    %323 = arith.addf %322, %321 : vector<8x48xf32>
    %324 = arith.divf %322, %323 : vector<8x48xf32>
    %325 = vector.extract_strided_slice %318 {offsets = [0, 48], sizes = [8, 16], strides = [1, 1]} : vector<8x64xf32> to vector<8x16xf32>
    %326 = math.tanh %325 : vector<8x16xf32>
    %327 = vector.extract_strided_slice %324 {offsets = [0, 0], sizes = [8, 16], strides = [1, 1]} : vector<8x48xf32> to vector<8x16xf32>
    %328 = vector.extract_strided_slice %324 {offsets = [0, 16], sizes = [8, 16], strides = [1, 1]} : vector<8x48xf32> to vector<8x16xf32>
    %329 = vector.extract_strided_slice %324 {offsets = [0, 32], sizes = [8, 16], strides = [1, 1]} : vector<8x48xf32> to vector<8x16xf32>
    %330 = arith.mulf %328, %312 : vector<8x16xf32>
    %331 = arith.mulf %327, %326 : vector<8x16xf32>
    %332 = arith.addf %330, %331 : vector<8x16xf32>
    %333 = math.tanh %332 : vector<8x16xf32>
    %334 = arith.mulf %329, %333 : vector<8x16xf32>
    %335 = tpu.concatenate %334, %334 in 1 : vector<8x16xf32>, vector<8x16xf32> -> vector<8x32xf32>
    %c0_76 = arith.constant 0 : index
    %c0_77 = arith.constant 0 : index
    %336 = vector.load %arg4[%c0_76, %c0_77] : memref<32x32xf32, #tpu.memory_space<vmem>>, vector<32x32xf32>
    %c0_78 = arith.constant 0 : index
    %c0_79 = arith.constant 0 : index
    %c0_80 = arith.constant 0 : index
    %337 = vector.load %arg5[%c0_78, %c0_79, %c0_80] : memref<2x32x96xf32, #tpu.memory_space<vmem>>, vector<1x32x96xf32>
    %338 = vector.shape_cast %337 : vector<1x32x96xf32> to vector<32x96xf32>
    %cst_81 = arith.constant dense<0.000000e+00> : vector<8x96xf32>
    %339 = tpu.matmul %335, %338, %cst_81 {dimension_numbers = #tpu.dot_dimension_numbers<[1], [0], [0], [1], [0, 0, 1, 1], [], []>} : vector<8x32xf32>, vector<32x96xf32>, vector<8x96xf32> -> vector<8x96xf32>
    %c0_82 = arith.constant 0 : index
    %c0_83 = arith.constant 0 : index
    %c0_84 = arith.constant 0 : index
    %340 = vector.load %arg6[%c0_82, %c0_83, %c0_84] : memref<2x1x96xf32, #tpu.memory_space<vmem>>, vector<1x1x96xf32>
    %341 = vector.shape_cast %340 : vector<1x1x96xf32> to vector<1x96xf32>
    %342 = vector.broadcast %341 : vector<1x96xf32> to vector<8x96xf32>
    %343 = arith.addf %339, %342 : vector<8x96xf32>
    %344 = vector.extract_strided_slice %343 {offsets = [0, 0], sizes = [8, 32], strides = [1, 1]} : vector<8x96xf32> to vector<8x32xf32>
    %345 = vector.extract_strided_slice %343 {offsets = [0, 32], sizes = [8, 32], strides = [1, 1]} : vector<8x96xf32> to vector<8x32xf32>
    %346 = vector.extract_strided_slice %343 {offsets = [0, 64], sizes = [8, 32], strides = [1, 1]} : vector<8x96xf32> to vector<8x32xf32>
    %347 = vector.extract_strided_slice %344 {offsets = [0, 0], sizes = [8, 8], strides = [1, 1]} : vector<8x32xf32> to vector<8x8xf32>
    %348 = vector.extract_strided_slice %344 {offsets = [0, 8], sizes = [8, 8], strides = [1, 1]} : vector<8x32xf32> to vector<8x8xf32>
    %349 = vector.extract_strided_slice %344 {offsets = [0, 16], sizes = [8, 8], strides = [1, 1]} : vector<8x32xf32> to vector<8x8xf32>
    %350 = vector.extract_strided_slice %344 {offsets = [0, 24], sizes = [8, 8], strides = [1, 1]} : vector<8x32xf32> to vector<8x8xf32>
    %351 = tpu.concatenate %347, %348, %349, %350 in 0 : vector<8x8xf32>, vector<8x8xf32>, vector<8x8xf32>, vector<8x8xf32> -> vector<32x8xf32>
    %352 = vector.extract_strided_slice %345 {offsets = [0, 0], sizes = [8, 8], strides = [1, 1]} : vector<8x32xf32> to vector<8x8xf32>
    %353 = vector.extract_strided_slice %345 {offsets = [0, 8], sizes = [8, 8], strides = [1, 1]} : vector<8x32xf32> to vector<8x8xf32>
    %354 = vector.extract_strided_slice %345 {offsets = [0, 16], sizes = [8, 8], strides = [1, 1]} : vector<8x32xf32> to vector<8x8xf32>
    %355 = vector.extract_strided_slice %345 {offsets = [0, 24], sizes = [8, 8], strides = [1, 1]} : vector<8x32xf32> to vector<8x8xf32>
    %356 = tpu.concatenate %352, %353, %354, %355 in 0 : vector<8x8xf32>, vector<8x8xf32>, vector<8x8xf32>, vector<8x8xf32> -> vector<32x8xf32>
    %357 = vector.extract_strided_slice %346 {offsets = [0, 0], sizes = [8, 8], strides = [1, 1]} : vector<8x32xf32> to vector<8x8xf32>
    %358 = vector.extract_strided_slice %346 {offsets = [0, 8], sizes = [8, 8], strides = [1, 1]} : vector<8x32xf32> to vector<8x8xf32>
    %359 = vector.extract_strided_slice %346 {offsets = [0, 16], sizes = [8, 8], strides = [1, 1]} : vector<8x32xf32> to vector<8x8xf32>
    %360 = vector.extract_strided_slice %346 {offsets = [0, 24], sizes = [8, 8], strides = [1, 1]} : vector<8x32xf32> to vector<8x8xf32>
    %361 = tpu.concatenate %357, %358, %359, %360 in 0 : vector<8x8xf32>, vector<8x8xf32>, vector<8x8xf32>, vector<8x8xf32> -> vector<32x8xf32>
    %cst_85 = arith.constant dense<0.000000e+00> : vector<32x32xf32>
    %362 = tpu.matmul %351, %356, %cst_85 {dimension_numbers = #tpu.dot_dimension_numbers<[1], [1], [0], [0], [0, 0, 1, 0], [], []>} : vector<32x8xf32>, vector<32x8xf32>, vector<32x32xf32> -> vector<32x32xf32>
    %363 = arith.addf %362, %336 : vector<32x32xf32>
    %cst_86 = arith.constant dense<0xFF800000> : vector<32xf32>
    %364 = vector.multi_reduction <maximumf>, %363, %cst_86 [1] : vector<32x32xf32> to vector<32xf32>
    %365 = vector.shape_cast %364 : vector<32xf32> to vector<32x1xf32>
    %366 = vector.broadcast %365 : vector<32x1xf32> to vector<32x32xf32>
    %367 = arith.subf %363, %366 : vector<32x32xf32>
    %368 = math.exp %367 : vector<32x32xf32>
    %cst_87 = arith.constant dense<0.000000e+00> : vector<32xf32>
    %369 = vector.multi_reduction <add>, %368, %cst_87 [1] : vector<32x32xf32> to vector<32xf32>
    %370 = vector.shape_cast %369 : vector<32xf32> to vector<32x1xf32>
    %371 = tpu.reciprocal %370 {approx = true} : vector<32x1xf32> -> vector<32x1xf32>
    %372 = arith.mulf %370, %371 : vector<32x1xf32>
    %cst_88 = arith.constant 2.000000e+00 : f32
    %373 = vector.broadcast %cst_88 : f32 to vector<32x1xf32>
    %374 = arith.subf %373, %372 : vector<32x1xf32>
    %375 = arith.mulf %371, %374 : vector<32x1xf32>
    %376 = vector.broadcast %375 : vector<32x1xf32> to vector<32x32xf32>
    %377 = arith.mulf %368, %376 : vector<32x32xf32>
    %cst_89 = arith.constant dense<0.000000e+00> : vector<32x8xf32>
    %378 = tpu.matmul %377, %361, %cst_89 {dimension_numbers = #tpu.dot_dimension_numbers<[1], [0], [0], [1], [0, 0, 1, 1], [], []>} : vector<32x32xf32>, vector<32x8xf32>, vector<32x8xf32> -> vector<32x8xf32>
    %379 = vector.extract_strided_slice %378 {offsets = [0, 0], sizes = [8, 8], strides = [1, 1]} : vector<32x8xf32> to vector<8x8xf32>
    %380 = vector.extract_strided_slice %378 {offsets = [8, 0], sizes = [8, 8], strides = [1, 1]} : vector<32x8xf32> to vector<8x8xf32>
    %381 = vector.extract_strided_slice %378 {offsets = [16, 0], sizes = [8, 8], strides = [1, 1]} : vector<32x8xf32> to vector<8x8xf32>
    %382 = vector.extract_strided_slice %378 {offsets = [24, 0], sizes = [8, 8], strides = [1, 1]} : vector<32x8xf32> to vector<8x8xf32>
    %383 = tpu.concatenate %379, %380, %381, %382 in 1 : vector<8x8xf32>, vector<8x8xf32>, vector<8x8xf32>, vector<8x8xf32> -> vector<8x32xf32>
    %c0_90 = arith.constant 0 : index
    %c0_91 = arith.constant 0 : index
    %c0_92 = arith.constant 0 : index
    %384 = vector.load %arg7[%c0_90, %c0_91, %c0_92] : memref<2x32x32xf32, #tpu.memory_space<vmem>>, vector<1x32x32xf32>
    %385 = vector.shape_cast %384 : vector<1x32x32xf32> to vector<32x32xf32>
    %cst_93 = arith.constant dense<0.000000e+00> : vector<8x32xf32>
    %386 = tpu.matmul %383, %385, %cst_93 {dimension_numbers = #tpu.dot_dimension_numbers<[1], [0], [0], [1], [0, 0, 1, 1], [], []>} : vector<8x32xf32>, vector<32x32xf32>, vector<8x32xf32> -> vector<8x32xf32>
    %c0_94 = arith.constant 0 : index
    %c0_95 = arith.constant 0 : index
    %c0_96 = arith.constant 0 : index
    %387 = vector.load %arg8[%c0_94, %c0_95, %c0_96] : memref<2x1x32xf32, #tpu.memory_space<vmem>>, vector<1x1x32xf32>
    %388 = vector.shape_cast %387 : vector<1x1x32xf32> to vector<1x32xf32>
    %389 = vector.broadcast %388 : vector<1x32xf32> to vector<8x32xf32>
    %390 = arith.addf %386, %389 : vector<8x32xf32>
    %391 = arith.addf %335, %390 : vector<8x32xf32>
    %c0_97 = arith.constant 0 : index
    %c0_98 = arith.constant 0 : index
    %c0_99 = arith.constant 0 : index
    %392 = vector.load %arg9[%c0_97, %c0_98, %c0_99] : memref<2x1x32xf32, #tpu.memory_space<vmem>>, vector<1x1x32xf32>
    %393 = vector.shape_cast %392 : vector<1x1x32xf32> to vector<1x32xf32>
    %c0_100 = arith.constant 0 : index
    %c0_101 = arith.constant 0 : index
    %c0_102 = arith.constant 0 : index
    %394 = vector.load %arg10[%c0_100, %c0_101, %c0_102] : memref<2x1x32xf32, #tpu.memory_space<vmem>>, vector<1x1x32xf32>
    %395 = vector.shape_cast %394 : vector<1x1x32xf32> to vector<1x32xf32>
    %cst_103 = arith.constant dense<0.000000e+00> : vector<8xf32>
    %396 = vector.multi_reduction <add>, %391, %cst_103 [1] : vector<8x32xf32> to vector<8xf32>
    %397 = vector.shape_cast %396 : vector<8xf32> to vector<8x1xf32>
    %cst_104 = arith.constant 3.200000e+01 : f32
    %398 = vector.broadcast %cst_104 : f32 to vector<8x1xf32>
    %399 = arith.divf %397, %398 : vector<8x1xf32>
    %400 = vector.broadcast %399 : vector<8x1xf32> to vector<8x32xf32>
    %401 = arith.subf %391, %400 : vector<8x32xf32>
    %402 = arith.mulf %401, %401 : vector<8x32xf32>
    %cst_105 = arith.constant dense<0.000000e+00> : vector<8xf32>
    %403 = vector.multi_reduction <add>, %402, %cst_105 [1] : vector<8x32xf32> to vector<8xf32>
    %404 = vector.shape_cast %403 : vector<8xf32> to vector<8x1xf32>
    %cst_106 = arith.constant 3.200000e+01 : f32
    %405 = vector.broadcast %cst_106 : f32 to vector<8x1xf32>
    %406 = arith.divf %404, %405 : vector<8x1xf32>
    %407 = vector.broadcast %399 : vector<8x1xf32> to vector<8x32xf32>
    %408 = arith.subf %391, %407 : vector<8x32xf32>
    %cst_107 = arith.constant 9.99999974E-6 : f32
    %409 = vector.broadcast %cst_107 : f32 to vector<8x1xf32>
    %410 = arith.addf %406, %409 : vector<8x1xf32>
    %411 = math.rsqrt %410 : vector<8x1xf32>
    %412 = vector.broadcast %411 : vector<8x1xf32> to vector<8x32xf32>
    %413 = arith.mulf %408, %412 : vector<8x32xf32>
    %414 = vector.broadcast %393 : vector<1x32xf32> to vector<8x32xf32>
    %415 = arith.mulf %413, %414 : vector<8x32xf32>
    %416 = vector.broadcast %395 : vector<1x32xf32> to vector<8x32xf32>
    %417 = arith.addf %415, %416 : vector<8x32xf32>
    %c0_108 = arith.constant 0 : index
    %c0_109 = arith.constant 0 : index
    %c0_110 = arith.constant 0 : index
    %418 = vector.load %arg11[%c0_108, %c0_109, %c0_110] : memref<2x32x64xf32, #tpu.memory_space<vmem>>, vector<1x32x64xf32>
    %419 = vector.shape_cast %418 : vector<1x32x64xf32> to vector<32x64xf32>
    %cst_111 = arith.constant dense<0.000000e+00> : vector<8x64xf32>
    %420 = tpu.matmul %417, %419, %cst_111 {dimension_numbers = #tpu.dot_dimension_numbers<[1], [0], [0], [1], [0, 0, 1, 1], [], []>} : vector<8x32xf32>, vector<32x64xf32>, vector<8x64xf32> -> vector<8x64xf32>
    %c0_112 = arith.constant 0 : index
    %c0_113 = arith.constant 0 : index
    %c0_114 = arith.constant 0 : index
    %421 = vector.load %arg12[%c0_112, %c0_113, %c0_114] : memref<2x1x64xf32, #tpu.memory_space<vmem>>, vector<1x1x64xf32>
    %422 = vector.shape_cast %421 : vector<1x1x64xf32> to vector<1x64xf32>
    %423 = vector.broadcast %422 : vector<1x64xf32> to vector<8x64xf32>
    %424 = arith.addf %420, %423 : vector<8x64xf32>
    %cst_115 = arith.constant 0.000000e+00 : f32
    %425 = vector.broadcast %cst_115 : f32 to vector<8x64xf32>
    %426 = arith.maximumf %424, %425 : vector<8x64xf32>
    %c0_116 = arith.constant 0 : index
    %c0_117 = arith.constant 0 : index
    %c0_118 = arith.constant 0 : index
    %427 = vector.load %arg13[%c0_116, %c0_117, %c0_118] : memref<2x64x32xf32, #tpu.memory_space<vmem>>, vector<1x64x32xf32>
    %428 = vector.shape_cast %427 : vector<1x64x32xf32> to vector<64x32xf32>
    %cst_119 = arith.constant dense<0.000000e+00> : vector<8x32xf32>
    %429 = tpu.matmul %426, %428, %cst_119 {dimension_numbers = #tpu.dot_dimension_numbers<[1], [0], [0], [1], [0, 0, 1, 1], [], []>} : vector<8x64xf32>, vector<64x32xf32>, vector<8x32xf32> -> vector<8x32xf32>
    %c0_120 = arith.constant 0 : index
    %c0_121 = arith.constant 0 : index
    %c0_122 = arith.constant 0 : index
    %430 = vector.load %arg14[%c0_120, %c0_121, %c0_122] : memref<2x1x32xf32, #tpu.memory_space<vmem>>, vector<1x1x32xf32>
    %431 = vector.shape_cast %430 : vector<1x1x32xf32> to vector<1x32xf32>
    %432 = vector.broadcast %431 : vector<1x32xf32> to vector<8x32xf32>
    %433 = arith.addf %429, %432 : vector<8x32xf32>
    %434 = arith.addf %417, %433 : vector<8x32xf32>
    %c0_123 = arith.constant 0 : index
    %c0_124 = arith.constant 0 : index
    %c0_125 = arith.constant 0 : index
    %435 = vector.load %arg15[%c0_123, %c0_124, %c0_125] : memref<2x1x32xf32, #tpu.memory_space<vmem>>, vector<1x1x32xf32>
    %436 = vector.shape_cast %435 : vector<1x1x32xf32> to vector<1x32xf32>
    %c0_126 = arith.constant 0 : index
    %c0_127 = arith.constant 0 : index
    %c0_128 = arith.constant 0 : index
    %437 = vector.load %arg16[%c0_126, %c0_127, %c0_128] : memref<2x1x32xf32, #tpu.memory_space<vmem>>, vector<1x1x32xf32>
    %438 = vector.shape_cast %437 : vector<1x1x32xf32> to vector<1x32xf32>
    %cst_129 = arith.constant dense<0.000000e+00> : vector<8xf32>
    %439 = vector.multi_reduction <add>, %434, %cst_129 [1] : vector<8x32xf32> to vector<8xf32>
    %440 = vector.shape_cast %439 : vector<8xf32> to vector<8x1xf32>
    %cst_130 = arith.constant 3.200000e+01 : f32
    %441 = vector.broadcast %cst_130 : f32 to vector<8x1xf32>
    %442 = arith.divf %440, %441 : vector<8x1xf32>
    %443 = vector.broadcast %442 : vector<8x1xf32> to vector<8x32xf32>
    %444 = arith.subf %434, %443 : vector<8x32xf32>
    %445 = arith.mulf %444, %444 : vector<8x32xf32>
    %cst_131 = arith.constant dense<0.000000e+00> : vector<8xf32>
    %446 = vector.multi_reduction <add>, %445, %cst_131 [1] : vector<8x32xf32> to vector<8xf32>
    %447 = vector.shape_cast %446 : vector<8xf32> to vector<8x1xf32>
    %cst_132 = arith.constant 3.200000e+01 : f32
    %448 = vector.broadcast %cst_132 : f32 to vector<8x1xf32>
    %449 = arith.divf %447, %448 : vector<8x1xf32>
    %450 = vector.broadcast %442 : vector<8x1xf32> to vector<8x32xf32>
    %451 = arith.subf %434, %450 : vector<8x32xf32>
    %cst_133 = arith.constant 9.99999974E-6 : f32
    %452 = vector.broadcast %cst_133 : f32 to vector<8x1xf32>
    %453 = arith.addf %449, %452 : vector<8x1xf32>
    %454 = math.rsqrt %453 : vector<8x1xf32>
    %455 = vector.broadcast %454 : vector<8x1xf32> to vector<8x32xf32>
    %456 = arith.mulf %451, %455 : vector<8x32xf32>
    %457 = vector.broadcast %436 : vector<1x32xf32> to vector<8x32xf32>
    %458 = arith.mulf %456, %457 : vector<8x32xf32>
    %459 = vector.broadcast %438 : vector<1x32xf32> to vector<8x32xf32>
    %460 = arith.addf %458, %459 : vector<8x32xf32>
    %c1_134 = arith.constant 1 : index
    %c0_135 = arith.constant 0 : index
    %c0_136 = arith.constant 0 : index
    %461 = vector.load %arg5[%c1_134, %c0_135, %c0_136] : memref<2x32x96xf32, #tpu.memory_space<vmem>>, vector<1x32x96xf32>
    %462 = vector.shape_cast %461 : vector<1x32x96xf32> to vector<32x96xf32>
    %cst_137 = arith.constant dense<0.000000e+00> : vector<8x96xf32>
    %463 = tpu.matmul %460, %462, %cst_137 {dimension_numbers = #tpu.dot_dimension_numbers<[1], [0], [0], [1], [0, 0, 1, 1], [], []>} : vector<8x32xf32>, vector<32x96xf32>, vector<8x96xf32> -> vector<8x96xf32>
    %c1_138 = arith.constant 1 : index
    %c0_139 = arith.constant 0 : index
    %c0_140 = arith.constant 0 : index
    %464 = vector.load %arg6[%c1_138, %c0_139, %c0_140] : memref<2x1x96xf32, #tpu.memory_space<vmem>>, vector<1x1x96xf32>
    %465 = vector.shape_cast %464 : vector<1x1x96xf32> to vector<1x96xf32>
    %466 = vector.broadcast %465 : vector<1x96xf32> to vector<8x96xf32>
    %467 = arith.addf %463, %466 : vector<8x96xf32>
    %468 = vector.extract_strided_slice %467 {offsets = [0, 0], sizes = [8, 32], strides = [1, 1]} : vector<8x96xf32> to vector<8x32xf32>
    %469 = vector.extract_strided_slice %467 {offsets = [0, 32], sizes = [8, 32], strides = [1, 1]} : vector<8x96xf32> to vector<8x32xf32>
    %470 = vector.extract_strided_slice %467 {offsets = [0, 64], sizes = [8, 32], strides = [1, 1]} : vector<8x96xf32> to vector<8x32xf32>
    %471 = vector.extract_strided_slice %468 {offsets = [0, 0], sizes = [8, 8], strides = [1, 1]} : vector<8x32xf32> to vector<8x8xf32>
    %472 = vector.extract_strided_slice %468 {offsets = [0, 8], sizes = [8, 8], strides = [1, 1]} : vector<8x32xf32> to vector<8x8xf32>
    %473 = vector.extract_strided_slice %468 {offsets = [0, 16], sizes = [8, 8], strides = [1, 1]} : vector<8x32xf32> to vector<8x8xf32>
    %474 = vector.extract_strided_slice %468 {offsets = [0, 24], sizes = [8, 8], strides = [1, 1]} : vector<8x32xf32> to vector<8x8xf32>
    %475 = tpu.concatenate %471, %472, %473, %474 in 0 : vector<8x8xf32>, vector<8x8xf32>, vector<8x8xf32>, vector<8x8xf32> -> vector<32x8xf32>
    %476 = vector.extract_strided_slice %469 {offsets = [0, 0], sizes = [8, 8], strides = [1, 1]} : vector<8x32xf32> to vector<8x8xf32>
    %477 = vector.extract_strided_slice %469 {offsets = [0, 8], sizes = [8, 8], strides = [1, 1]} : vector<8x32xf32> to vector<8x8xf32>
    %478 = vector.extract_strided_slice %469 {offsets = [0, 16], sizes = [8, 8], strides = [1, 1]} : vector<8x32xf32> to vector<8x8xf32>
    %479 = vector.extract_strided_slice %469 {offsets = [0, 24], sizes = [8, 8], strides = [1, 1]} : vector<8x32xf32> to vector<8x8xf32>
    %480 = tpu.concatenate %476, %477, %478, %479 in 0 : vector<8x8xf32>, vector<8x8xf32>, vector<8x8xf32>, vector<8x8xf32> -> vector<32x8xf32>
    %481 = vector.extract_strided_slice %470 {offsets = [0, 0], sizes = [8, 8], strides = [1, 1]} : vector<8x32xf32> to vector<8x8xf32>
    %482 = vector.extract_strided_slice %470 {offsets = [0, 8], sizes = [8, 8], strides = [1, 1]} : vector<8x32xf32> to vector<8x8xf32>
    %483 = vector.extract_strided_slice %470 {offsets = [0, 16], sizes = [8, 8], strides = [1, 1]} : vector<8x32xf32> to vector<8x8xf32>
    %484 = vector.extract_strided_slice %470 {offsets = [0, 24], sizes = [8, 8], strides = [1, 1]} : vector<8x32xf32> to vector<8x8xf32>
    %485 = tpu.concatenate %481, %482, %483, %484 in 0 : vector<8x8xf32>, vector<8x8xf32>, vector<8x8xf32>, vector<8x8xf32> -> vector<32x8xf32>
    %cst_141 = arith.constant dense<0.000000e+00> : vector<32x32xf32>
    %486 = tpu.matmul %475, %480, %cst_141 {dimension_numbers = #tpu.dot_dimension_numbers<[1], [1], [0], [0], [0, 0, 1, 0], [], []>} : vector<32x8xf32>, vector<32x8xf32>, vector<32x32xf32> -> vector<32x32xf32>
    %487 = arith.addf %486, %336 : vector<32x32xf32>
    %cst_142 = arith.constant dense<0xFF800000> : vector<32xf32>
    %488 = vector.multi_reduction <maximumf>, %487, %cst_142 [1] : vector<32x32xf32> to vector<32xf32>
    %489 = vector.shape_cast %488 : vector<32xf32> to vector<32x1xf32>
    %490 = vector.broadcast %489 : vector<32x1xf32> to vector<32x32xf32>
    %491 = arith.subf %487, %490 : vector<32x32xf32>
    %492 = math.exp %491 : vector<32x32xf32>
    %cst_143 = arith.constant dense<0.000000e+00> : vector<32xf32>
    %493 = vector.multi_reduction <add>, %492, %cst_143 [1] : vector<32x32xf32> to vector<32xf32>
    %494 = vector.shape_cast %493 : vector<32xf32> to vector<32x1xf32>
    %495 = tpu.reciprocal %494 {approx = true} : vector<32x1xf32> -> vector<32x1xf32>
    %496 = arith.mulf %494, %495 : vector<32x1xf32>
    %cst_144 = arith.constant 2.000000e+00 : f32
    %497 = vector.broadcast %cst_144 : f32 to vector<32x1xf32>
    %498 = arith.subf %497, %496 : vector<32x1xf32>
    %499 = arith.mulf %495, %498 : vector<32x1xf32>
    %500 = vector.broadcast %499 : vector<32x1xf32> to vector<32x32xf32>
    %501 = arith.mulf %492, %500 : vector<32x32xf32>
    %cst_145 = arith.constant dense<0.000000e+00> : vector<32x8xf32>
    %502 = tpu.matmul %501, %485, %cst_145 {dimension_numbers = #tpu.dot_dimension_numbers<[1], [0], [0], [1], [0, 0, 1, 1], [], []>} : vector<32x32xf32>, vector<32x8xf32>, vector<32x8xf32> -> vector<32x8xf32>
    %503 = vector.extract_strided_slice %502 {offsets = [0, 0], sizes = [8, 8], strides = [1, 1]} : vector<32x8xf32> to vector<8x8xf32>
    %504 = vector.extract_strided_slice %502 {offsets = [8, 0], sizes = [8, 8], strides = [1, 1]} : vector<32x8xf32> to vector<8x8xf32>
    %505 = vector.extract_strided_slice %502 {offsets = [16, 0], sizes = [8, 8], strides = [1, 1]} : vector<32x8xf32> to vector<8x8xf32>
    %506 = vector.extract_strided_slice %502 {offsets = [24, 0], sizes = [8, 8], strides = [1, 1]} : vector<32x8xf32> to vector<8x8xf32>
    %507 = tpu.concatenate %503, %504, %505, %506 in 1 : vector<8x8xf32>, vector<8x8xf32>, vector<8x8xf32>, vector<8x8xf32> -> vector<8x32xf32>
    %c1_146 = arith.constant 1 : index
    %c0_147 = arith.constant 0 : index
    %c0_148 = arith.constant 0 : index
    %508 = vector.load %arg7[%c1_146, %c0_147, %c0_148] : memref<2x32x32xf32, #tpu.memory_space<vmem>>, vector<1x32x32xf32>
    %509 = vector.shape_cast %508 : vector<1x32x32xf32> to vector<32x32xf32>
    %cst_149 = arith.constant dense<0.000000e+00> : vector<8x32xf32>
    %510 = tpu.matmul %507, %509, %cst_149 {dimension_numbers = #tpu.dot_dimension_numbers<[1], [0], [0], [1], [0, 0, 1, 1], [], []>} : vector<8x32xf32>, vector<32x32xf32>, vector<8x32xf32> -> vector<8x32xf32>
    %c1_150 = arith.constant 1 : index
    %c0_151 = arith.constant 0 : index
    %c0_152 = arith.constant 0 : index
    %511 = vector.load %arg8[%c1_150, %c0_151, %c0_152] : memref<2x1x32xf32, #tpu.memory_space<vmem>>, vector<1x1x32xf32>
    %512 = vector.shape_cast %511 : vector<1x1x32xf32> to vector<1x32xf32>
    %513 = vector.broadcast %512 : vector<1x32xf32> to vector<8x32xf32>
    %514 = arith.addf %510, %513 : vector<8x32xf32>
    %515 = arith.addf %460, %514 : vector<8x32xf32>
    %c1_153 = arith.constant 1 : index
    %c0_154 = arith.constant 0 : index
    %c0_155 = arith.constant 0 : index
    %516 = vector.load %arg9[%c1_153, %c0_154, %c0_155] : memref<2x1x32xf32, #tpu.memory_space<vmem>>, vector<1x1x32xf32>
    %517 = vector.shape_cast %516 : vector<1x1x32xf32> to vector<1x32xf32>
    %c1_156 = arith.constant 1 : index
    %c0_157 = arith.constant 0 : index
    %c0_158 = arith.constant 0 : index
    %518 = vector.load %arg10[%c1_156, %c0_157, %c0_158] : memref<2x1x32xf32, #tpu.memory_space<vmem>>, vector<1x1x32xf32>
    %519 = vector.shape_cast %518 : vector<1x1x32xf32> to vector<1x32xf32>
    %cst_159 = arith.constant dense<0.000000e+00> : vector<8xf32>
    %520 = vector.multi_reduction <add>, %515, %cst_159 [1] : vector<8x32xf32> to vector<8xf32>
    %521 = vector.shape_cast %520 : vector<8xf32> to vector<8x1xf32>
    %cst_160 = arith.constant 3.200000e+01 : f32
    %522 = vector.broadcast %cst_160 : f32 to vector<8x1xf32>
    %523 = arith.divf %521, %522 : vector<8x1xf32>
    %524 = vector.broadcast %523 : vector<8x1xf32> to vector<8x32xf32>
    %525 = arith.subf %515, %524 : vector<8x32xf32>
    %526 = arith.mulf %525, %525 : vector<8x32xf32>
    %cst_161 = arith.constant dense<0.000000e+00> : vector<8xf32>
    %527 = vector.multi_reduction <add>, %526, %cst_161 [1] : vector<8x32xf32> to vector<8xf32>
    %528 = vector.shape_cast %527 : vector<8xf32> to vector<8x1xf32>
    %cst_162 = arith.constant 3.200000e+01 : f32
    %529 = vector.broadcast %cst_162 : f32 to vector<8x1xf32>
    %530 = arith.divf %528, %529 : vector<8x1xf32>
    %531 = vector.broadcast %523 : vector<8x1xf32> to vector<8x32xf32>
    %532 = arith.subf %515, %531 : vector<8x32xf32>
    %cst_163 = arith.constant 9.99999974E-6 : f32
    %533 = vector.broadcast %cst_163 : f32 to vector<8x1xf32>
    %534 = arith.addf %530, %533 : vector<8x1xf32>
    %535 = math.rsqrt %534 : vector<8x1xf32>
    %536 = vector.broadcast %535 : vector<8x1xf32> to vector<8x32xf32>
    %537 = arith.mulf %532, %536 : vector<8x32xf32>
    %538 = vector.broadcast %517 : vector<1x32xf32> to vector<8x32xf32>
    %539 = arith.mulf %537, %538 : vector<8x32xf32>
    %540 = vector.broadcast %519 : vector<1x32xf32> to vector<8x32xf32>
    %541 = arith.addf %539, %540 : vector<8x32xf32>
    %c1_164 = arith.constant 1 : index
    %c0_165 = arith.constant 0 : index
    %c0_166 = arith.constant 0 : index
    %542 = vector.load %arg11[%c1_164, %c0_165, %c0_166] : memref<2x32x64xf32, #tpu.memory_space<vmem>>, vector<1x32x64xf32>
    %543 = vector.shape_cast %542 : vector<1x32x64xf32> to vector<32x64xf32>
    %cst_167 = arith.constant dense<0.000000e+00> : vector<8x64xf32>
    %544 = tpu.matmul %541, %543, %cst_167 {dimension_numbers = #tpu.dot_dimension_numbers<[1], [0], [0], [1], [0, 0, 1, 1], [], []>} : vector<8x32xf32>, vector<32x64xf32>, vector<8x64xf32> -> vector<8x64xf32>
    %c1_168 = arith.constant 1 : index
    %c0_169 = arith.constant 0 : index
    %c0_170 = arith.constant 0 : index
    %545 = vector.load %arg12[%c1_168, %c0_169, %c0_170] : memref<2x1x64xf32, #tpu.memory_space<vmem>>, vector<1x1x64xf32>
    %546 = vector.shape_cast %545 : vector<1x1x64xf32> to vector<1x64xf32>
    %547 = vector.broadcast %546 : vector<1x64xf32> to vector<8x64xf32>
    %548 = arith.addf %544, %547 : vector<8x64xf32>
    %cst_171 = arith.constant 0.000000e+00 : f32
    %549 = vector.broadcast %cst_171 : f32 to vector<8x64xf32>
    %550 = arith.maximumf %548, %549 : vector<8x64xf32>
    %c1_172 = arith.constant 1 : index
    %c0_173 = arith.constant 0 : index
    %c0_174 = arith.constant 0 : index
    %551 = vector.load %arg13[%c1_172, %c0_173, %c0_174] : memref<2x64x32xf32, #tpu.memory_space<vmem>>, vector<1x64x32xf32>
    %552 = vector.shape_cast %551 : vector<1x64x32xf32> to vector<64x32xf32>
    %cst_175 = arith.constant dense<0.000000e+00> : vector<8x32xf32>
    %553 = tpu.matmul %550, %552, %cst_175 {dimension_numbers = #tpu.dot_dimension_numbers<[1], [0], [0], [1], [0, 0, 1, 1], [], []>} : vector<8x64xf32>, vector<64x32xf32>, vector<8x32xf32> -> vector<8x32xf32>
    %c1_176 = arith.constant 1 : index
    %c0_177 = arith.constant 0 : index
    %c0_178 = arith.constant 0 : index
    %554 = vector.load %arg14[%c1_176, %c0_177, %c0_178] : memref<2x1x32xf32, #tpu.memory_space<vmem>>, vector<1x1x32xf32>
    %555 = vector.shape_cast %554 : vector<1x1x32xf32> to vector<1x32xf32>
    %556 = vector.broadcast %555 : vector<1x32xf32> to vector<8x32xf32>
    %557 = arith.addf %553, %556 : vector<8x32xf32>
    %558 = arith.addf %541, %557 : vector<8x32xf32>
    %c1_179 = arith.constant 1 : index
    %c0_180 = arith.constant 0 : index
    %c0_181 = arith.constant 0 : index
    %559 = vector.load %arg15[%c1_179, %c0_180, %c0_181] : memref<2x1x32xf32, #tpu.memory_space<vmem>>, vector<1x1x32xf32>
    %560 = vector.shape_cast %559 : vector<1x1x32xf32> to vector<1x32xf32>
    %c1_182 = arith.constant 1 : index
    %c0_183 = arith.constant 0 : index
    %c0_184 = arith.constant 0 : index
    %561 = vector.load %arg16[%c1_182, %c0_183, %c0_184] : memref<2x1x32xf32, #tpu.memory_space<vmem>>, vector<1x1x32xf32>
    %562 = vector.shape_cast %561 : vector<1x1x32xf32> to vector<1x32xf32>
    %cst_185 = arith.constant dense<0.000000e+00> : vector<8xf32>
    %563 = vector.multi_reduction <add>, %558, %cst_185 [1] : vector<8x32xf32> to vector<8xf32>
    %564 = vector.shape_cast %563 : vector<8xf32> to vector<8x1xf32>
    %cst_186 = arith.constant 3.200000e+01 : f32
    %565 = vector.broadcast %cst_186 : f32 to vector<8x1xf32>
    %566 = arith.divf %564, %565 : vector<8x1xf32>
    %567 = vector.broadcast %566 : vector<8x1xf32> to vector<8x32xf32>
    %568 = arith.subf %558, %567 : vector<8x32xf32>
    %569 = arith.mulf %568, %568 : vector<8x32xf32>
    %cst_187 = arith.constant dense<0.000000e+00> : vector<8xf32>
    %570 = vector.multi_reduction <add>, %569, %cst_187 [1] : vector<8x32xf32> to vector<8xf32>
    %571 = vector.shape_cast %570 : vector<8xf32> to vector<8x1xf32>
    %cst_188 = arith.constant 3.200000e+01 : f32
    %572 = vector.broadcast %cst_188 : f32 to vector<8x1xf32>
    %573 = arith.divf %571, %572 : vector<8x1xf32>
    %574 = vector.broadcast %566 : vector<8x1xf32> to vector<8x32xf32>
    %575 = arith.subf %558, %574 : vector<8x32xf32>
    %cst_189 = arith.constant 9.99999974E-6 : f32
    %576 = vector.broadcast %cst_189 : f32 to vector<8x1xf32>
    %577 = arith.addf %573, %576 : vector<8x1xf32>
    %578 = math.rsqrt %577 : vector<8x1xf32>
    %579 = vector.broadcast %578 : vector<8x1xf32> to vector<8x32xf32>
    %580 = arith.mulf %575, %579 : vector<8x32xf32>
    %581 = vector.broadcast %560 : vector<1x32xf32> to vector<8x32xf32>
    %582 = arith.mulf %580, %581 : vector<8x32xf32>
    %583 = vector.broadcast %562 : vector<1x32xf32> to vector<8x32xf32>
    %584 = arith.addf %582, %583 : vector<8x32xf32>
    %c0_190 = arith.constant 0 : index
    %c0_191 = arith.constant 0 : index
    %585 = vector.load %arg17[%c0_190, %c0_191] : memref<32x16xf32, #tpu.memory_space<vmem>>, vector<32x16xf32>
    %cst_192 = arith.constant dense<0.000000e+00> : vector<8x16xf32>
    %586 = tpu.matmul %584, %585, %cst_192 {dimension_numbers = #tpu.dot_dimension_numbers<[1], [0], [0], [1], [0, 0, 1, 1], [], []>} : vector<8x32xf32>, vector<32x16xf32>, vector<8x16xf32> -> vector<8x16xf32>
    %c0_193 = arith.constant 0 : index
    %c0_194 = arith.constant 0 : index
    %587 = vector.load %arg18[%c0_193, %c0_194] : memref<1x16xf32, #tpu.memory_space<vmem>>, vector<1x16xf32>
    %588 = vector.broadcast %587 : vector<1x16xf32> to vector<8x16xf32>
    %589 = arith.addf %586, %588 : vector<8x16xf32>
    %cst_195 = arith.constant 0.000000e+00 : f32
    %590 = vector.broadcast %cst_195 : f32 to vector<8x16xf32>
    %591 = arith.maximumf %589, %590 : vector<8x16xf32>
    %c0_196 = arith.constant 0 : index
    %c0_197 = arith.constant 0 : index
    %592 = vector.load %arg19[%c0_196, %c0_197] : memref<16x2xf32, #tpu.memory_space<vmem>>, vector<16x2xf32>
    %cst_198 = arith.constant dense<0.000000e+00> : vector<8x2xf32>
    %593 = tpu.matmul %591, %592, %cst_198 {dimension_numbers = #tpu.dot_dimension_numbers<[1], [0], [0], [1], [0, 0, 1, 1], [], []>} : vector<8x16xf32>, vector<16x2xf32>, vector<8x2xf32> -> vector<8x2xf32>
    %c0_199 = arith.constant 0 : index
    %c0_200 = arith.constant 0 : index
    %594 = vector.load %arg20[%c0_199, %c0_200] : memref<1x2xf32, #tpu.memory_space<vmem>>, vector<1x2xf32>
    %595 = vector.broadcast %594 : vector<1x2xf32> to vector<8x2xf32>
    %596 = arith.addf %593, %595 : vector<8x2xf32>
    %597 = vector.extract_strided_slice %596 {offsets = [3, 0], sizes = [1, 2], strides = [1, 1]} : vector<8x2xf32> to vector<1x2xf32>
    %598 = vector.extract_strided_slice %596 {offsets = [7, 0], sizes = [1, 2], strides = [1, 1]} : vector<8x2xf32> to vector<1x2xf32>
    %599 = tpu.concatenate %597, %598 in 0 : vector<1x2xf32>, vector<1x2xf32> -> vector<2x2xf32>
    %c0_201 = arith.constant 0 : index
    %c0_202 = arith.constant 0 : index
    %600 = vector.load %arg21[%c0_201, %c0_202] : memref<2x2xf32, #tpu.memory_space<vmem>>, vector<2x2xf32>
    tpu.vector_store %arg21[%c0_201, %c0_202], %599 {strides = array<i32>} : memref<2x2xf32, #tpu.memory_space<vmem>>, vector<2x2xf32>,
    return
  }
}

</mosaic_0001>

<llo_original>
// kernel: forward_pallas.1
$region0: #{forward_pallas.1}
  #allocation0 [shape = 'u32[]', space=smem, size = 0x4, offset = 0x4, fixed_abs, tag = 'smem constant byte address 0x4 - core index']
  #allocation1 [shape = 'u32[144,128]{1,0:T(1,128)}', space=vmem, size = 0x12000, scoped, tag = 'internal scratch']
  #allocation2 [shape = 'f32[16,8,64]{2,1,0:T(8,128)}', space=vmem, size = 0x10000, scoped, tag = 'scratch operand']
  %s0 = inlined_call_operand.vmem [shape: f32[16,8], index: 0, kind: input, shape index: {}]
  %s1 = inlined_call_operand.vmem [shape: f32[1,64], index: 1, kind: input, shape index: {}]
  %s2 = inlined_call_operand.vmem [shape: f32[16,64], index: 2, kind: input, shape index: {}]
  %s3 = inlined_call_operand.hbm [shape: f32[1,64], index: 3, kind: input, shape index: {}]
  %s4 = inlined_call_operand.vmem [shape: f32[32,32], index: 4, kind: input, shape index: {}]
  %s5 = inlined_call_operand.vmem [shape: f32[2,32,96], index: 5, kind: input, shape index: {}]
  %s6 = inlined_call_operand.vmem [shape: f32[2,1,96], index: 6, kind: input, shape index: {}]
  %s7 = inlined_call_operand.vmem [shape: f32[2,32,32], index: 7, kind: input, shape index: {}]
  %s8 = inlined_call_operand.vmem [shape: f32[2,1,32], index: 8, kind: input, shape index: {}]
  %s9 = inlined_call_operand.vmem [shape: f32[2,1,32], index: 9, kind: input, shape index: {}]
  %s10 = inlined_call_operand.vmem [shape: f32[2,1,32], index: 10, kind: input, shape index: {}]
  %s11 = inlined_call_operand.vmem [shape: f32[2,32,64], index: 11, kind: input, shape index: {}]
  %s12 = inlined_call_operand.vmem [shape: f32[2,1,64], index: 12, kind: input, shape index: {}]
  %s13 = inlined_call_operand.vmem [shape: f32[2,64,32], index: 13, kind: input, shape index: {}]
  %s14 = inlined_call_operand.hbm [shape: f32[2,1,32], index: 14, kind: input, shape index: {}]
  %s15 = inlined_call_operand.hbm [shape: f32[2,1,32], index: 15, kind: input, shape index: {}]
  %s16 = inlined_call_operand.hbm [shape: f32[2,1,32], index: 16, kind: input, shape index: {}]
  %s17 = inlined_call_operand.vmem [shape: f32[32,16], index: 17, kind: input, shape index: {}]
  %s18 = inlined_call_operand.hbm [shape: f32[1,16], index: 18, kind: input, shape index: {}]
  %s19 = inlined_call_operand.vmem [shape: f32[16,2], index: 19, kind: input, shape index: {}]
  %s20 = inlined_call_operand.hbm [shape: f32[1,2], index: 20, kind: input, shape index: {}]
  %s21 = inlined_call_operand.hbm [shape: f32[2,2], index: 21, kind: output, shape index: {}]
  %s22 = sld [smem:[#allocation0]]
  $region118: #{forward_pallas.1} parent=0
    _
  %s24 = ssub.s32 1, %s22
  %s25 = scalar_select 0, %s24, %s22
  $region1: #{forward_pallas.1} parent=0
    #allocation3 [shape = 'u8[512]{0}', space=vmem, size = 0x400, scoped, tag = 'input window, operand 3, single buffered']
    #allocation4 [shape = 's32[1]{0}', space=sflag, size = 0x4, scoped, tag = 'scoped memory for forward_pallas.1']
    #allocation5 [shape = 's32[1]{0}', space=sflag, size = 0x4, scoped, tag = 'scoped memory for forward_pallas.1']
    #allocation6 [shape = 'u8[1024]{0}', space=vmem, size = 0x400, scoped, tag = 'input window, operand 14, single buffered']
    #allocation7 [shape = 's32[1]{0}', space=sflag, size = 0x4, scoped, tag = 'scoped memory for forward_pallas.1']
    #allocation8 [shape = 'u8[1024]{0}', space=vmem, size = 0x400, scoped, tag = 'input window, operand 15, single buffered']
    #allocation9 [shape = 'u8[1024]{0}', space=vmem, size = 0x400, scoped, tag = 'input window, operand 16, single buffered']
    #allocation10 [shape = 's32[1]{0}', space=sflag, size = 0x4, scoped, tag = 'scoped memory for forward_pallas.1']
    #allocation11 [shape = 'u8[512]{0}', space=vmem, size = 0x400, scoped, tag = 'input window, operand 18, single buffered']
    #allocation12 [shape = 'u8[512]{0}', space=vmem, size = 0x400, scoped, tag = 'input window, operand 20, single buffered']
    #allocation13 [shape = 's32[1]{0}', space=sflag, size = 0x4, scoped, tag = 'scoped memory for forward_pallas.1']
    #allocation14 [shape = 'u8[1024]{0}', space=vmem, size = 0x400, scoped, tag = 'output window, operand 0, single buffered']
    %26 = vsyncpa [#allocation4], 0
    %27 = vsyncpa [#allocation7], 0
    %28 = vsyncpa [#allocation10], 0
    %29 = vsyncpa [#allocation13], 0
    %30 = vsyncpa [#allocation5], 0
    // Predicated region
    $region2: #{forward_pallas.1} parent=1 // pred_check
      _
    $region3: #{forward_pallas.1} parent=1 // pred_check_branch
      %32 = sbr.rel (0) target = $region5
    $region4: #{forward_pallas.1} parent=1 // pred_region
      _
    $region5: #{forward_pallas.1} parent=1 // pred_fallthru
      _
    // Predicated region
    $region6: #{forward_pallas.1} parent=1 // pred_check
      _
    $region7: #{forward_pallas.1} parent=1 // pred_check_branch
      %34 = sbr.rel (0) target = $region9
    $region8: #{forward_pallas.1} parent=1 // pred_region
      _
    $region9: #{forward_pallas.1} parent=1 // pred_fallthru
      _
    // Predicated region
    $region10: #{forward_pallas.1} parent=1 // pred_check
      _
    $region11: #{forward_pallas.1} parent=1 // pred_check_branch
      %36 = sbr.rel (0) target = $region13
    $region12: #{forward_pallas.1} parent=1 // pred_region
      _
    $region13: #{forward_pallas.1} parent=1 // pred_fallthru
      _
    // Predicated region
    $region14: #{forward_pallas.1} parent=1 // pred_check
      _
    $region15: #{forward_pallas.1} parent=1 // pred_check_branch
      %38 = sbr.rel (0) target = $region17
    $region16: #{forward_pallas.1} parent=1 // pred_region
      %s40 = ssub.s32 16, 16
      %41 = vsyncadd [#allocation4], %s40
      %s43 = sshll.u32 [#allocation3], 4
      %s44 = int_to_ptr.vmem [resolvable:$true] %s43
      %46 = dma.hbm_to_vmem [thread:$0]  %s3, 16, %s44, [#allocation4]
    $region17: #{forward_pallas.1} parent=1 // pred_fallthru
      _
    // Predicated region
    $region18: #{forward_pallas.1} parent=1 // pred_check
      _
    $region19: #{forward_pallas.1} parent=1 // pred_check_branch
      %48 = sbr.rel (0) target = $region21
    $region20: #{forward_pallas.1} parent=1 // pred_region
      _
    $region21: #{forward_pallas.1} parent=1 // pred_fallthru
      _
    // Predicated region
    $region22: #{forward_pallas.1} parent=1 // pred_check
      _
    $region23: #{forward_pallas.1} parent=1 // pred_check_branch
      %50 = sbr.rel (0) target = $region25
    $region24: #{forward_pallas.1} parent=1 // pred_region
      _
    $region25: #{forward_pallas.1} parent=1 // pred_fallthru
      _
    // Predicated region
    $region26: #{forward_pallas.1} parent=1 // pred_check
      _
    $region27: #{forward_pallas.1} parent=1 // pred_check_branch
      %52 = sbr.rel (0) target = $region29
    $region28: #{forward_pallas.1} parent=1 // pred_region
      _
    $region29: #{forward_pallas.1} parent=1 // pred_fallthru
      _
    // Predicated region
    $region30: #{forward_pallas.1} parent=1 // pred_check
      _
    $region31: #{forward_pallas.1} parent=1 // pred_check_branch
      %54 = sbr.rel (0) target = $region33
    $region32: #{forward_pallas.1} parent=1 // pred_region
      _
    $region33: #{forward_pallas.1} parent=1 // pred_fallthru
      _
    // Predicated region
    $region34: #{forward_pallas.1} parent=1 // pred_check
      _
    $region35: #{forward_pallas.1} parent=1 // pred_check_branch
      %56 = sbr.rel (0) target = $region37
    $region36: #{forward_pallas.1} parent=1 // pred_region
      _
    $region37: #{forward_pallas.1} parent=1 // pred_fallthru
      _
    // Predicated region
    $region38: #{forward_pallas.1} parent=1 // pred_check
      _
    $region39: #{forward_pallas.1} parent=1 // pred_check_branch
      %58 = sbr.rel (0) target = $region41
    $region40: #{forward_pallas.1} parent=1 // pred_region
      _
    $region41: #{forward_pallas.1} parent=1 // pred_fallthru
      _
    // Predicated region
    $region42: #{forward_pallas.1} parent=1 // pred_check
      _
    $region43: #{forward_pallas.1} parent=1 // pred_check_branch
      %60 = sbr.rel (0) target = $region45
    $region44: #{forward_pallas.1} parent=1 // pred_region
      _
    $region45: #{forward_pallas.1} parent=1 // pred_fallthru
      _
    // Predicated region
    $region46: #{forward_pallas.1} parent=1 // pred_check
      _
    $region47: #{forward_pallas.1} parent=1 // pred_check_branch
      %62 = sbr.rel (0) target = $region49
    $region48: #{forward_pallas.1} parent=1 // pred_region
      _
    $region49: #{forward_pallas.1} parent=1 // pred_fallthru
      _
    // Predicated region
    $region50: #{forward_pallas.1} parent=1 // pred_check
      _
    $region51: #{forward_pallas.1} parent=1 // pred_check_branch
      %64 = sbr.rel (0) target = $region53
    $region52: #{forward_pallas.1} parent=1 // pred_region
      _
    $region53: #{forward_pallas.1} parent=1 // pred_fallthru
      _
    // Predicated region
    $region54: #{forward_pallas.1} parent=1 // pred_check
      _
    $region55: #{forward_pallas.1} parent=1 // pred_check_branch
      %66 = sbr.rel (0) target = $region57
    $region56: #{forward_pallas.1} parent=1 // pred_region
      _
    $region57: #{forward_pallas.1} parent=1 // pred_fallthru
      _
    // Predicated region
    $region58: #{forward_pallas.1} parent=1 // pred_check
      _
    $region59: #{forward_pallas.1} parent=1 // pred_check_branch
      %68 = sbr.rel (0) target = $region61
    $region60: #{forward_pallas.1} parent=1 // pred_region
      %s70 = ssub.s32 32, 32
      %71 = vsyncadd [#allocation7], %s70
      %s72 = sshll.u32 [#allocation6], 4
      %s73 = int_to_ptr.vmem [resolvable:$true] %s72
      %78 = dma.hbm_to_vmem [thread:$0]  %s14, 32, %s73, [#allocation7], 16, 16, 1
    $region61: #{forward_pallas.1} parent=1 // pred_fallthru
      _
    // Predicated region
    $region62: #{forward_pallas.1} parent=1 // pred_check
      _
    $region63: #{forward_pallas.1} parent=1 // pred_check_branch
      %80 = sbr.rel (0) target = $region65
    $region64: #{forward_pallas.1} parent=1 // pred_region
      %s82 = ssub.s32 32, 32
      %83 = vsyncadd [#allocation7], %s82
      %s84 = sshll.u32 [#allocation8], 4
      %s85 = int_to_ptr.vmem [resolvable:$true] %s84
      %90 = dma.hbm_to_vmem [thread:$0]  %s15, 32, %s85, [#allocation7], 16, 16, 1
    $region65: #{forward_pallas.1} parent=1 // pred_fallthru
      _
    // Predicated region
    $region66: #{forward_pallas.1} parent=1 // pred_check
      _
    $region67: #{forward_pallas.1} parent=1 // pred_check_branch
      %92 = sbr.rel (0) target = $region69
    $region68: #{forward_pallas.1} parent=1 // pred_region
      %s94 = ssub.s32 32, 32
      %95 = vsyncadd [#allocation10], %s94
      %s96 = sshll.u32 [#allocation9], 4
      %s97 = int_to_ptr.vmem [resolvable:$true] %s96
      %102 = dma.hbm_to_vmem [thread:$0]  %s16, 32, %s97, [#allocation10], 16, 16, 1
    $region69: #{forward_pallas.1} parent=1 // pred_fallthru
      _
    // Predicated region
    $region70: #{forward_pallas.1} parent=1 // pred_check
      _
    $region71: #{forward_pallas.1} parent=1 // pred_check_branch
      %104 = sbr.rel (0) target = $region73
    $region72: #{forward_pallas.1} parent=1 // pred_region
      _
    $region73: #{forward_pallas.1} parent=1 // pred_fallthru
      _
    // Predicated region
    $region74: #{forward_pallas.1} parent=1 // pred_check
      _
    $region75: #{forward_pallas.1} parent=1 // pred_check_branch
      %106 = sbr.rel (0) target = $region77
    $region76: #{forward_pallas.1} parent=1 // pred_region
      %s108 = ssub.s32 16, 16
      %109 = vsyncadd [#allocation10], %s108
      %s111 = sshll.u32 [#allocation11], 4
      %s112 = int_to_ptr.vmem [resolvable:$true] %s111
      %114 = dma.hbm_to_vmem [thread:$0]  %s18, 16, %s112, [#allocation10]
    $region77: #{forward_pallas.1} parent=1 // pred_fallthru
      _
    // Predicated region
    $region78: #{forward_pallas.1} parent=1 // pred_check
      _
    $region79: #{forward_pallas.1} parent=1 // pred_check_branch
      %116 = sbr.rel (0) target = $region81
    $region80: #{forward_pallas.1} parent=1 // pred_region
      _
    $region81: #{forward_pallas.1} parent=1 // pred_fallthru
      _
    // Predicated region
    $region82: #{forward_pallas.1} parent=1 // pred_check
      _
    $region83: #{forward_pallas.1} parent=1 // pred_check_branch
      %118 = sbr.rel (0) target = $region85
    $region84: #{forward_pallas.1} parent=1 // pred_region
      %s120 = ssub.s32 16, 16
      %121 = vsyncadd [#allocation13], %s120
      %s123 = sshll.u32 [#allocation12], 4
      %s124 = int_to_ptr.vmem [resolvable:$true] %s123
      %126 = dma.hbm_to_vmem [thread:$0]  %s20, 16, %s124, [#allocation13]
    $region85: #{forward_pallas.1} parent=1 // pred_fallthru
      _
    // Predicated region
    $region86: #{forward_pallas.1} parent=1 // pred_check
      _
    $region87: #{forward_pallas.1} parent=1 // pred_check_branch
      %128 = sbr.rel (0) target = $region89
    $region88: #{forward_pallas.1} parent=1 // pred_region
      %129 = dma.done [#allocation4], 16
    $region89: #{forward_pallas.1} parent=1 // pred_fallthru
      _
    // Predicated region
    $region90: #{forward_pallas.1} parent=1 // pred_check
      _
    $region91: #{forward_pallas.1} parent=1 // pred_check_branch
      %131 = sbr.rel (0) target = $region93
    $region92: #{forward_pallas.1} parent=1 // pred_region
      %132 = dma.done [#allocation7], 32
    $region93: #{forward_pallas.1} parent=1 // pred_fallthru
      _
    // Predicated region
    $region94: #{forward_pallas.1} parent=1 // pred_check
      _
    $region95: #{forward_pallas.1} parent=1 // pred_check_branch
      %134 = sbr.rel (0) target = $region97
    $region96: #{forward_pallas.1} parent=1 // pred_region
      %135 = dma.done [#allocation7], 32
    $region97: #{forward_pallas.1} parent=1 // pred_fallthru
      _
    // Predicated region
    $region98: #{forward_pallas.1} parent=1 // pred_check
      _
    $region99: #{forward_pallas.1} parent=1 // pred_check_branch
      %137 = sbr.rel (0) target = $region101
    $region100: #{forward_pallas.1} parent=1 // pred_region
      %138 = dma.done [#allocation10], 32
    $region101: #{forward_pallas.1} parent=1 // pred_fallthru
      _
    // Predicated region
    $region102: #{forward_pallas.1} parent=1 // pred_check
      _
    $region103: #{forward_pallas.1} parent=1 // pred_check_branch
      %140 = sbr.rel (0) target = $region105
    $region104: #{forward_pallas.1} parent=1 // pred_region
      %141 = dma.done [#allocation10], 16
    $region105: #{forward_pallas.1} parent=1 // pred_fallthru
      _
    // Predicated region
    $region106: #{forward_pallas.1} parent=1 // pred_check
      _
    $region107: #{forward_pallas.1} parent=1 // pred_check_branch
      %143 = sbr.rel (0) target = $region109
    $region108: #{forward_pallas.1} parent=1 // pred_region
      %144 = dma.done [#allocation13], 16
    $region109: #{forward_pallas.1} parent=1 // pred_fallthru
      _
    %v145 = vld [vmem:[%s1] sm:$0x1]
    %v146 = vld [vmem:[#allocation3] sm:$0x1]
    %v147 = vld [vmem:[%s0] sm:$0xff]
    %v148 = vld [vmem:[%s0 + $0x8] sm:$0xff]
    %v149 = vlaneseq
    %v150 = vshrl.u32 %v149, 7
    %v151 = vsub.s32 0, %v150
    %v152 = vrot.slane %v147, %v151
    %154 = vbcast.lane.b32.xlu0 %v152, 256
    %v155 = vpop.permute.xlu0 %154
    %v156 = vlaneseq
    %v157 = vshrl.u32 %v156, 7
    %v158 = vsub.s32 1, %v157
    %v159 = vrot.slane %v147, %v158
    %161 = vbcast.lane.b32.xlu0 %v159, 256
    %v162 = vpop.permute.xlu0 %161
    %v163 = vlaneseq
    %v164 = vshrl.u32 %v163, 7
    %v165 = vsub.s32 2, %v164
    %v166 = vrot.slane %v147, %v165
    %168 = vbcast.lane.b32.xlu0 %v166, 256
    %v169 = vpop.permute.xlu0 %168
    %v170 = vlaneseq
    %v171 = vshrl.u32 %v170, 7
    %v172 = vsub.s32 3, %v171
    %v173 = vrot.slane %v147, %v172
    %175 = vbcast.lane.b32.xlu0 %v173, 256
    %v176 = vpop.permute.xlu0 %175
    %v177 = vlaneseq
    %v178 = vshrl.u32 %v177, 7
    %v179 = vsub.s32 4, %v178
    %v180 = vrot.slane %v147, %v179
    %182 = vbcast.lane.b32.xlu0 %v180, 256
    %v183 = vpop.permute.xlu0 %182
    %v184 = vlaneseq
    %v185 = vshrl.u32 %v184, 7
    %v186 = vsub.s32 5, %v185
    %v187 = vrot.slane %v147, %v186
    %189 = vbcast.lane.b32.xlu0 %v187, 256
    %v190 = vpop.permute.xlu0 %189
    %v191 = vlaneseq
    %v192 = vshrl.u32 %v191, 7
    %v193 = vsub.s32 6, %v192
    %v194 = vrot.slane %v147, %v193
    %196 = vbcast.lane.b32.xlu0 %v194, 256
    %v197 = vpop.permute.xlu0 %196
    %v198 = vlaneseq
    %v199 = vshrl.u32 %v198, 7
    %v200 = vsub.s32 7, %v199
    %v201 = vrot.slane %v147, %v200
    %203 = vbcast.lane.b32.xlu0 %v201, 256
    %v204 = vpop.permute.xlu0 %203
    %v205 = vlaneseq
    %v206 = vshrl.u32 %v205, 7
    %v207 = vsub.s32 0, %v206
    %v208 = vrot.slane %v148, %v207
    %210 = vbcast.lane.b32.xlu0 %v208, 256
    %v211 = vpop.permute.xlu0 %210
    %v212 = vlaneseq
    %v213 = vshrl.u32 %v212, 7
    %v214 = vsub.s32 1, %v213
    %v215 = vrot.slane %v148, %v214
    %217 = vbcast.lane.b32.xlu0 %v215, 256
    %v218 = vpop.permute.xlu0 %217
    %v219 = vlaneseq
    %v220 = vshrl.u32 %v219, 7
    %v221 = vsub.s32 2, %v220
    %v222 = vrot.slane %v148, %v221
    %224 = vbcast.lane.b32.xlu0 %v222, 256
    %v225 = vpop.permute.xlu0 %224
    %v226 = vlaneseq
    %v227 = vshrl.u32 %v226, 7
    %v228 = vsub.s32 3, %v227
    %v229 = vrot.slane %v148, %v228
    %231 = vbcast.lane.b32.xlu0 %v229, 256
    %v232 = vpop.permute.xlu0 %231
    %v233 = vlaneseq
    %v234 = vshrl.u32 %v233, 7
    %v235 = vsub.s32 4, %v234
    %v236 = vrot.slane %v148, %v235
    %238 = vbcast.lane.b32.xlu0 %v236, 256
    %v239 = vpop.permute.xlu0 %238
    %v240 = vlaneseq
    %v241 = vshrl.u32 %v240, 7
    %v242 = vsub.s32 5, %v241
    %v243 = vrot.slane %v148, %v242
    %245 = vbcast.lane.b32.xlu0 %v243, 256
    %v246 = vpop.permute.xlu0 %245
    %v247 = vlaneseq
    %v248 = vshrl.u32 %v247, 7
    %v249 = vsub.s32 6, %v248
    %v250 = vrot.slane %v148, %v249
    %252 = vbcast.lane.b32.xlu0 %v250, 256
    %v253 = vpop.permute.xlu0 %252
    %v254 = vlaneseq
    %v255 = vshrl.u32 %v254, 7
    %v256 = vsub.s32 7, %v255
    %v257 = vrot.slane %v148, %v256
    %259 = vbcast.lane.b32.xlu0 %v257, 256
    %v260 = vpop.permute.xlu0 %259
    %v262 = vlaneseq
    %v263 = vshrl.u32 %v262, 7
    %v264 = vsub.s32 0, %v263
    %v265 = vrot.slane %v145, %v264
    %v267 = vmul.f32 %v155, %v265
    %v268 = vmul.f32 %v162, %v265
    %v269 = vmul.f32 %v169, %v265
    %v270 = vmul.f32 %v176, %v265
    %v271 = vmul.f32 %v183, %v265
    %v272 = vmul.f32 %v190, %v265
    %v273 = vmul.f32 %v197, %v265
    %v274 = vmul.f32 %v204, %v265
    %v275 = vmul.f32 %v211, %v265
    %v276 = vmul.f32 %v218, %v265
    %v277 = vmul.f32 %v225, %v265
    %v278 = vmul.f32 %v232, %v265
    %v279 = vmul.f32 %v239, %v265
    %v280 = vmul.f32 %v246, %v265
    %v281 = vmul.f32 %v253, %v265
    %v282 = vmul.f32 %v260, %v265
    %v284 = vlaneseq
    %v285 = vshrl.u32 %v284, 7
    %v286 = vsub.s32 0, %v285
    %v287 = vrot.slane %v146, %v286
    %v289 = vadd.f32 %v267, %v287
    %v290 = vadd.f32 %v268, %v287
    %v291 = vadd.f32 %v269, %v287
    %v292 = vadd.f32 %v270, %v287
    %v293 = vadd.f32 %v271, %v287
    %v294 = vadd.f32 %v272, %v287
    %v295 = vadd.f32 %v273, %v287
    %v296 = vadd.f32 %v274, %v287
    %v297 = vadd.f32 %v275, %v287
    %v298 = vadd.f32 %v276, %v287
    %v299 = vadd.f32 %v277, %v287
    %v300 = vadd.f32 %v278, %v287
    %v301 = vadd.f32 %v279, %v287
    %v302 = vadd.f32 %v280, %v287
    %v303 = vadd.f32 %v281, %v287
    %v304 = vadd.f32 %v282, %v287
    %vm305 = vcmask 523264
    %306 = vst.msk [vmem:[#allocation2] sm:$0xff] %vm305, %v289
    %307 = vst.msk [vmem:[#allocation2 + $0x8] sm:$0xff] %vm305, %v290
    %308 = vst.msk [vmem:[#allocation2 + $0x10] sm:$0xff] %vm305, %v291
    %309 = vst.msk [vmem:[#allocation2 + $0x18] sm:$0xff] %vm305, %v292
    %310 = vst.msk [vmem:[#allocation2 + $0x20] sm:$0xff] %vm305, %v293
    %311 = vst.msk [vmem:[#allocation2 + $0x28] sm:$0xff] %vm305, %v294
    %312 = vst.msk [vmem:[#allocation2 + $0x30] sm:$0xff] %vm305, %v295
    %313 = vst.msk [vmem:[#allocation2 + $0x38] sm:$0xff] %vm305, %v296
    %314 = vst.msk [vmem:[#allocation2 + $0x40] sm:$0xff] %vm305, %v297
    %315 = vst.msk [vmem:[#allocation2 + $0x48] sm:$0xff] %vm305, %v298
    %316 = vst.msk [vmem:[#allocation2 + $0x50] sm:$0xff] %vm305, %v299
    %317 = vst.msk [vmem:[#allocation2 + $0x58] sm:$0xff] %vm305, %v300
    %318 = vst.msk [vmem:[#allocation2 + $0x60] sm:$0xff] %vm305, %v301
    %319 = vst.msk [vmem:[#allocation2 + $0x68] sm:$0xff] %vm305, %v302
    %320 = vst.msk [vmem:[#allocation2 + $0x70] sm:$0xff] %vm305, %v303
    %321 = vst.msk [vmem:[#allocation2 + $0x78] sm:$0xff] %vm305, %v304
    %v322 = vld [vmem:[%s2] sm:$0xff]
    %v323 = vld [vmem:[%s2 + $0x8] sm:$0xff]
    %v324 = vld [vmem:[#allocation2] sm:$0xff]
    %vm325 = vcmask 130048
    %v327 = vsel %vm325, 0.0, 0
    %329 = vmatprep.subr.mxu0 0.0
    %330 = vmatpush1.msra.mxu0 0.0
    %331 = vmatprep.subr.mxu0 0.0
    %332 = vmatpush1.msra.mxu0 0.0
    %333 = vmatprep.subr.mxu0 0.0
    %334 = vmatpush1.msra.mxu0 0.0
    %335 = vmatprep.subr.mxu0 0.0
    %336 = vmatpush1.msra.mxu0 0.0
    %337 = vmatprep.subr.mxu0 0.0
    %338 = vmatpush1.msra.mxu0 0.0
    %339 = vmatprep.subr.mxu0 0.0
    %340 = vmatpush1.msra.mxu0 0.0
    %341 = vmatprep.subr.mxu0 0.0
    %342 = vmatpush1.msra.mxu0 0.0
    %343 = vmatprep.subr.mxu0 0.0
    %344 = vmatpush1.msra.mxu0 0.0
    %345 = vmatprep.subr.mxu0 0.0
    %346 = vmatpush1.msra.mxu0 0.0
    %347 = vmatprep.subr.mxu0 0.0
    %348 = vmatpush1.msra.mxu0 0.0
    %349 = vmatprep.subr.mxu0 0.0
    %350 = vmatpush1.msra.mxu0 0.0
    %351 = vmatprep.subr.mxu0 0.0
    %352 = vmatpush1.msra.mxu0 0.0
    %353 = vmatprep.subr.mxu0 0.0
    %354 = vmatpush1.msra.mxu0 0.0
    %355 = vmatprep.subr.mxu0 0.0
    %356 = vmatpush1.msra.mxu0 0.0
    %357 = vmatprep.subr.mxu0 0.0
    %358 = vmatpush1.msra.mxu0 %v323
    %359 = vmatprep.subr.mxu0 0.0
    %360 = vmatpush1.msra.mxu0 %v322
    %361 = vmatprep.subr.mxu0 0.0
    %362 = vmatpush2.msra.mxu0 0.0
    %363 = vmatprep.subr.mxu0 0.0
    %364 = vmatpush2.msra.mxu0 0.0
    %365 = vmatprep.subr.mxu0 0.0
    %366 = vmatpush2.msra.mxu0 0.0
    %367 = vmatprep.subr.mxu0 0.0
    %368 = vmatpush2.msra.mxu0 0.0
    %369 = vmatprep.subr.mxu0 0.0
    %370 = vmatpush2.msra.mxu0 0.0
    %371 = vmatprep.subr.mxu0 0.0
    %372 = vmatpush2.msra.mxu0 0.0
    %373 = vmatprep.subr.mxu0 0.0
    %374 = vmatpush2.msra.mxu0 0.0
    %375 = vmatprep.subr.mxu0 0.0
    %376 = vmatpush2.msra.mxu0 0.0
    %377 = vmatprep.subr.mxu0 0.0
    %378 = vmatpush2.msra.mxu0 0.0
    %379 = vmatprep.subr.mxu0 0.0
    %380 = vmatpush2.msra.mxu0 0.0
    %381 = vmatprep.subr.mxu0 0.0
    %382 = vmatpush2.msra.mxu0 0.0
    %383 = vmatprep.subr.mxu0 0.0
    %384 = vmatpush2.msra.mxu0 0.0
    %385 = vmatprep.subr.mxu0 0.0
    %386 = vmatpush2.msra.mxu0 0.0
    %387 = vmatprep.subr.mxu0 0.0
    %388 = vmatpush2.msra.mxu0 0.0
    %389 = vmatprep.subr.mxu0 0.0
    %390 = vmatpush2.msra.mxu0 0.0
    %391 = vmatprep.subr.mxu0 0.0
    %392 = vmatpush2.msra.mxu0 0.0
    %393 = vmatprep.mubr.f32.mxu0 0.0
    %394 = vmatmul.mubr.f32.gmra.mxu0 %v327
    %v395 = vpop.f32.mrf.mxu0
    %v396 = vadd.f32 0.0, %v395
    %v397 = vpop.f32.mrf.mxu0
    %398 = vdwg.mxu0
    %v399 = vadd.f32 %v324, %v396
    %v400 = vxor.u32 %v399, 2147483648
    %v401 = vmul.f32 %v400, 1.442695
    %v402 = vpow.pop %v401
    %v403 = vadd.f32 %v402, 1.0
    %v404 = vrcp.pop %v403
    %v405 = vmul.f32 1.0, %v404
    %v406 = vtanh.pop %v399
    %v407 = vmul.f32 %v405, 0.0
    %409 = vrot.lane.b32.xlu0 %v406, 80
    %v410 = vpop.permute.xlu0 %409
    %v412 = vmul.f32 %v405, %v410
    %414 = vrot.lane.b32.xlu0 %v412, 16
    %v415 = vpop.permute.xlu0 %414
    %v417 = vadd.f32 %v407, %v415
    %v418 = vtanh.pop %v417
    %420 = vrot.lane.b32.xlu0 %v418, 16
    %v421 = vpop.permute.xlu0 %420
    %v423 = vmul.f32 %v405, %v421
    %s424 = scalar_lea.vmem [#allocation2], 8
    %v425 = vld [vmem:[%s424] sm:$0xff]
    %427 = vrot.lane.b32.xlu0 %v423, 96
    %v428 = vpop.permute.xlu0 %427
    %v429 = vsel %vm325, %v428, 0
    %431 = vmatprep.subr.mxu0 0.0
    %432 = vmatpush1.msra.mxu0 0.0
    %433 = vmatprep.subr.mxu0 0.0
    %434 = vmatpush1.msra.mxu0 0.0
    %435 = vmatprep.subr.mxu0 0.0
    %436 = vmatpush1.msra.mxu0 0.0
    %437 = vmatprep.subr.mxu0 0.0
    %438 = vmatpush1.msra.mxu0 0.0
    %439 = vmatprep.subr.mxu0 0.0
    %440 = vmatpush1.msra.mxu0 0.0
    %441 = vmatprep.subr.mxu0 0.0
    %442 = vmatpush1.msra.mxu0 0.0
    %443 = vmatprep.subr.mxu0 0.0
    %444 = vmatpush1.msra.mxu0 0.0
    %445 = vmatprep.subr.mxu0 0.0
    %446 = vmatpush1.msra.mxu0 0.0
    %447 = vmatprep.subr.mxu0 0.0
    %448 = vmatpush1.msra.mxu0 0.0
    %449 = vmatprep.subr.mxu0 0.0
    %450 = vmatpush1.msra.mxu0 0.0
    %451 = vmatprep.subr.mxu0 0.0
    %452 = vmatpush1.msra.mxu0 0.0
    %453 = vmatprep.subr.mxu0 0.0
    %454 = vmatpush1.msra.mxu0 0.0
    %455 = vmatprep.subr.mxu0 0.0
    %456 = vmatpush1.msra.mxu0 0.0
    %457 = vmatprep.subr.mxu0 0.0
    %458 = vmatpush1.msra.mxu0 0.0
    %459 = vmatprep.subr.mxu0 0.0
    %460 = vmatpush1.msra.mxu0 %v323
    %461 = vmatprep.subr.mxu0 0.0
    %462 = vmatpush1.msra.mxu0 %v322
    %463 = vmatprep.subr.mxu0 0.0
    %464 = vmatpush2.msra.mxu0 0.0
    %465 = vmatprep.subr.mxu0 0.0
    %466 = vmatpush2.msra.mxu0 0.0
    %467 = vmatprep.subr.mxu0 0.0
    %468 = vmatpush2.msra.mxu0 0.0
    %469 = vmatprep.subr.mxu0 0.0
    %470 = vmatpush2.msra.mxu0 0.0
    %471 = vmatprep.subr.mxu0 0.0
    %472 = vmatpush2.msra.mxu0 0.0
    %473 = vmatprep.subr.mxu0 0.0
    %474 = vmatpush2.msra.mxu0 0.0
    %475 = vmatprep.subr.mxu0 0.0
    %476 = vmatpush2.msra.mxu0 0.0
    %477 = vmatprep.subr.mxu0 0.0
    %478 = vmatpush2.msra.mxu0 0.0
    %479 = vmatprep.subr.mxu0 0.0
    %480 = vmatpush2.msra.mxu0 0.0
    %481 = vmatprep.subr.mxu0 0.0
    %482 = vmatpush2.msra.mxu0 0.0
    %483 = vmatprep.subr.mxu0 0.0
    %484 = vmatpush2.msra.mxu0 0.0
    %485 = vmatprep.subr.mxu0 0.0
    %486 = vmatpush2.msra.mxu0 0.0
    %487 = vmatprep.subr.mxu0 0.0
    %488 = vmatpush2.msra.mxu0 0.0
    %489 = vmatprep.subr.mxu0 0.0
    %490 = vmatpush2.msra.mxu0 0.0
    %491 = vmatprep.subr.mxu0 0.0
    %492 = vmatpush2.msra.mxu0 0.0
    %493 = vmatprep.subr.mxu0 0.0
    %494 = vmatpush2.msra.mxu0 0.0
    %495 = vmatprep.mubr.f32.mxu0 0.0
    %496 = vmatmul.mubr.f32.gmra.mxu0 %v429
    %v497 = vpop.f32.mrf.mxu0
    %v498 = vadd.f32 0.0, %v497
    %v499 = vpop.f32.mrf.mxu0
    %500 = vdwg.mxu0
    %v501 = vadd.f32 %v425, %v498
    %v502 = vxor.u32 %v501, 2147483648
    %v503 = vmul.f32 %v502, 1.442695
    %v504 = vpow.pop %v503
    %v505 = vadd.f32 %v504, 1.0
    %v506 = vrcp.pop %v505
    %v507 = vmul.f32 1.0, %v506
    %v508 = vtanh.pop %v501
    %v509 = vmul.f32 %v507, %v417
    %511 = vrot.lane.b32.xlu0 %v508, 80
    %v512 = vpop.permute.xlu0 %511
    %v514 = vmul.f32 %v507, %v512
    %516 = vrot.lane.b32.xlu0 %v514, 16
    %v517 = vpop.permute.xlu0 %516
    %v519 = vadd.f32 %v509, %v517
    %v520 = vtanh.pop %v519
    %522 = vrot.lane.b32.xlu0 %v520, 16
    %v523 = vpop.permute.xlu0 %522
    %v525 = vmul.f32 %v507, %v523
    %s526 = scalar_lea.vmem [#allocation2], 16
    %v527 = vld [vmem:[%s526] sm:$0xff]
    %529 = vrot.lane.b32.xlu0 %v525, 96
    %v530 = vpop.permute.xlu0 %529
    %v531 = vsel %vm325, %v530, 0
    %533 = vmatprep.subr.mxu0 0.0
    %534 = vmatpush1.msra.mxu0 0.0
    %535 = vmatprep.subr.mxu0 0.0
    %536 = vmatpush1.msra.mxu0 0.0
    %537 = vmatprep.subr.mxu0 0.0
    %538 = vmatpush1.msra.mxu0 0.0
    %539 = vmatprep.subr.mxu0 0.0
    %540 = vmatpush1.msra.mxu0 0.0
    %541 = vmatprep.subr.mxu0 0.0
    %542 = vmatpush1.msra.mxu0 0.0
    %543 = vmatprep.subr.mxu0 0.0
    %544 = vmatpush1.msra.mxu0 0.0
    %545 = vmatprep.subr.mxu0 0.0
    %546 = vmatpush1.msra.mxu0 0.0
    %547 = vmatprep.subr.mxu0 0.0
    %548 = vmatpush1.msra.mxu0 0.0
    %549 = vmatprep.subr.mxu0 0.0
    %550 = vmatpush1.msra.mxu0 0.0
    %551 = vmatprep.subr.mxu0 0.0
    %552 = vmatpush1.msra.mxu0 0.0
    %553 = vmatprep.subr.mxu0 0.0
    %554 = vmatpush1.msra.mxu0 0.0
    %555 = vmatprep.subr.mxu0 0.0
    %556 = vmatpush1.msra.mxu0 0.0
    %557 = vmatprep.subr.mxu0 0.0
    %558 = vmatpush1.msra.mxu0 0.0
    %559 = vmatprep.subr.mxu0 0.0
    %560 = vmatpush1.msra.mxu0 0.0
    %561 = vmatprep.subr.mxu0 0.0
    %562 = vmatpush1.msra.mxu0 %v323
    %563 = vmatprep.subr.mxu0 0.0
    %564 = vmatpush1.msra.mxu0 %v322
    %565 = vmatprep.subr.mxu0 0.0
    %566 = vmatpush2.msra.mxu0 0.0
    %567 = vmatprep.subr.mxu0 0.0
    %568 = vmatpush2.msra.mxu0 0.0
    %569 = vmatprep.subr.mxu0 0.0
    %570 = vmatpush2.msra.mxu0 0.0
    %571 = vmatprep.subr.mxu0 0.0
    %572 = vmatpush2.msra.mxu0 0.0
    %573 = vmatprep.subr.mxu0 0.0
    %574 = vmatpush2.msra.mxu0 0.0
    %575 = vmatprep.subr.mxu0 0.0
    %576 = vmatpush2.msra.mxu0 0.0
    %577 = vmatprep.subr.mxu0 0.0
    %578 = vmatpush2.msra.mxu0 0.0
    %579 = vmatprep.subr.mxu0 0.0
    %580 = vmatpush2.msra.mxu0 0.0
    %581 = vmatprep.subr.mxu0 0.0
    %582 = vmatpush2.msra.mxu0 0.0
    %583 = vmatprep.subr.mxu0 0.0
    %584 = vmatpush2.msra.mxu0 0.0
    %585 = vmatprep.subr.mxu0 0.0
    %586 = vmatpush2.msra.mxu0 0.0
    %587 = vmatprep.subr.mxu0 0.0
    %588 = vmatpush2.msra.mxu0 0.0
    %589 = vmatprep.subr.mxu0 0.0
    %590 = vmatpush2.msra.mxu0 0.0
    %591 = vmatprep.subr.mxu0 0.0
    %592 = vmatpush2.msra.mxu0 0.0
    %593 = vmatprep.subr.mxu0 0.0
    %594 = vmatpush2.msra.mxu0 0.0
    %595 = vmatprep.subr.mxu0 0.0
    %596 = vmatpush2.msra.mxu0 0.0
    %597 = vmatprep.mubr.f32.mxu0 0.0
    %598 = vmatmul.mubr.f32.gmra.mxu0 %v531
    %v599 = vpop.f32.mrf.mxu0
    %v600 = vadd.f32 0.0, %v599
    %v601 = vpop.f32.mrf.mxu0
    %602 = vdwg.mxu0
    %v603 = vadd.f32 %v527, %v600
    %v604 = vxor.u32 %v603, 2147483648
    %v605 = vmul.f32 %v604, 1.442695
    %v606 = vpow.pop %v605
    %v607 = vadd.f32 %v606, 1.0
    %v608 = vrcp.pop %v607
    %v609 = vmul.f32 1.0, %v608
    %v610 = vtanh.pop %v603
    %v611 = vmul.f32 %v609, %v519
    %613 = vrot.lane.b32.xlu0 %v610, 80
    %v614 = vpop.permute.xlu0 %613
    %v616 = vmul.f32 %v609, %v614
    %618 = vrot.lane.b32.xlu0 %v616, 16
    %v619 = vpop.permute.xlu0 %618
    %v621 = vadd.f32 %v611, %v619
    %v622 = vtanh.pop %v621
    %624 = vrot.lane.b32.xlu0 %v622, 16
    %v625 = vpop.permute.xlu0 %624
    %v627 = vmul.f32 %v609, %v625
    %s628 = scalar_lea.vmem [#allocation2], 24
    %v629 = vld [vmem:[%s628] sm:$0xff]
    %631 = vrot.lane.b32.xlu0 %v627, 96
    %v632 = vpop.permute.xlu0 %631
    %v633 = vsel %vm325, %v632, 0
    %635 = vmatprep.subr.mxu0 0.0
    %636 = vmatpush1.msra.mxu0 0.0
    %637 = vmatprep.subr.mxu0 0.0
    %638 = vmatpush1.msra.mxu0 0.0
    %639 = vmatprep.subr.mxu0 0.0
    %640 = vmatpush1.msra.mxu0 0.0
    %641 = vmatprep.subr.mxu0 0.0
    %642 = vmatpush1.msra.mxu0 0.0
    %643 = vmatprep.subr.mxu0 0.0
    %644 = vmatpush1.msra.mxu0 0.0
    %645 = vmatprep.subr.mxu0 0.0
    %646 = vmatpush1.msra.mxu0 0.0
    %647 = vmatprep.subr.mxu0 0.0
    %648 = vmatpush1.msra.mxu0 0.0
    %649 = vmatprep.subr.mxu0 0.0
    %650 = vmatpush1.msra.mxu0 0.0
    %651 = vmatprep.subr.mxu0 0.0
    %652 = vmatpush1.msra.mxu0 0.0
    %653 = vmatprep.subr.mxu0 0.0
    %654 = vmatpush1.msra.mxu0 0.0
    %655 = vmatprep.subr.mxu0 0.0
    %656 = vmatpush1.msra.mxu0 0.0
    %657 = vmatprep.subr.mxu0 0.0
    %658 = vmatpush1.msra.mxu0 0.0
    %659 = vmatprep.subr.mxu0 0.0
    %660 = vmatpush1.msra.mxu0 0.0
    %661 = vmatprep.subr.mxu0 0.0
    %662 = vmatpush1.msra.mxu0 0.0
    %663 = vmatprep.subr.mxu0 0.0
    %664 = vmatpush1.msra.mxu0 %v323
    %665 = vmatprep.subr.mxu0 0.0
    %666 = vmatpush1.msra.mxu0 %v322
    %667 = vmatprep.subr.mxu0 0.0
    %668 = vmatpush2.msra.mxu0 0.0
    %669 = vmatprep.subr.mxu0 0.0
    %670 = vmatpush2.msra.mxu0 0.0
    %671 = vmatprep.subr.mxu0 0.0
    %672 = vmatpush2.msra.mxu0 0.0
    %673 = vmatprep.subr.mxu0 0.0
    %674 = vmatpush2.msra.mxu0 0.0
    %675 = vmatprep.subr.mxu0 0.0
    %676 = vmatpush2.msra.mxu0 0.0
    %677 = vmatprep.subr.mxu0 0.0
    %678 = vmatpush2.msra.mxu0 0.0
    %679 = vmatprep.subr.mxu0 0.0
    %680 = vmatpush2.msra.mxu0 0.0
    %681 = vmatprep.subr.mxu0 0.0
    %682 = vmatpush2.msra.mxu0 0.0
    %683 = vmatprep.subr.mxu0 0.0
    %684 = vmatpush2.msra.mxu0 0.0
    %685 = vmatprep.subr.mxu0 0.0
    %686 = vmatpush2.msra.mxu0 0.0
    %687 = vmatprep.subr.mxu0 0.0
    %688 = vmatpush2.msra.mxu0 0.0
    %689 = vmatprep.subr.mxu0 0.0
    %690 = vmatpush2.msra.mxu0 0.0
    %691 = vmatprep.subr.mxu0 0.0
    %692 = vmatpush2.msra.mxu0 0.0
    %693 = vmatprep.subr.mxu0 0.0
    %694 = vmatpush2.msra.mxu0 0.0
    %695 = vmatprep.subr.mxu0 0.0
    %696 = vmatpush2.msra.mxu0 0.0
    %697 = vmatprep.subr.mxu0 0.0
    %698 = vmatpush2.msra.mxu0 0.0
    %699 = vmatprep.mubr.f32.mxu0 0.0
    %700 = vmatmul.mubr.f32.gmra.mxu0 %v633
    %v701 = vpop.f32.mrf.mxu0
    %v702 = vadd.f32 0.0, %v701
    %v703 = vpop.f32.mrf.mxu0
    %704 = vdwg.mxu0
    %v705 = vadd.f32 %v629, %v702
    %v706 = vxor.u32 %v705, 2147483648
    %v707 = vmul.f32 %v706, 1.442695
    %v708 = vpow.pop %v707
    %v709 = vadd.f32 %v708, 1.0
    %v710 = vrcp.pop %v709
    %v711 = vmul.f32 1.0, %v710
    %v712 = vtanh.pop %v705
    %v713 = vmul.f32 %v711, %v621
    %715 = vrot.lane.b32.xlu0 %v712, 80
    %v716 = vpop.permute.xlu0 %715
    %v718 = vmul.f32 %v711, %v716
    %720 = vrot.lane.b32.xlu0 %v718, 16
    %v721 = vpop.permute.xlu0 %720
    %v723 = vadd.f32 %v713, %v721
    %v724 = vtanh.pop %v723
    %726 = vrot.lane.b32.xlu0 %v724, 16
    %v727 = vpop.permute.xlu0 %726
    %v729 = vmul.f32 %v711, %v727
    %s730 = scalar_lea.vmem [#allocation2], 32
    %v731 = vld [vmem:[%s730] sm:$0xff]
    %733 = vrot.lane.b32.xlu0 %v729, 96
    %v734 = vpop.permute.xlu0 %733
    %v735 = vsel %vm325, %v734, 0
    %737 = vmatprep.subr.mxu0 0.0
    %738 = vmatpush1.msra.mxu0 0.0
    %739 = vmatprep.subr.mxu0 0.0
    %740 = vmatpush1.msra.mxu0 0.0
    %741 = vmatprep.subr.mxu0 0.0
    %742 = vmatpush1.msra.mxu0 0.0
    %743 = vmatprep.subr.mxu0 0.0
    %744 = vmatpush1.msra.mxu0 0.0
    %745 = vmatprep.subr.mxu0 0.0
    %746 = vmatpush1.msra.mxu0 0.0
    %747 = vmatprep.subr.mxu0 0.0
    %748 = vmatpush1.msra.mxu0 0.0
    %749 = vmatprep.subr.mxu0 0.0
    %750 = vmatpush1.msra.mxu0 0.0
    %751 = vmatprep.subr.mxu0 0.0
    %752 = vmatpush1.msra.mxu0 0.0
    %753 = vmatprep.subr.mxu0 0.0
    %754 = vmatpush1.msra.mxu0 0.0
    %755 = vmatprep.subr.mxu0 0.0
    %756 = vmatpush1.msra.mxu0 0.0
    %757 = vmatprep.subr.mxu0 0.0
    %758 = vmatpush1.msra.mxu0 0.0
    %759 = vmatprep.subr.mxu0 0.0
    %760 = vmatpush1.msra.mxu0 0.0
    %761 = vmatprep.subr.mxu0 0.0
    %762 = vmatpush1.msra.mxu0 0.0
    %763 = vmatprep.subr.mxu0 0.0
    %764 = vmatpush1.msra.mxu0 0.0
    %765 = vmatprep.subr.mxu0 0.0
    %766 = vmatpush1.msra.mxu0 %v323
    %767 = vmatprep.subr.mxu0 0.0
    %768 = vmatpush1.msra.mxu0 %v322
    %769 = vmatprep.subr.mxu0 0.0
    %770 = vmatpush2.msra.mxu0 0.0
    %771 = vmatprep.subr.mxu0 0.0
    %772 = vmatpush2.msra.mxu0 0.0
    %773 = vmatprep.subr.mxu0 0.0
    %774 = vmatpush2.msra.mxu0 0.0
    %775 = vmatprep.subr.mxu0 0.0
    %776 = vmatpush2.msra.mxu0 0.0
    %777 = vmatprep.subr.mxu0 0.0
    %778 = vmatpush2.msra.mxu0 0.0
    %779 = vmatprep.subr.mxu0 0.0
    %780 = vmatpush2.msra.mxu0 0.0
    %781 = vmatprep.subr.mxu0 0.0
    %782 = vmatpush2.msra.mxu0 0.0
    %783 = vmatprep.subr.mxu0 0.0
    %784 = vmatpush2.msra.mxu0 0.0
    %785 = vmatprep.subr.mxu0 0.0
    %786 = vmatpush2.msra.mxu0 0.0
    %787 = vmatprep.subr.mxu0 0.0
    %788 = vmatpush2.msra.mxu0 0.0
    %789 = vmatprep.subr.mxu0 0.0
    %790 = vmatpush2.msra.mxu0 0.0
    %791 = vmatprep.subr.mxu0 0.0
    %792 = vmatpush2.msra.mxu0 0.0
    %793 = vmatprep.subr.mxu0 0.0
    %794 = vmatpush2.msra.mxu0 0.0
    %795 = vmatprep.subr.mxu0 0.0
    %796 = vmatpush2.msra.mxu0 0.0
    %797 = vmatprep.subr.mxu0 0.0
    %798 = vmatpush2.msra.mxu0 0.0
    %799 = vmatprep.subr.mxu0 0.0
    %800 = vmatpush2.msra.mxu0 0.0
    %801 = vmatprep.mubr.f32.mxu0 0.0
    %802 = vmatmul.mubr.f32.gmra.mxu0 %v735
    %v803 = vpop.f32.mrf.mxu0
    %v804 = vadd.f32 0.0, %v803
    %v805 = vpop.f32.mrf.mxu0
    %806 = vdwg.mxu0
    %v807 = vadd.f32 %v731, %v804
    %v808 = vxor.u32 %v807, 2147483648
    %v809 = vmul.f32 %v808, 1.442695
    %v810 = vpow.pop %v809
    %v811 = vadd.f32 %v810, 1.0
    %v812 = vrcp.pop %v811
    %v813 = vmul.f32 1.0, %v812
    %v814 = vtanh.pop %v807
    %v815 = vmul.f32 %v813, %v723
    %817 = vrot.lane.b32.xlu0 %v814, 80
    %v818 = vpop.permute.xlu0 %817
    %v820 = vmul.f32 %v813, %v818
    %822 = vrot.lane.b32.xlu0 %v820, 16
    %v823 = vpop.permute.xlu0 %822
    %v825 = vadd.f32 %v815, %v823
    %v826 = vtanh.pop %v825
    %828 = vrot.lane.b32.xlu0 %v826, 16
    %v829 = vpop.permute.xlu0 %828
    %v831 = vmul.f32 %v813, %v829
    %s832 = scalar_lea.vmem [#allocation2], 40
    %v833 = vld [vmem:[%s832] sm:$0xff]
    %835 = vrot.lane.b32.xlu0 %v831, 96
    %v836 = vpop.permute.xlu0 %835
    %v837 = vsel %vm325, %v836, 0
    %839 = vmatprep.subr.mxu0 0.0
    %840 = vmatpush1.msra.mxu0 0.0
    %841 = vmatprep.subr.mxu0 0.0
    %842 = vmatpush1.msra.mxu0 0.0
    %843 = vmatprep.subr.mxu0 0.0
    %844 = vmatpush1.msra.mxu0 0.0
    %845 = vmatprep.subr.mxu0 0.0
    %846 = vmatpush1.msra.mxu0 0.0
    %847 = vmatprep.subr.mxu0 0.0
    %848 = vmatpush1.msra.mxu0 0.0
    %849 = vmatprep.subr.mxu0 0.0
    %850 = vmatpush1.msra.mxu0 0.0
    %851 = vmatprep.subr.mxu0 0.0
    %852 = vmatpush1.msra.mxu0 0.0
    %853 = vmatprep.subr.mxu0 0.0
    %854 = vmatpush1.msra.mxu0 0.0
    %855 = vmatprep.subr.mxu0 0.0
    %856 = vmatpush1.msra.mxu0 0.0
    %857 = vmatprep.subr.mxu0 0.0
    %858 = vmatpush1.msra.mxu0 0.0
    %859 = vmatprep.subr.mxu0 0.0
    %860 = vmatpush1.msra.mxu0 0.0
    %861 = vmatprep.subr.mxu0 0.0
    %862 = vmatpush1.msra.mxu0 0.0
    %863 = vmatprep.subr.mxu0 0.0
    %864 = vmatpush1.msra.mxu0 0.0
    %865 = vmatprep.subr.mxu0 0.0
    %866 = vmatpush1.msra.mxu0 0.0
    %867 = vmatprep.subr.mxu0 0.0
    %868 = vmatpush1.msra.mxu0 %v323
    %869 = vmatprep.subr.mxu0 0.0
    %870 = vmatpush1.msra.mxu0 %v322
    %871 = vmatprep.subr.mxu0 0.0
    %872 = vmatpush2.msra.mxu0 0.0
    %873 = vmatprep.subr.mxu0 0.0
    %874 = vmatpush2.msra.mxu0 0.0
    %875 = vmatprep.subr.mxu0 0.0
    %876 = vmatpush2.msra.mxu0 0.0
    %877 = vmatprep.subr.mxu0 0.0
    %878 = vmatpush2.msra.mxu0 0.0
    %879 = vmatprep.subr.mxu0 0.0
    %880 = vmatpush2.msra.mxu0 0.0
    %881 = vmatprep.subr.mxu0 0.0
    %882 = vmatpush2.msra.mxu0 0.0
    %883 = vmatprep.subr.mxu0 0.0
    %884 = vmatpush2.msra.mxu0 0.0
    %885 = vmatprep.subr.mxu0 0.0
    %886 = vmatpush2.msra.mxu0 0.0
    %887 = vmatprep.subr.mxu0 0.0
    %888 = vmatpush2.msra.mxu0 0.0
    %889 = vmatprep.subr.mxu0 0.0
    %890 = vmatpush2.msra.mxu0 0.0
    %891 = vmatprep.subr.mxu0 0.0
    %892 = vmatpush2.msra.mxu0 0.0
    %893 = vmatprep.subr.mxu0 0.0
    %894 = vmatpush2.msra.mxu0 0.0
    %895 = vmatprep.subr.mxu0 0.0
    %896 = vmatpush2.msra.mxu0 0.0
    %897 = vmatprep.subr.mxu0 0.0
    %898 = vmatpush2.msra.mxu0 0.0
    %899 = vmatprep.subr.mxu0 0.0
    %900 = vmatpush2.msra.mxu0 0.0
    %901 = vmatprep.subr.mxu0 0.0
    %902 = vmatpush2.msra.mxu0 0.0
    %903 = vmatprep.mubr.f32.mxu0 0.0
    %904 = vmatmul.mubr.f32.gmra.mxu0 %v837
    %v905 = vpop.f32.mrf.mxu0
    %v906 = vadd.f32 0.0, %v905
    %v907 = vpop.f32.mrf.mxu0
    %908 = vdwg.mxu0
    %v909 = vadd.f32 %v833, %v906
    %v910 = vxor.u32 %v909, 2147483648
    %v911 = vmul.f32 %v910, 1.442695
    %v912 = vpow.pop %v911
    %v913 = vadd.f32 %v912, 1.0
    %v914 = vrcp.pop %v913
    %v915 = vmul.f32 1.0, %v914
    %v916 = vtanh.pop %v909
    %v917 = vmul.f32 %v915, %v825
    %919 = vrot.lane.b32.xlu0 %v916, 80
    %v920 = vpop.permute.xlu0 %919
    %v922 = vmul.f32 %v915, %v920
    %924 = vrot.lane.b32.xlu0 %v922, 16
    %v925 = vpop.permute.xlu0 %924
    %v927 = vadd.f32 %v917, %v925
    %v928 = vtanh.pop %v927
    %930 = vrot.lane.b32.xlu0 %v928, 16
    %v931 = vpop.permute.xlu0 %930
    %v933 = vmul.f32 %v915, %v931
    %s934 = scalar_lea.vmem [#allocation2], 48
    %v935 = vld [vmem:[%s934] sm:$0xff]
    %937 = vrot.lane.b32.xlu0 %v933, 96
    %v938 = vpop.permute.xlu0 %937
    %v939 = vsel %vm325, %v938, 0
    %941 = vmatprep.subr.mxu0 0.0
    %942 = vmatpush1.msra.mxu0 0.0
    %943 = vmatprep.subr.mxu0 0.0
    %944 = vmatpush1.msra.mxu0 0.0
    %945 = vmatprep.subr.mxu0 0.0
    %946 = vmatpush1.msra.mxu0 0.0
    %947 = vmatprep.subr.mxu0 0.0
    %948 = vmatpush1.msra.mxu0 0.0
    %949 = vmatprep.subr.mxu0 0.0
    %950 = vmatpush1.msra.mxu0 0.0
    %951 = vmatprep.subr.mxu0 0.0
    %952 = vmatpush1.msra.mxu0 0.0
    %953 = vmatprep.subr.mxu0 0.0
    %954 = vmatpush1.msra.mxu0 0.0
    %955 = vmatprep.subr.mxu0 0.0
    %956 = vmatpush1.msra.mxu0 0.0
    %957 = vmatprep.subr.mxu0 0.0
    %958 = vmatpush1.msra.mxu0 0.0
    %959 = vmatprep.subr.mxu0 0.0
    %960 = vmatpush1.msra.mxu0 0.0
    %961 = vmatprep.subr.mxu0 0.0
    %962 = vmatpush1.msra.mxu0 0.0
    %963 = vmatprep.subr.mxu0 0.0
    %964 = vmatpush1.msra.mxu0 0.0
    %965 = vmatprep.subr.mxu0 0.0
    %966 = vmatpush1.msra.mxu0 0.0
    %967 = vmatprep.subr.mxu0 0.0
    %968 = vmatpush1.msra.mxu0 0.0
    %969 = vmatprep.subr.mxu0 0.0
    %970 = vmatpush1.msra.mxu0 %v323
    %971 = vmatprep.subr.mxu0 0.0
    %972 = vmatpush1.msra.mxu0 %v322
    %973 = vmatprep.subr.mxu0 0.0
    %974 = vmatpush2.msra.mxu0 0.0
    %975 = vmatprep.subr.mxu0 0.0
    %976 = vmatpush2.msra.mxu0 0.0
    %977 = vmatprep.subr.mxu0 0.0
    %978 = vmatpush2.msra.mxu0 0.0
    %979 = vmatprep.subr.mxu0 0.0
    %980 = vmatpush2.msra.mxu0 0.0
    %981 = vmatprep.subr.mxu0 0.0
    %982 = vmatpush2.msra.mxu0 0.0
    %983 = vmatprep.subr.mxu0 0.0
    %984 = vmatpush2.msra.mxu0 0.0
    %985 = vmatprep.subr.mxu0 0.0
    %986 = vmatpush2.msra.mxu0 0.0
    %987 = vmatprep.subr.mxu0 0.0
    %988 = vmatpush2.msra.mxu0 0.0
    %989 = vmatprep.subr.mxu0 0.0
    %990 = vmatpush2.msra.mxu0 0.0
    %991 = vmatprep.subr.mxu0 0.0
    %992 = vmatpush2.msra.mxu0 0.0
    %993 = vmatprep.subr.mxu0 0.0
    %994 = vmatpush2.msra.mxu0 0.0
    %995 = vmatprep.subr.mxu0 0.0
    %996 = vmatpush2.msra.mxu0 0.0
    %997 = vmatprep.subr.mxu0 0.0
    %998 = vmatpush2.msra.mxu0 0.0
    %999 = vmatprep.subr.mxu0 0.0
    %1000 = vmatpush2.msra.mxu0 0.0
    %1001 = vmatprep.subr.mxu0 0.0
    %1002 = vmatpush2.msra.mxu0 0.0
    %1003 = vmatprep.subr.mxu0 0.0
    %1004 = vmatpush2.msra.mxu0 0.0
    %1005 = vmatprep.mubr.f32.mxu0 0.0
    %1006 = vmatmul.mubr.f32.gmra.mxu0 %v939
    %v1007 = vpop.f32.mrf.mxu0
    %v1008 = vadd.f32 0.0, %v1007
    %v1009 = vpop.f32.mrf.mxu0
    %1010 = vdwg.mxu0
    %v1011 = vadd.f32 %v935, %v1008
    %v1012 = vxor.u32 %v1011, 2147483648
    %v1013 = vmul.f32 %v1012, 1.442695
    %v1014 = vpow.pop %v1013
    %v1015 = vadd.f32 %v1014, 1.0
    %v1016 = vrcp.pop %v1015
    %v1017 = vmul.f32 1.0, %v1016
    %v1018 = vtanh.pop %v1011
    %v1019 = vmul.f32 %v1017, %v927
    %1021 = vrot.lane.b32.xlu0 %v1018, 80
    %v1022 = vpop.permute.xlu0 %1021
    %v1024 = vmul.f32 %v1017, %v1022
    %1026 = vrot.lane.b32.xlu0 %v1024, 16
    %v1027 = vpop.permute.xlu0 %1026
    %v1029 = vadd.f32 %v1019, %v1027
    %v1030 = vtanh.pop %v1029
    %1032 = vrot.lane.b32.xlu0 %v1030, 16
    %v1033 = vpop.permute.xlu0 %1032
    %v1035 = vmul.f32 %v1017, %v1033
    %s1036 = scalar_lea.vmem [#allocation2], 56
    %v1037 = vld [vmem:[%s1036] sm:$0xff]
    %1039 = vrot.lane.b32.xlu0 %v1035, 96
    %v1040 = vpop.permute.xlu0 %1039
    %v1041 = vsel %vm325, %v1040, 0
    %1043 = vmatprep.subr.mxu0 0.0
    %1044 = vmatpush1.msra.mxu0 0.0
    %1045 = vmatprep.subr.mxu0 0.0
    %1046 = vmatpush1.msra.mxu0 0.0
    %1047 = vmatprep.subr.mxu0 0.0
    %1048 = vmatpush1.msra.mxu0 0.0
    %1049 = vmatprep.subr.mxu0 0.0
    %1050 = vmatpush1.msra.mxu0 0.0
    %1051 = vmatprep.subr.mxu0 0.0
    %1052 = vmatpush1.msra.mxu0 0.0
    %1053 = vmatprep.subr.mxu0 0.0
    %1054 = vmatpush1.msra.mxu0 0.0
    %1055 = vmatprep.subr.mxu0 0.0
    %1056 = vmatpush1.msra.mxu0 0.0
    %1057 = vmatprep.subr.mxu0 0.0
    %1058 = vmatpush1.msra.mxu0 0.0
    %1059 = vmatprep.subr.mxu0 0.0
    %1060 = vmatpush1.msra.mxu0 0.0
    %1061 = vmatprep.subr.mxu0 0.0
    %1062 = vmatpush1.msra.mxu0 0.0
    %1063 = vmatprep.subr.mxu0 0.0
    %1064 = vmatpush1.msra.mxu0 0.0
    %1065 = vmatprep.subr.mxu0 0.0
    %1066 = vmatpush1.msra.mxu0 0.0
    %1067 = vmatprep.subr.mxu0 0.0
    %1068 = vmatpush1.msra.mxu0 0.0
    %1069 = vmatprep.subr.mxu0 0.0
    %1070 = vmatpush1.msra.mxu0 0.0
    %1071 = vmatprep.subr.mxu0 0.0
    %1072 = vmatpush1.msra.mxu0 %v323
    %1073 = vmatprep.subr.mxu0 0.0
    %1074 = vmatpush1.msra.mxu0 %v322
    %1075 = vmatprep.subr.mxu0 0.0
    %1076 = vmatpush2.msra.mxu0 0.0
    %1077 = vmatprep.subr.mxu0 0.0
    %1078 = vmatpush2.msra.mxu0 0.0
    %1079 = vmatprep.subr.mxu0 0.0
    %1080 = vmatpush2.msra.mxu0 0.0
    %1081 = vmatprep.subr.mxu0 0.0
    %1082 = vmatpush2.msra.mxu0 0.0
    %1083 = vmatprep.subr.mxu0 0.0
    %1084 = vmatpush2.msra.mxu0 0.0
    %1085 = vmatprep.subr.mxu0 0.0
    %1086 = vmatpush2.msra.mxu0 0.0
    %1087 = vmatprep.subr.mxu0 0.0
    %1088 = vmatpush2.msra.mxu0 0.0
    %1089 = vmatprep.subr.mxu0 0.0
    %1090 = vmatpush2.msra.mxu0 0.0
    %1091 = vmatprep.subr.mxu0 0.0
    %1092 = vmatpush2.msra.mxu0 0.0
    %1093 = vmatprep.subr.mxu0 0.0
    %1094 = vmatpush2.msra.mxu0 0.0
    %1095 = vmatprep.subr.mxu0 0.0
    %1096 = vmatpush2.msra.mxu0 0.0
    %1097 = vmatprep.subr.mxu0 0.0
    %1098 = vmatpush2.msra.mxu0 0.0
    %1099 = vmatprep.subr.mxu0 0.0
    %1100 = vmatpush2.msra.mxu0 0.0
    %1101 = vmatprep.subr.mxu0 0.0
    %1102 = vmatpush2.msra.mxu0 0.0
    %1103 = vmatprep.subr.mxu0 0.0
    %1104 = vmatpush2.msra.mxu0 0.0
    %1105 = vmatprep.subr.mxu0 0.0
    %1106 = vmatpush2.msra.mxu0 0.0
    %1107 = vmatprep.mubr.f32.mxu0 0.0
    %1108 = vmatmul.mubr.f32.gmra.mxu0 %v1041
    %v1109 = vpop.f32.mrf.mxu0
    %v1110 = vadd.f32 0.0, %v1109
    %v1111 = vpop.f32.mrf.mxu0
    %1112 = vdwg.mxu0
    %v1113 = vadd.f32 %v1037, %v1110
    %v1114 = vxor.u32 %v1113, 2147483648
    %v1115 = vmul.f32 %v1114, 1.442695
    %v1116 = vpow.pop %v1115
    %v1117 = vadd.f32 %v1116, 1.0
    %v1118 = vrcp.pop %v1117
    %v1119 = vmul.f32 1.0, %v1118
    %v1120 = vtanh.pop %v1113
    %v1121 = vmul.f32 %v1119, %v1029
    %1123 = vrot.lane.b32.xlu0 %v1120, 80
    %v1124 = vpop.permute.xlu0 %1123
    %v1126 = vmul.f32 %v1119, %v1124
    %1128 = vrot.lane.b32.xlu0 %v1126, 16
    %v1129 = vpop.permute.xlu0 %1128
    %v1131 = vadd.f32 %v1121, %v1129
    %v1132 = vtanh.pop %v1131
    %1134 = vrot.lane.b32.xlu0 %v1132, 16
    %v1135 = vpop.permute.xlu0 %1134
    %v1137 = vmul.f32 %v1119, %v1135
    %s1138 = scalar_lea.vmem [#allocation2], 64
    %v1139 = vld [vmem:[%s1138] sm:$0xff]
    %1141 = vrot.lane.b32.xlu0 %v1137, 96
    %v1142 = vpop.permute.xlu0 %1141
    %v1143 = vsel %vm325, %v1142, 0
    %1145 = vmatprep.subr.mxu0 0.0
    %1146 = vmatpush1.msra.mxu0 0.0
    %1147 = vmatprep.subr.mxu0 0.0
    %1148 = vmatpush1.msra.mxu0 0.0
    %1149 = vmatprep.subr.mxu0 0.0
    %1150 = vmatpush1.msra.mxu0 0.0
    %1151 = vmatprep.subr.mxu0 0.0
    %1152 = vmatpush1.msra.mxu0 0.0
    %1153 = vmatprep.subr.mxu0 0.0
    %1154 = vmatpush1.msra.mxu0 0.0
    %1155 = vmatprep.subr.mxu0 0.0
    %1156 = vmatpush1.msra.mxu0 0.0
    %1157 = vmatprep.subr.mxu0 0.0
    %1158 = vmatpush1.msra.mxu0 0.0
    %1159 = vmatprep.subr.mxu0 0.0
    %1160 = vmatpush1.msra.mxu0 0.0
    %1161 = vmatprep.subr.mxu0 0.0
    %1162 = vmatpush1.msra.mxu0 0.0
    %1163 = vmatprep.subr.mxu0 0.0
    %1164 = vmatpush1.msra.mxu0 0.0
    %1165 = vmatprep.subr.mxu0 0.0
    %1166 = vmatpush1.msra.mxu0 0.0
    %1167 = vmatprep.subr.mxu0 0.0
    %1168 = vmatpush1.msra.mxu0 0.0
    %1169 = vmatprep.subr.mxu0 0.0
    %1170 = vmatpush1.msra.mxu0 0.0
    %1171 = vmatprep.subr.mxu0 0.0
    %1172 = vmatpush1.msra.mxu0 0.0
    %1173 = vmatprep.subr.mxu0 0.0
    %1174 = vmatpush1.msra.mxu0 %v323
    %1175 = vmatprep.subr.mxu0 0.0
    %1176 = vmatpush1.msra.mxu0 %v322
    %1177 = vmatprep.subr.mxu0 0.0
    %1178 = vmatpush2.msra.mxu0 0.0
    %1179 = vmatprep.subr.mxu0 0.0
    %1180 = vmatpush2.msra.mxu0 0.0
    %1181 = vmatprep.subr.mxu0 0.0
    %1182 = vmatpush2.msra.mxu0 0.0
    %1183 = vmatprep.subr.mxu0 0.0
    %1184 = vmatpush2.msra.mxu0 0.0
    %1185 = vmatprep.subr.mxu0 0.0
    %1186 = vmatpush2.msra.mxu0 0.0
    %1187 = vmatprep.subr.mxu0 0.0
    %1188 = vmatpush2.msra.mxu0 0.0
    %1189 = vmatprep.subr.mxu0 0.0
    %1190 = vmatpush2.msra.mxu0 0.0
    %1191 = vmatprep.subr.mxu0 0.0
    %1192 = vmatpush2.msra.mxu0 0.0
    %1193 = vmatprep.subr.mxu0 0.0
    %1194 = vmatpush2.msra.mxu0 0.0
    %1195 = vmatprep.subr.mxu0 0.0
    %1196 = vmatpush2.msra.mxu0 0.0
    %1197 = vmatprep.subr.mxu0 0.0
    %1198 = vmatpush2.msra.mxu0 0.0
    %1199 = vmatprep.subr.mxu0 0.0
    %1200 = vmatpush2.msra.mxu0 0.0
    %1201 = vmatprep.subr.mxu0 0.0
    %1202 = vmatpush2.msra.mxu0 0.0
    %1203 = vmatprep.subr.mxu0 0.0
    %1204 = vmatpush2.msra.mxu0 0.0
    %1205 = vmatprep.subr.mxu0 0.0
    %1206 = vmatpush2.msra.mxu0 0.0
    %1207 = vmatprep.subr.mxu0 0.0
    %1208 = vmatpush2.msra.mxu0 0.0
    %1209 = vmatprep.mubr.f32.mxu0 0.0
    %1210 = vmatmul.mubr.f32.gmra.mxu0 %v1143
    %v1211 = vpop.f32.mrf.mxu0
    %v1212 = vadd.f32 0.0, %v1211
    %v1213 = vpop.f32.mrf.mxu0
    %1214 = vdwg.mxu0
    %v1215 = vadd.f32 %v1139, %v1212
    %v1216 = vxor.u32 %v1215, 2147483648
    %v1217 = vmul.f32 %v1216, 1.442695
    %v1218 = vpow.pop %v1217
    %v1219 = vadd.f32 %v1218, 1.0
    %v1220 = vrcp.pop %v1219
    %v1221 = vmul.f32 1.0, %v1220
    %v1222 = vtanh.pop %v1215
    %v1223 = vmul.f32 %v1221, %v1131
    %1225 = vrot.lane.b32.xlu0 %v1222, 80
    %v1226 = vpop.permute.xlu0 %1225
    %v1228 = vmul.f32 %v1221, %v1226
    %1230 = vrot.lane.b32.xlu0 %v1228, 16
    %v1231 = vpop.permute.xlu0 %1230
    %v1233 = vadd.f32 %v1223, %v1231
    %v1234 = vtanh.pop %v1233
    %1236 = vrot.lane.b32.xlu0 %v1234, 16
    %v1237 = vpop.permute.xlu0 %1236
    %v1239 = vmul.f32 %v1221, %v1237
    %s1240 = scalar_lea.vmem [#allocation2], 72
    %v1241 = vld [vmem:[%s1240] sm:$0xff]
    %1243 = vrot.lane.b32.xlu0 %v1239, 96
    %v1244 = vpop.permute.xlu0 %1243
    %v1245 = vsel %vm325, %v1244, 0
    %1247 = vmatprep.subr.mxu0 0.0
    %1248 = vmatpush1.msra.mxu0 0.0
    %1249 = vmatprep.subr.mxu0 0.0
    %1250 = vmatpush1.msra.mxu0 0.0
    %1251 = vmatprep.subr.mxu0 0.0
    %1252 = vmatpush1.msra.mxu0 0.0
    %1253 = vmatprep.subr.mxu0 0.0
    %1254 = vmatpush1.msra.mxu0 0.0
    %1255 = vmatprep.subr.mxu0 0.0
    %1256 = vmatpush1.msra.mxu0 0.0
    %1257 = vmatprep.subr.mxu0 0.0
    %1258 = vmatpush1.msra.mxu0 0.0
    %1259 = vmatprep.subr.mxu0 0.0
    %1260 = vmatpush1.msra.mxu0 0.0
    %1261 = vmatprep.subr.mxu0 0.0
    %1262 = vmatpush1.msra.mxu0 0.0
    %1263 = vmatprep.subr.mxu0 0.0
    %1264 = vmatpush1.msra.mxu0 0.0
    %1265 = vmatprep.subr.mxu0 0.0
    %1266 = vmatpush1.msra.mxu0 0.0
    %1267 = vmatprep.subr.mxu0 0.0
    %1268 = vmatpush1.msra.mxu0 0.0
    %1269 = vmatprep.subr.mxu0 0.0
    %1270 = vmatpush1.msra.mxu0 0.0
    %1271 = vmatprep.subr.mxu0 0.0
    %1272 = vmatpush1.msra.mxu0 0.0
    %1273 = vmatprep.subr.mxu0 0.0
    %1274 = vmatpush1.msra.mxu0 0.0
    %1275 = vmatprep.subr.mxu0 0.0
    %1276 = vmatpush1.msra.mxu0 %v323
    %1277 = vmatprep.subr.mxu0 0.0
    %1278 = vmatpush1.msra.mxu0 %v322
    %1279 = vmatprep.subr.mxu0 0.0
    %1280 = vmatpush2.msra.mxu0 0.0
    %1281 = vmatprep.subr.mxu0 0.0
    %1282 = vmatpush2.msra.mxu0 0.0
    %1283 = vmatprep.subr.mxu0 0.0
    %1284 = vmatpush2.msra.mxu0 0.0
    %1285 = vmatprep.subr.mxu0 0.0
    %1286 = vmatpush2.msra.mxu0 0.0
    %1287 = vmatprep.subr.mxu0 0.0
    %1288 = vmatpush2.msra.mxu0 0.0
    %1289 = vmatprep.subr.mxu0 0.0
    %1290 = vmatpush2.msra.mxu0 0.0
    %1291 = vmatprep.subr.mxu0 0.0
    %1292 = vmatpush2.msra.mxu0 0.0
    %1293 = vmatprep.subr.mxu0 0.0
    %1294 = vmatpush2.msra.mxu0 0.0
    %1295 = vmatprep.subr.mxu0 0.0
    %1296 = vmatpush2.msra.mxu0 0.0
    %1297 = vmatprep.subr.mxu0 0.0
    %1298 = vmatpush2.msra.mxu0 0.0
    %1299 = vmatprep.subr.mxu0 0.0
    %1300 = vmatpush2.msra.mxu0 0.0
    %1301 = vmatprep.subr.mxu0 0.0
    %1302 = vmatpush2.msra.mxu0 0.0
    %1303 = vmatprep.subr.mxu0 0.0
    %1304 = vmatpush2.msra.mxu0 0.0
    %1305 = vmatprep.subr.mxu0 0.0
    %1306 = vmatpush2.msra.mxu0 0.0
    %1307 = vmatprep.subr.mxu0 0.0
    %1308 = vmatpush2.msra.mxu0 0.0
    %1309 = vmatprep.subr.mxu0 0.0
    %1310 = vmatpush2.msra.mxu0 0.0
    %1311 = vmatprep.mubr.f32.mxu0 0.0
    %1312 = vmatmul.mubr.f32.gmra.mxu0 %v1245
    %v1313 = vpop.f32.mrf.mxu0
    %v1314 = vadd.f32 0.0, %v1313
    %v1315 = vpop.f32.mrf.mxu0
    %1316 = vdwg.mxu0
    %v1317 = vadd.f32 %v1241, %v1314
    %v1318 = vxor.u32 %v1317, 2147483648
    %v1319 = vmul.f32 %v1318, 1.442695
    %v1320 = vpow.pop %v1319
    %v1321 = vadd.f32 %v1320, 1.0
    %v1322 = vrcp.pop %v1321
    %v1323 = vmul.f32 1.0, %v1322
    %v1324 = vtanh.pop %v1317
    %v1325 = vmul.f32 %v1323, %v1233
    %1327 = vrot.lane.b32.xlu0 %v1324, 80
    %v1328 = vpop.permute.xlu0 %1327
    %v1330 = vmul.f32 %v1323, %v1328
    %1332 = vrot.lane.b32.xlu0 %v1330, 16
    %v1333 = vpop.permute.xlu0 %1332
    %v1335 = vadd.f32 %v1325, %v1333
    %v1336 = vtanh.pop %v1335
    %1338 = vrot.lane.b32.xlu0 %v1336, 16
    %v1339 = vpop.permute.xlu0 %1338
    %v1341 = vmul.f32 %v1323, %v1339
    %s1342 = scalar_lea.vmem [#allocation2], 80
    %v1343 = vld [vmem:[%s1342] sm:$0xff]
    %1345 = vrot.lane.b32.xlu0 %v1341, 96
    %v1346 = vpop.permute.xlu0 %1345
    %v1347 = vsel %vm325, %v1346, 0
    %1349 = vmatprep.subr.mxu0 0.0
    %1350 = vmatpush1.msra.mxu0 0.0
    %1351 = vmatprep.subr.mxu0 0.0
    %1352 = vmatpush1.msra.mxu0 0.0
    %1353 = vmatprep.subr.mxu0 0.0
    %1354 = vmatpush1.msra.mxu0 0.0
    %1355 = vmatprep.subr.mxu0 0.0
    %1356 = vmatpush1.msra.mxu0 0.0
    %1357 = vmatprep.subr.mxu0 0.0
    %1358 = vmatpush1.msra.mxu0 0.0
    %1359 = vmatprep.subr.mxu0 0.0
    %1360 = vmatpush1.msra.mxu0 0.0
    %1361 = vmatprep.subr.mxu0 0.0
    %1362 = vmatpush1.msra.mxu0 0.0
    %1363 = vmatprep.subr.mxu0 0.0
    %1364 = vmatpush1.msra.mxu0 0.0
    %1365 = vmatprep.subr.mxu0 0.0
    %1366 = vmatpush1.msra.mxu0 0.0
    %1367 = vmatprep.subr.mxu0 0.0
    %1368 = vmatpush1.msra.mxu0 0.0
    %1369 = vmatprep.subr.mxu0 0.0
    %1370 = vmatpush1.msra.mxu0 0.0
    %1371 = vmatprep.subr.mxu0 0.0
    %1372 = vmatpush1.msra.mxu0 0.0
    %1373 = vmatprep.subr.mxu0 0.0
    %1374 = vmatpush1.msra.mxu0 0.0
    %1375 = vmatprep.subr.mxu0 0.0
    %1376 = vmatpush1.msra.mxu0 0.0
    %1377 = vmatprep.subr.mxu0 0.0
    %1378 = vmatpush1.msra.mxu0 %v323
    %1379 = vmatprep.subr.mxu0 0.0
    %1380 = vmatpush1.msra.mxu0 %v322
    %1381 = vmatprep.subr.mxu0 0.0
    %1382 = vmatpush2.msra.mxu0 0.0
    %1383 = vmatprep.subr.mxu0 0.0
    %1384 = vmatpush2.msra.mxu0 0.0
    %1385 = vmatprep.subr.mxu0 0.0
    %1386 = vmatpush2.msra.mxu0 0.0
    %1387 = vmatprep.subr.mxu0 0.0
    %1388 = vmatpush2.msra.mxu0 0.0
    %1389 = vmatprep.subr.mxu0 0.0
    %1390 = vmatpush2.msra.mxu0 0.0
    %1391 = vmatprep.subr.mxu0 0.0
    %1392 = vmatpush2.msra.mxu0 0.0
    %1393 = vmatprep.subr.mxu0 0.0
    %1394 = vmatpush2.msra.mxu0 0.0
    %1395 = vmatprep.subr.mxu0 0.0
    %1396 = vmatpush2.msra.mxu0 0.0
    %1397 = vmatprep.subr.mxu0 0.0
    %1398 = vmatpush2.msra.mxu0 0.0
    %1399 = vmatprep.subr.mxu0 0.0
    %1400 = vmatpush2.msra.mxu0 0.0
    %1401 = vmatprep.subr.mxu0 0.0
    %1402 = vmatpush2.msra.mxu0 0.0
    %1403 = vmatprep.subr.mxu0 0.0
    %1404 = vmatpush2.msra.mxu0 0.0
    %1405 = vmatprep.subr.mxu0 0.0
    %1406 = vmatpush2.msra.mxu0 0.0
    %1407 = vmatprep.subr.mxu0 0.0
    %1408 = vmatpush2.msra.mxu0 0.0
    %1409 = vmatprep.subr.mxu0 0.0
    %1410 = vmatpush2.msra.mxu0 0.0
    %1411 = vmatprep.subr.mxu0 0.0
    %1412 = vmatpush2.msra.mxu0 0.0
    %1413 = vmatprep.mubr.f32.mxu0 0.0
    %1414 = vmatmul.mubr.f32.gmra.mxu0 %v1347
    %v1415 = vpop.f32.mrf.mxu0
    %v1416 = vadd.f32 0.0, %v1415
    %v1417 = vpop.f32.mrf.mxu0
    %1418 = vdwg.mxu0
    %v1419 = vadd.f32 %v1343, %v1416
    %v1420 = vxor.u32 %v1419, 2147483648
    %v1421 = vmul.f32 %v1420, 1.442695
    %v1422 = vpow.pop %v1421
    %v1423 = vadd.f32 %v1422, 1.0
    %v1424 = vrcp.pop %v1423
    %v1425 = vmul.f32 1.0, %v1424
    %v1426 = vtanh.pop %v1419
    %v1427 = vmul.f32 %v1425, %v1335
    %1429 = vrot.lane.b32.xlu0 %v1426, 80
    %v1430 = vpop.permute.xlu0 %1429
    %v1432 = vmul.f32 %v1425, %v1430
    %1434 = vrot.lane.b32.xlu0 %v1432, 16
    %v1435 = vpop.permute.xlu0 %1434
    %v1437 = vadd.f32 %v1427, %v1435
    %v1438 = vtanh.pop %v1437
    %1440 = vrot.lane.b32.xlu0 %v1438, 16
    %v1441 = vpop.permute.xlu0 %1440
    %v1443 = vmul.f32 %v1425, %v1441
    %s1444 = scalar_lea.vmem [#allocation2], 88
    %v1445 = vld [vmem:[%s1444] sm:$0xff]
    %1447 = vrot.lane.b32.xlu0 %v1443, 96
    %v1448 = vpop.permute.xlu0 %1447
    %v1449 = vsel %vm325, %v1448, 0
    %1451 = vmatprep.subr.mxu0 0.0
    %1452 = vmatpush1.msra.mxu0 0.0
    %1453 = vmatprep.subr.mxu0 0.0
    %1454 = vmatpush1.msra.mxu0 0.0
    %1455 = vmatprep.subr.mxu0 0.0
    %1456 = vmatpush1.msra.mxu0 0.0
    %1457 = vmatprep.subr.mxu0 0.0
    %1458 = vmatpush1.msra.mxu0 0.0
    %1459 = vmatprep.subr.mxu0 0.0
    %1460 = vmatpush1.msra.mxu0 0.0
    %1461 = vmatprep.subr.mxu0 0.0
    %1462 = vmatpush1.msra.mxu0 0.0
    %1463 = vmatprep.subr.mxu0 0.0
    %1464 = vmatpush1.msra.mxu0 0.0
    %1465 = vmatprep.subr.mxu0 0.0
    %1466 = vmatpush1.msra.mxu0 0.0
    %1467 = vmatprep.subr.mxu0 0.0
    %1468 = vmatpush1.msra.mxu0 0.0
    %1469 = vmatprep.subr.mxu0 0.0
    %1470 = vmatpush1.msra.mxu0 0.0
    %1471 = vmatprep.subr.mxu0 0.0
    %1472 = vmatpush1.msra.mxu0 0.0
    %1473 = vmatprep.subr.mxu0 0.0
    %1474 = vmatpush1.msra.mxu0 0.0
    %1475 = vmatprep.subr.mxu0 0.0
    %1476 = vmatpush1.msra.mxu0 0.0
    %1477 = vmatprep.subr.mxu0 0.0
    %1478 = vmatpush1.msra.mxu0 0.0
    %1479 = vmatprep.subr.mxu0 0.0
    %1480 = vmatpush1.msra.mxu0 %v323
    %1481 = vmatprep.subr.mxu0 0.0
    %1482 = vmatpush1.msra.mxu0 %v322
    %1483 = vmatprep.subr.mxu0 0.0
    %1484 = vmatpush2.msra.mxu0 0.0
    %1485 = vmatprep.subr.mxu0 0.0
    %1486 = vmatpush2.msra.mxu0 0.0
    %1487 = vmatprep.subr.mxu0 0.0
    %1488 = vmatpush2.msra.mxu0 0.0
    %1489 = vmatprep.subr.mxu0 0.0
    %1490 = vmatpush2.msra.mxu0 0.0
    %1491 = vmatprep.subr.mxu0 0.0
    %1492 = vmatpush2.msra.mxu0 0.0
    %1493 = vmatprep.subr.mxu0 0.0
    %1494 = vmatpush2.msra.mxu0 0.0
    %1495 = vmatprep.subr.mxu0 0.0
    %1496 = vmatpush2.msra.mxu0 0.0
    %1497 = vmatprep.subr.mxu0 0.0
    %1498 = vmatpush2.msra.mxu0 0.0
    %1499 = vmatprep.subr.mxu0 0.0
    %1500 = vmatpush2.msra.mxu0 0.0
    %1501 = vmatprep.subr.mxu0 0.0
    %1502 = vmatpush2.msra.mxu0 0.0
    %1503 = vmatprep.subr.mxu0 0.0
    %1504 = vmatpush2.msra.mxu0 0.0
    %1505 = vmatprep.subr.mxu0 0.0
    %1506 = vmatpush2.msra.mxu0 0.0
    %1507 = vmatprep.subr.mxu0 0.0
    %1508 = vmatpush2.msra.mxu0 0.0
    %1509 = vmatprep.subr.mxu0 0.0
    %1510 = vmatpush2.msra.mxu0 0.0
    %1511 = vmatprep.subr.mxu0 0.0
    %1512 = vmatpush2.msra.mxu0 0.0
    %1513 = vmatprep.subr.mxu0 0.0
    %1514 = vmatpush2.msra.mxu0 0.0
    %1515 = vmatprep.mubr.f32.mxu0 0.0
    %1516 = vmatmul.mubr.f32.gmra.mxu0 %v1449
    %v1517 = vpop.f32.mrf.mxu0
    %v1518 = vadd.f32 0.0, %v1517
    %v1519 = vpop.f32.mrf.mxu0
    %1520 = vdwg.mxu0
    %v1521 = vadd.f32 %v1445, %v1518
    %v1522 = vxor.u32 %v1521, 2147483648
    %v1523 = vmul.f32 %v1522, 1.442695
    %v1524 = vpow.pop %v1523
    %v1525 = vadd.f32 %v1524, 1.0
    %v1526 = vrcp.pop %v1525
    %v1527 = vmul.f32 1.0, %v1526
    %v1528 = vtanh.pop %v1521
    %v1529 = vmul.f32 %v1527, %v1437
    %1531 = vrot.lane.b32.xlu0 %v1528, 80
    %v1532 = vpop.permute.xlu0 %1531
    %v1534 = vmul.f32 %v1527, %v1532
    %1536 = vrot.lane.b32.xlu0 %v1534, 16
    %v1537 = vpop.permute.xlu0 %1536
    %v1539 = vadd.f32 %v1529, %v1537
    %v1540 = vtanh.pop %v1539
    %1542 = vrot.lane.b32.xlu0 %v1540, 16
    %v1543 = vpop.permute.xlu0 %1542
    %v1545 = vmul.f32 %v1527, %v1543
    %s1546 = scalar_lea.vmem [#allocation2], 96
    %v1547 = vld [vmem:[%s1546] sm:$0xff]
    %1549 = vrot.lane.b32.xlu0 %v1545, 96
    %v1550 = vpop.permute.xlu0 %1549
    %v1551 = vsel %vm325, %v1550, 0
    %1553 = vmatprep.subr.mxu0 0.0
    %1554 = vmatpush1.msra.mxu0 0.0
    %1555 = vmatprep.subr.mxu0 0.0
    %1556 = vmatpush1.msra.mxu0 0.0
    %1557 = vmatprep.subr.mxu0 0.0
    %1558 = vmatpush1.msra.mxu0 0.0
    %1559 = vmatprep.subr.mxu0 0.0
    %1560 = vmatpush1.msra.mxu0 0.0
    %1561 = vmatprep.subr.mxu0 0.0
    %1562 = vmatpush1.msra.mxu0 0.0
    %1563 = vmatprep.subr.mxu0 0.0
    %1564 = vmatpush1.msra.mxu0 0.0
    %1565 = vmatprep.subr.mxu0 0.0
    %1566 = vmatpush1.msra.mxu0 0.0
    %1567 = vmatprep.subr.mxu0 0.0
    %1568 = vmatpush1.msra.mxu0 0.0
    %1569 = vmatprep.subr.mxu0 0.0
    %1570 = vmatpush1.msra.mxu0 0.0
    %1571 = vmatprep.subr.mxu0 0.0
    %1572 = vmatpush1.msra.mxu0 0.0
    %1573 = vmatprep.subr.mxu0 0.0
    %1574 = vmatpush1.msra.mxu0 0.0
    %1575 = vmatprep.subr.mxu0 0.0
    %1576 = vmatpush1.msra.mxu0 0.0
    %1577 = vmatprep.subr.mxu0 0.0
    %1578 = vmatpush1.msra.mxu0 0.0
    %1579 = vmatprep.subr.mxu0 0.0
    %1580 = vmatpush1.msra.mxu0 0.0
    %1581 = vmatprep.subr.mxu0 0.0
    %1582 = vmatpush1.msra.mxu0 %v323
    %1583 = vmatprep.subr.mxu0 0.0
    %1584 = vmatpush1.msra.mxu0 %v322
    %1585 = vmatprep.subr.mxu0 0.0
    %1586 = vmatpush2.msra.mxu0 0.0
    %1587 = vmatprep.subr.mxu0 0.0
    %1588 = vmatpush2.msra.mxu0 0.0
    %1589 = vmatprep.subr.mxu0 0.0
    %1590 = vmatpush2.msra.mxu0 0.0
    %1591 = vmatprep.subr.mxu0 0.0
    %1592 = vmatpush2.msra.mxu0 0.0
    %1593 = vmatprep.subr.mxu0 0.0
    %1594 = vmatpush2.msra.mxu0 0.0
    %1595 = vmatprep.subr.mxu0 0.0
    %1596 = vmatpush2.msra.mxu0 0.0
    %1597 = vmatprep.subr.mxu0 0.0
    %1598 = vmatpush2.msra.mxu0 0.0
    %1599 = vmatprep.subr.mxu0 0.0
    %1600 = vmatpush2.msra.mxu0 0.0
    %1601 = vmatprep.subr.mxu0 0.0
    %1602 = vmatpush2.msra.mxu0 0.0
    %1603 = vmatprep.subr.mxu0 0.0
    %1604 = vmatpush2.msra.mxu0 0.0
    %1605 = vmatprep.subr.mxu0 0.0
    %1606 = vmatpush2.msra.mxu0 0.0
    %1607 = vmatprep.subr.mxu0 0.0
    %1608 = vmatpush2.msra.mxu0 0.0
    %1609 = vmatprep.subr.mxu0 0.0
    %1610 = vmatpush2.msra.mxu0 0.0
    %1611 = vmatprep.subr.mxu0 0.0
    %1612 = vmatpush2.msra.mxu0 0.0
    %1613 = vmatprep.subr.mxu0 0.0
    %1614 = vmatpush2.msra.mxu0 0.0
    %1615 = vmatprep.subr.mxu0 0.0
    %1616 = vmatpush2.msra.mxu0 0.0
    %1617 = vmatprep.mubr.f32.mxu0 0.0
    %1618 = vmatmul.mubr.f32.gmra.mxu0 %v1551
    %v1619 = vpop.f32.mrf.mxu0
    %v1620 = vadd.f32 0.0, %v1619
    %v1621 = vpop.f32.mrf.mxu0
    %1622 = vdwg.mxu0
    %v1623 = vadd.f32 %v1547, %v1620
    %v1624 = vxor.u32 %v1623, 2147483648
    %v1625 = vmul.f32 %v1624, 1.442695
    %v1626 = vpow.pop %v1625
    %v1627 = vadd.f32 %v1626, 1.0
    %v1628 = vrcp.pop %v1627
    %v1629 = vmul.f32 1.0, %v1628
    %v1630 = vtanh.pop %v1623
    %v1631 = vmul.f32 %v1629, %v1539
    %1633 = vrot.lane.b32.xlu0 %v1630, 80
    %v1634 = vpop.permute.xlu0 %1633
    %v1636 = vmul.f32 %v1629, %v1634
    %1638 = vrot.lane.b32.xlu0 %v1636, 16
    %v1639 = vpop.permute.xlu0 %1638
    %v1641 = vadd.f32 %v1631, %v1639
    %v1642 = vtanh.pop %v1641
    %1644 = vrot.lane.b32.xlu0 %v1642, 16
    %v1645 = vpop.permute.xlu0 %1644
    %v1647 = vmul.f32 %v1629, %v1645
    %s1648 = scalar_lea.vmem [#allocation2], 104
    %v1649 = vld [vmem:[%s1648] sm:$0xff]
    %1651 = vrot.lane.b32.xlu0 %v1647, 96
    %v1652 = vpop.permute.xlu0 %1651
    %v1653 = vsel %vm325, %v1652, 0
    %1655 = vmatprep.subr.mxu0 0.0
    %1656 = vmatpush1.msra.mxu0 0.0
    %1657 = vmatprep.subr.mxu0 0.0
    %1658 = vmatpush1.msra.mxu0 0.0
    %1659 = vmatprep.subr.mxu0 0.0
    %1660 = vmatpush1.msra.mxu0 0.0
    %1661 = vmatprep.subr.mxu0 0.0
    %1662 = vmatpush1.msra.mxu0 0.0
    %1663 = vmatprep.subr.mxu0 0.0
    %1664 = vmatpush1.msra.mxu0 0.0
    %1665 = vmatprep.subr.mxu0 0.0
    %1666 = vmatpush1.msra.mxu0 0.0
    %1667 = vmatprep.subr.mxu0 0.0
    %1668 = vmatpush1.msra.mxu0 0.0
    %1669 = vmatprep.subr.mxu0 0.0
    %1670 = vmatpush1.msra.mxu0 0.0
    %1671 = vmatprep.subr.mxu0 0.0
    %1672 = vmatpush1.msra.mxu0 0.0
    %1673 = vmatprep.subr.mxu0 0.0
    %1674 = vmatpush1.msra.mxu0 0.0
    %1675 = vmatprep.subr.mxu0 0.0
    %1676 = vmatpush1.msra.mxu0 0.0
    %1677 = vmatprep.subr.mxu0 0.0
    %1678 = vmatpush1.msra.mxu0 0.0
    %1679 = vmatprep.subr.mxu0 0.0
    %1680 = vmatpush1.msra.mxu0 0.0
    %1681 = vmatprep.subr.mxu0 0.0
    %1682 = vmatpush1.msra.mxu0 0.0
    %1683 = vmatprep.subr.mxu0 0.0
    %1684 = vmatpush1.msra.mxu0 %v323
    %1685 = vmatprep.subr.mxu0 0.0
    %1686 = vmatpush1.msra.mxu0 %v322
    %1687 = vmatprep.subr.mxu0 0.0
    %1688 = vmatpush2.msra.mxu0 0.0
    %1689 = vmatprep.subr.mxu0 0.0
    %1690 = vmatpush2.msra.mxu0 0.0
    %1691 = vmatprep.subr.mxu0 0.0
    %1692 = vmatpush2.msra.mxu0 0.0
    %1693 = vmatprep.subr.mxu0 0.0
    %1694 = vmatpush2.msra.mxu0 0.0
    %1695 = vmatprep.subr.mxu0 0.0
    %1696 = vmatpush2.msra.mxu0 0.0
    %1697 = vmatprep.subr.mxu0 0.0
    %1698 = vmatpush2.msra.mxu0 0.0
    %1699 = vmatprep.subr.mxu0 0.0
    %1700 = vmatpush2.msra.mxu0 0.0
    %1701 = vmatprep.subr.mxu0 0.0
    %1702 = vmatpush2.msra.mxu0 0.0
    %1703 = vmatprep.subr.mxu0 0.0
    %1704 = vmatpush2.msra.mxu0 0.0
    %1705 = vmatprep.subr.mxu0 0.0
    %1706 = vmatpush2.msra.mxu0 0.0
    %1707 = vmatprep.subr.mxu0 0.0
    %1708 = vmatpush2.msra.mxu0 0.0
    %1709 = vmatprep.subr.mxu0 0.0
    %1710 = vmatpush2.msra.mxu0 0.0
    %1711 = vmatprep.subr.mxu0 0.0
    %1712 = vmatpush2.msra.mxu0 0.0
    %1713 = vmatprep.subr.mxu0 0.0
    %1714 = vmatpush2.msra.mxu0 0.0
    %1715 = vmatprep.subr.mxu0 0.0
    %1716 = vmatpush2.msra.mxu0 0.0
    %1717 = vmatprep.subr.mxu0 0.0
    %1718 = vmatpush2.msra.mxu0 0.0
    %1719 = vmatprep.mubr.f32.mxu0 0.0
    %1720 = vmatmul.mubr.f32.gmra.mxu0 %v1653
    %v1721 = vpop.f32.mrf.mxu0
    %v1722 = vadd.f32 0.0, %v1721
    %v1723 = vpop.f32.mrf.mxu0
    %1724 = vdwg.mxu0
    %v1725 = vadd.f32 %v1649, %v1722
    %v1726 = vxor.u32 %v1725, 2147483648
    %v1727 = vmul.f32 %v1726, 1.442695
    %v1728 = vpow.pop %v1727
    %v1729 = vadd.f32 %v1728, 1.0
    %v1730 = vrcp.pop %v1729
    %v1731 = vmul.f32 1.0, %v1730
    %v1732 = vtanh.pop %v1725
    %v1733 = vmul.f32 %v1731, %v1641
    %1735 = vrot.lane.b32.xlu0 %v1732, 80
    %v1736 = vpop.permute.xlu0 %1735
    %v1738 = vmul.f32 %v1731, %v1736
    %1740 = vrot.lane.b32.xlu0 %v1738, 16
    %v1741 = vpop.permute.xlu0 %1740
    %v1743 = vadd.f32 %v1733, %v1741
    %v1744 = vtanh.pop %v1743
    %1746 = vrot.lane.b32.xlu0 %v1744, 16
    %v1747 = vpop.permute.xlu0 %1746
    %v1749 = vmul.f32 %v1731, %v1747
    %s1750 = scalar_lea.vmem [#allocation2], 112
    %v1751 = vld [vmem:[%s1750] sm:$0xff]
    %1753 = vrot.lane.b32.xlu0 %v1749, 96
    %v1754 = vpop.permute.xlu0 %1753
    %v1755 = vsel %vm325, %v1754, 0
    %1757 = vmatprep.subr.mxu0 0.0
    %1758 = vmatpush1.msra.mxu0 0.0
    %1759 = vmatprep.subr.mxu0 0.0
    %1760 = vmatpush1.msra.mxu0 0.0
    %1761 = vmatprep.subr.mxu0 0.0
    %1762 = vmatpush1.msra.mxu0 0.0
    %1763 = vmatprep.subr.mxu0 0.0
    %1764 = vmatpush1.msra.mxu0 0.0
    %1765 = vmatprep.subr.mxu0 0.0
    %1766 = vmatpush1.msra.mxu0 0.0
    %1767 = vmatprep.subr.mxu0 0.0
    %1768 = vmatpush1.msra.mxu0 0.0
    %1769 = vmatprep.subr.mxu0 0.0
    %1770 = vmatpush1.msra.mxu0 0.0
    %1771 = vmatprep.subr.mxu0 0.0
    %1772 = vmatpush1.msra.mxu0 0.0
    %1773 = vmatprep.subr.mxu0 0.0
    %1774 = vmatpush1.msra.mxu0 0.0
    %1775 = vmatprep.subr.mxu0 0.0
    %1776 = vmatpush1.msra.mxu0 0.0
    %1777 = vmatprep.subr.mxu0 0.0
    %1778 = vmatpush1.msra.mxu0 0.0
    %1779 = vmatprep.subr.mxu0 0.0
    %1780 = vmatpush1.msra.mxu0 0.0
    %1781 = vmatprep.subr.mxu0 0.0
    %1782 = vmatpush1.msra.mxu0 0.0
    %1783 = vmatprep.subr.mxu0 0.0
    %1784 = vmatpush1.msra.mxu0 0.0
    %1785 = vmatprep.subr.mxu0 0.0
    %1786 = vmatpush1.msra.mxu0 %v323
    %1787 = vmatprep.subr.mxu0 0.0
    %1788 = vmatpush1.msra.mxu0 %v322
    %1789 = vmatprep.subr.mxu0 0.0
    %1790 = vmatpush2.msra.mxu0 0.0
    %1791 = vmatprep.subr.mxu0 0.0
    %1792 = vmatpush2.msra.mxu0 0.0
    %1793 = vmatprep.subr.mxu0 0.0
    %1794 = vmatpush2.msra.mxu0 0.0
    %1795 = vmatprep.subr.mxu0 0.0
    %1796 = vmatpush2.msra.mxu0 0.0
    %1797 = vmatprep.subr.mxu0 0.0
    %1798 = vmatpush2.msra.mxu0 0.0
    %1799 = vmatprep.subr.mxu0 0.0
    %1800 = vmatpush2.msra.mxu0 0.0
    %1801 = vmatprep.subr.mxu0 0.0
    %1802 = vmatpush2.msra.mxu0 0.0
    %1803 = vmatprep.subr.mxu0 0.0
    %1804 = vmatpush2.msra.mxu0 0.0
    %1805 = vmatprep.subr.mxu0 0.0
    %1806 = vmatpush2.msra.mxu0 0.0
    %1807 = vmatprep.subr.mxu0 0.0
    %1808 = vmatpush2.msra.mxu0 0.0
    %1809 = vmatprep.subr.mxu0 0.0
    %1810 = vmatpush2.msra.mxu0 0.0
    %1811 = vmatprep.subr.mxu0 0.0
    %1812 = vmatpush2.msra.mxu0 0.0
    %1813 = vmatprep.subr.mxu0 0.0
    %1814 = vmatpush2.msra.mxu0 0.0
    %1815 = vmatprep.subr.mxu0 0.0
    %1816 = vmatpush2.msra.mxu0 0.0
    %1817 = vmatprep.subr.mxu0 0.0
    %1818 = vmatpush2.msra.mxu0 0.0
    %1819 = vmatprep.subr.mxu0 0.0
    %1820 = vmatpush2.msra.mxu0 0.0
    %1821 = vmatprep.mubr.f32.mxu0 0.0
    %1822 = vmatmul.mubr.f32.gmra.mxu0 %v1755
    %v1823 = vpop.f32.mrf.mxu0
    %v1824 = vadd.f32 0.0, %v1823
    %v1825 = vpop.f32.mrf.mxu0
    %1826 = vdwg.mxu0
    %v1827 = vadd.f32 %v1751, %v1824
    %v1828 = vxor.u32 %v1827, 2147483648
    %v1829 = vmul.f32 %v1828, 1.442695
    %v1830 = vpow.pop %v1829
    %v1831 = vadd.f32 %v1830, 1.0
    %v1832 = vrcp.pop %v1831
    %v1833 = vmul.f32 1.0, %v1832
    %v1834 = vtanh.pop %v1827
    %v1835 = vmul.f32 %v1833, %v1743
    %1837 = vrot.lane.b32.xlu0 %v1834, 80
    %v1838 = vpop.permute.xlu0 %1837
    %v1840 = vmul.f32 %v1833, %v1838
    %1842 = vrot.lane.b32.xlu0 %v1840, 16
    %v1843 = vpop.permute.xlu0 %1842
    %v1845 = vadd.f32 %v1835, %v1843
    %v1846 = vtanh.pop %v1845
    %1848 = vrot.lane.b32.xlu0 %v1846, 16
    %v1849 = vpop.permute.xlu0 %1848
    %v1851 = vmul.f32 %v1833, %v1849
    %s1852 = scalar_lea.vmem [#allocation2], 120
    %v1853 = vld [vmem:[%s1852] sm:$0xff]
    %1855 = vrot.lane.b32.xlu0 %v1851, 96
    %v1856 = vpop.permute.xlu0 %1855
    %v1857 = vsel %vm325, %v1856, 0
    %1859 = vmatprep.subr.mxu0 0.0
    %1860 = vmatpush1.msra.mxu0 0.0
    %1861 = vmatprep.subr.mxu0 0.0
    %1862 = vmatpush1.msra.mxu0 0.0
    %1863 = vmatprep.subr.mxu0 0.0
    %1864 = vmatpush1.msra.mxu0 0.0
    %1865 = vmatprep.subr.mxu0 0.0
    %1866 = vmatpush1.msra.mxu0 0.0
    %1867 = vmatprep.subr.mxu0 0.0
    %1868 = vmatpush1.msra.mxu0 0.0
    %1869 = vmatprep.subr.mxu0 0.0
    %1870 = vmatpush1.msra.mxu0 0.0
    %1871 = vmatprep.subr.mxu0 0.0
    %1872 = vmatpush1.msra.mxu0 0.0
    %1873 = vmatprep.subr.mxu0 0.0
    %1874 = vmatpush1.msra.mxu0 0.0
    %1875 = vmatprep.subr.mxu0 0.0
    %1876 = vmatpush1.msra.mxu0 0.0
    %1877 = vmatprep.subr.mxu0 0.0
    %1878 = vmatpush1.msra.mxu0 0.0
    %1879 = vmatprep.subr.mxu0 0.0
    %1880 = vmatpush1.msra.mxu0 0.0
    %1881 = vmatprep.subr.mxu0 0.0
    %1882 = vmatpush1.msra.mxu0 0.0
    %1883 = vmatprep.subr.mxu0 0.0
    %1884 = vmatpush1.msra.mxu0 0.0
    %1885 = vmatprep.subr.mxu0 0.0
    %1886 = vmatpush1.msra.mxu0 0.0
    %1887 = vmatprep.subr.mxu0 0.0
    %1888 = vmatpush1.msra.mxu0 %v323
    %1889 = vmatprep.subr.mxu0 0.0
    %1890 = vmatpush1.msra.mxu0 %v322
    %1891 = vmatprep.subr.mxu0 0.0
    %1892 = vmatpush2.msra.mxu0 0.0
    %1893 = vmatprep.subr.mxu0 0.0
    %1894 = vmatpush2.msra.mxu0 0.0
    %1895 = vmatprep.subr.mxu0 0.0
    %1896 = vmatpush2.msra.mxu0 0.0
    %1897 = vmatprep.subr.mxu0 0.0
    %1898 = vmatpush2.msra.mxu0 0.0
    %1899 = vmatprep.subr.mxu0 0.0
    %1900 = vmatpush2.msra.mxu0 0.0
    %1901 = vmatprep.subr.mxu0 0.0
    %1902 = vmatpush2.msra.mxu0 0.0
    %1903 = vmatprep.subr.mxu0 0.0
    %1904 = vmatpush2.msra.mxu0 0.0
    %1905 = vmatprep.subr.mxu0 0.0
    %1906 = vmatpush2.msra.mxu0 0.0
    %1907 = vmatprep.subr.mxu0 0.0
    %1908 = vmatpush2.msra.mxu0 0.0
    %1909 = vmatprep.subr.mxu0 0.0
    %1910 = vmatpush2.msra.mxu0 0.0
    %1911 = vmatprep.subr.mxu0 0.0
    %1912 = vmatpush2.msra.mxu0 0.0
    %1913 = vmatprep.subr.mxu0 0.0
    %1914 = vmatpush2.msra.mxu0 0.0
    %1915 = vmatprep.subr.mxu0 0.0
    %1916 = vmatpush2.msra.mxu0 0.0
    %1917 = vmatprep.subr.mxu0 0.0
    %1918 = vmatpush2.msra.mxu0 0.0
    %1919 = vmatprep.subr.mxu0 0.0
    %1920 = vmatpush2.msra.mxu0 0.0
    %1921 = vmatprep.subr.mxu0 0.0
    %1922 = vmatpush2.msra.mxu0 0.0
    %1923 = vmatprep.mubr.f32.mxu0 0.0
    %1924 = vmatmul.mubr.f32.gmra.mxu0 %v1857
    %v1925 = vpop.f32.mrf.mxu0
    %v1926 = vadd.f32 0.0, %v1925
    %v1927 = vpop.f32.mrf.mxu0
    %1928 = vdwg.mxu0
    %v1929 = vadd.f32 %v1853, %v1926
    %v1930 = vxor.u32 %v1929, 2147483648
    %v1931 = vmul.f32 %v1930, 1.442695
    %v1932 = vpow.pop %v1931
    %v1933 = vadd.f32 %v1932, 1.0
    %v1934 = vrcp.pop %v1933
    %v1935 = vmul.f32 1.0, %v1934
    %v1936 = vtanh.pop %v1929
    %v1937 = vmul.f32 %v1935, %v1845
    %1939 = vrot.lane.b32.xlu0 %v1936, 80
    %v1940 = vpop.permute.xlu0 %1939
    %v1942 = vmul.f32 %v1935, %v1940
    %1944 = vrot.lane.b32.xlu0 %v1942, 16
    %v1945 = vpop.permute.xlu0 %1944
    %v1947 = vadd.f32 %v1937, %v1945
    %v1948 = vtanh.pop %v1947
    %1950 = vrot.lane.b32.xlu0 %v1948, 16
    %v1951 = vpop.permute.xlu0 %1950
    %v1953 = vmul.f32 %v1935, %v1951
    %1955 = vrot.lane.b32.xlu0 %v1953, 96
    %v1956 = vpop.permute.xlu0 %1955
    %1958 = vrot.lane.b32.xlu0 %v1953, 112
    %v1959 = vpop.permute.xlu0 %1958
    %v1961 = vsel %vm325, %v1956, %v1959
    %v1962 = vld [vmem:[%s4] sm:$0xff]
    %v1963 = vld [vmem:[%s4 + $0x8] sm:$0xff]
    %v1964 = vld [vmem:[%s4 + $0x10] sm:$0xff]
    %v1965 = vld [vmem:[%s4 + $0x18] sm:$0xff]
    %v1966 = vld [vmem:[%s5] sm:$0xff]
    %v1967 = vld [vmem:[%s5 + $0x8] sm:$0xff]
    %v1968 = vld [vmem:[%s5 + $0x10] sm:$0xff]
    %v1969 = vld [vmem:[%s5 + $0x18] sm:$0xff]
    %v1970 = vld [vmem:[%s6] sm:$0x1]
    %v1972 = vlaneseq
    %v1973 = vshrl.u32 %v1972, 7
    %v1974 = vsub.s32 0, %v1973
    %v1975 = vrot.slane %v1970, %v1974
    %vm1977 = vcmask 261120
    %v1979 = vsel %vm1977, %v1961, 0
    %1981 = vmatprep.subr.mxu0 0.0
    %1982 = vmatpush1.msra.mxu0 0.0
    %1983 = vmatprep.subr.mxu0 0.0
    %1984 = vmatpush1.msra.mxu0 0.0
    %1985 = vmatprep.subr.mxu0 0.0
    %1986 = vmatpush1.msra.mxu0 0.0
    %1987 = vmatprep.subr.mxu0 0.0
    %1988 = vmatpush1.msra.mxu0 0.0
    %1989 = vmatprep.subr.mxu0 0.0
    %1990 = vmatpush1.msra.mxu0 0.0
    %1991 = vmatprep.subr.mxu0 0.0
    %1992 = vmatpush1.msra.mxu0 0.0
    %1993 = vmatprep.subr.mxu0 0.0
    %1994 = vmatpush1.msra.mxu0 0.0
    %1995 = vmatprep.subr.mxu0 0.0
    %1996 = vmatpush1.msra.mxu0 0.0
    %1997 = vmatprep.subr.mxu0 0.0
    %1998 = vmatpush1.msra.mxu0 0.0
    %1999 = vmatprep.subr.mxu0 0.0
    %2000 = vmatpush1.msra.mxu0 0.0
    %2001 = vmatprep.subr.mxu0 0.0
    %2002 = vmatpush1.msra.mxu0 0.0
    %2003 = vmatprep.subr.mxu0 0.0
    %2004 = vmatpush1.msra.mxu0 0.0
    %2005 = vmatprep.subr.mxu0 0.0
    %2006 = vmatpush1.msra.mxu0 %v1969
    %2007 = vmatprep.subr.mxu0 0.0
    %2008 = vmatpush1.msra.mxu0 %v1968
    %2009 = vmatprep.subr.mxu0 0.0
    %2010 = vmatpush1.msra.mxu0 %v1967
    %2011 = vmatprep.subr.mxu0 0.0
    %2012 = vmatpush1.msra.mxu0 %v1966
    %2013 = vmatprep.subr.mxu0 0.0
    %2014 = vmatpush2.msra.mxu0 0.0
    %2015 = vmatprep.subr.mxu0 0.0
    %2016 = vmatpush2.msra.mxu0 0.0
    %2017 = vmatprep.subr.mxu0 0.0
    %2018 = vmatpush2.msra.mxu0 0.0
    %2019 = vmatprep.subr.mxu0 0.0
    %2020 = vmatpush2.msra.mxu0 0.0
    %2021 = vmatprep.subr.mxu0 0.0
    %2022 = vmatpush2.msra.mxu0 0.0
    %2023 = vmatprep.subr.mxu0 0.0
    %2024 = vmatpush2.msra.mxu0 0.0
    %2025 = vmatprep.subr.mxu0 0.0
    %2026 = vmatpush2.msra.mxu0 0.0
    %2027 = vmatprep.subr.mxu0 0.0
    %2028 = vmatpush2.msra.mxu0 0.0
    %2029 = vmatprep.subr.mxu0 0.0
    %2030 = vmatpush2.msra.mxu0 0.0
    %2031 = vmatprep.subr.mxu0 0.0
    %2032 = vmatpush2.msra.mxu0 0.0
    %2033 = vmatprep.subr.mxu0 0.0
    %2034 = vmatpush2.msra.mxu0 0.0
    %2035 = vmatprep.subr.mxu0 0.0
    %2036 = vmatpush2.msra.mxu0 0.0
    %2037 = vmatprep.subr.mxu0 0.0
    %2038 = vmatpush2.msra.mxu0 0.0
    %2039 = vmatprep.subr.mxu0 0.0
    %2040 = vmatpush2.msra.mxu0 0.0
    %2041 = vmatprep.subr.mxu0 0.0
    %2042 = vmatpush2.msra.mxu0 0.0
    %2043 = vmatprep.subr.mxu0 0.0
    %2044 = vmatpush2.msra.mxu0 0.0
    %2045 = vmatprep.mubr.f32.mxu0 0.0
    %2046 = vmatmul.mubr.f32.gmra.mxu0 %v1979
    %v2047 = vpop.f32.mrf.mxu0
    %v2048 = vadd.f32 %v1975, %v2047
    %v2049 = vpop.f32.mrf.mxu0
    %2050 = vdwg.mxu0
    %2052 = vrot.lane.b32.xlu0 %v2048, 120
    %v2053 = vpop.permute.xlu0 %2052
    %2054 = vrot.lane.b32.xlu0 %v2048, 112
    %v2055 = vpop.permute.xlu0 %2054
    %2056 = vrot.lane.b32.xlu0 %v2048, 104
    %v2057 = vpop.permute.xlu0 %2056
    %2058 = vrot.lane.b32.xlu0 %v2048, 96
    %v2059 = vpop.permute.xlu0 %2058
    %2060 = vrot.lane.b32.xlu0 %v2053, 96
    %v2061 = vpop.permute.xlu0 %2060
    %2062 = vrot.lane.b32.xlu0 %v2055, 96
    %v2063 = vpop.permute.xlu0 %2062
    %2064 = vrot.lane.b32.xlu0 %v2057, 96
    %v2065 = vpop.permute.xlu0 %2064
    %vm2066 = vcmask 64512
    %v2067 = vsel %vm2066, %v2048, 0
    %v2069 = vsel %vm2066, %v2053, 0
    %v2071 = vsel %vm2066, %v2055, 0
    %v2073 = vsel %vm2066, %v2057, 0
    %v2075 = vsel %vm2066, %v2059, 0
    %v2077 = vsel %vm2066, %v2061, 0
    %v2079 = vsel %vm2066, %v2063, 0
    %v2081 = vsel %vm2066, %v2065, 0
    %2083 = vmatprep.subr.mxu0 0.0
    %2084 = vmatpush1.xpose.msra.mxu0 0.0
    %2085 = vmatprep.subr.mxu0 0.0
    %2086 = vmatpush1.xpose.msra.mxu0 0.0
    %2087 = vmatprep.subr.mxu0 0.0
    %2088 = vmatpush1.xpose.msra.mxu0 0.0
    %2089 = vmatprep.subr.mxu0 0.0
    %2090 = vmatpush1.xpose.msra.mxu0 0.0
    %2091 = vmatprep.subr.mxu0 0.0
    %2092 = vmatpush1.xpose.msra.mxu0 0.0
    %2093 = vmatprep.subr.mxu0 0.0
    %2094 = vmatpush1.xpose.msra.mxu0 0.0
    %2095 = vmatprep.subr.mxu0 0.0
    %2096 = vmatpush1.xpose.msra.mxu0 0.0
    %2097 = vmatprep.subr.mxu0 0.0
    %2098 = vmatpush1.xpose.msra.mxu0 0.0
    %2099 = vmatprep.subr.mxu0 0.0
    %2100 = vmatpush1.xpose.msra.mxu0 0.0
    %2101 = vmatprep.subr.mxu0 0.0
    %2102 = vmatpush1.xpose.msra.mxu0 0.0
    %2103 = vmatprep.subr.mxu0 0.0
    %2104 = vmatpush1.xpose.msra.mxu0 0.0
    %2105 = vmatprep.subr.mxu0 0.0
    %2106 = vmatpush1.xpose.msra.mxu0 0.0
    %2107 = vmatprep.subr.mxu0 0.0
    %2108 = vmatpush1.xpose.msra.mxu0 %v2081
    %2109 = vmatprep.subr.mxu0 0.0
    %2110 = vmatpush1.xpose.msra.mxu0 %v2079
    %2111 = vmatprep.subr.mxu0 0.0
    %2112 = vmatpush1.xpose.msra.mxu0 %v2077
    %2113 = vmatprep.subr.mxu0 0.0
    %2114 = vmatpush1.xpose.msra.mxu0 %v2075
    %2115 = vmatprep.subr.mxu0 0.0
    %2116 = vmatpush2.xpose.msra.mxu0 0.0
    %2117 = vmatprep.subr.mxu0 0.0
    %2118 = vmatpush2.xpose.msra.mxu0 0.0
    %2119 = vmatprep.subr.mxu0 0.0
    %2120 = vmatpush2.xpose.msra.mxu0 0.0
    %2121 = vmatprep.subr.mxu0 0.0
    %2122 = vmatpush2.xpose.msra.mxu0 0.0
    %2123 = vmatprep.subr.mxu0 0.0
    %2124 = vmatpush2.xpose.msra.mxu0 0.0
    %2125 = vmatprep.subr.mxu0 0.0
    %2126 = vmatpush2.xpose.msra.mxu0 0.0
    %2127 = vmatprep.subr.mxu0 0.0
    %2128 = vmatpush2.xpose.msra.mxu0 0.0
    %2129 = vmatprep.subr.mxu0 0.0
    %2130 = vmatpush2.xpose.msra.mxu0 0.0
    %2131 = vmatprep.subr.mxu0 0.0
    %2132 = vmatpush2.xpose.msra.mxu0 0.0
    %2133 = vmatprep.subr.mxu0 0.0
    %2134 = vmatpush2.xpose.msra.mxu0 0.0
    %2135 = vmatprep.subr.mxu0 0.0
    %2136 = vmatpush2.xpose.msra.mxu0 0.0
    %2137 = vmatprep.subr.mxu0 0.0
    %2138 = vmatpush2.xpose.msra.mxu0 0.0
    %2139 = vmatprep.subr.mxu0 0.0
    %2140 = vmatpush2.xpose.msra.mxu0 0.0
    %2141 = vmatprep.subr.mxu0 0.0
    %2142 = vmatpush2.xpose.msra.mxu0 0.0
    %2143 = vmatprep.subr.mxu0 0.0
    %2144 = vmatpush2.xpose.msra.mxu0 0.0
    %2145 = vmatprep.subr.mxu0 0.0
    %2146 = vmatpush2.xpose.msra.mxu0 0.0
    %2147 = vmatprep.mubr.f32.mxu0 0.0
    %2148 = vmatmul.mubr.f32.gmra.mxu0 %v2067
    %v2149 = vpop.f32.mrf.mxu0
    %v2150 = vadd.f32 %v1962, %v2149
    %v2151 = vpop.f32.mrf.mxu0
    %2152 = vmatprep.mubr.f32.mxu0 0.0
    %2153 = vmatmul.mubr.f32.gmra.mxu0 %v2069
    %v2154 = vpop.f32.mrf.mxu0
    %v2155 = vadd.f32 %v1963, %v2154
    %v2156 = vpop.f32.mrf.mxu0
    %2157 = vmatprep.mubr.f32.mxu0 0.0
    %2158 = vmatmul.mubr.f32.gmra.mxu0 %v2071
    %v2159 = vpop.f32.mrf.mxu0
    %v2160 = vadd.f32 %v1964, %v2159
    %v2161 = vpop.f32.mrf.mxu0
    %2162 = vmatprep.mubr.f32.mxu0 0.0
    %2163 = vmatmul.mubr.f32.gmra.mxu0 %v2073
    %v2164 = vpop.f32.mrf.mxu0
    %v2165 = vadd.f32 %v1965, %v2164
    %v2166 = vpop.f32.mrf.mxu0
    %2167 = vdwg.mxu0
    %v2168 = vsel %vm1977, %v2150, -inf
    %2169 = vmax.xlane.f32.xlu0 %v2168
    %v2170 = vpop.xlane.xlu0 %2169
    %v2171 = vsel %vm1977, %v2155, -inf
    %2172 = vmax.xlane.f32.xlu0 %v2171
    %v2173 = vpop.xlane.xlu0 %2172
    %v2174 = vsel %vm1977, %v2160, -inf
    %2175 = vmax.xlane.f32.xlu0 %v2174
    %v2176 = vpop.xlane.xlu0 %2175
    %v2177 = vsel %vm1977, %v2165, -inf
    %2178 = vmax.xlane.f32.xlu0 %v2177
    %v2179 = vpop.xlane.xlu0 %2178
    %v2180 = vsub.f32 %v2150, %v2170
    %v2181 = vsub.f32 %v2155, %v2173
    %v2182 = vsub.f32 %v2160, %v2176
    %v2183 = vsub.f32 %v2165, %v2179
    %v2184 = vmul.f32 %v2180, 1.442695
    %v2185 = vpow.pop %v2184
    %v2186 = vmul.f32 %v2181, 1.442695
    %v2187 = vpow.pop %v2186
    %v2188 = vmul.f32 %v2182, 1.442695
    %v2189 = vpow.pop %v2188
    %v2190 = vmul.f32 %v2183, 1.442695
    %v2191 = vpow.pop %v2190
    %v2192 = vsel %vm1977, %v2185, 0.0
    %2193 = vadd.xlane.f32.xlu0 %v2192
    %v2194 = vpop.xlane.xlu0 %2193
    %v2195 = vsel %vm1977, %v2187, 0.0
    %2196 = vadd.xlane.f32.xlu0 %v2195
    %v2197 = vpop.xlane.xlu0 %2196
    %v2198 = vsel %vm1977, %v2189, 0.0
    %2199 = vadd.xlane.f32.xlu0 %v2198
    %v2200 = vpop.xlane.xlu0 %2199
    %v2201 = vsel %vm1977, %v2191, 0.0
    %2202 = vadd.xlane.f32.xlu0 %v2201
    %v2203 = vpop.xlane.xlu0 %2202
    %v2204 = vrcp.pop %v2194
    %v2205 = vrcp.pop %v2197
    %v2206 = vrcp.pop %v2200
    %v2207 = vrcp.pop %v2203
    %v2208 = vmul.f32 %v2194, %v2204
    %v2209 = vmul.f32 %v2197, %v2205
    %v2210 = vmul.f32 %v2200, %v2206
    %v2211 = vmul.f32 %v2203, %v2207
    %v2212 = vsub.f32 2.0, %v2208
    %v2213 = vsub.f32 2.0, %v2209
    %v2214 = vsub.f32 2.0, %v2210
    %v2215 = vsub.f32 2.0, %v2211
    %v2216 = vmul.f32 %v2204, %v2212
    %v2217 = vmul.f32 %v2205, %v2213
    %v2218 = vmul.f32 %v2206, %v2214
    %v2219 = vmul.f32 %v2207, %v2215
    %v2220 = vmul.f32 %v2185, %v2216
    %v2221 = vmul.f32 %v2187, %v2217
    %v2222 = vmul.f32 %v2189, %v2218
    %v2223 = vmul.f32 %v2191, %v2219
    %2224 = vrot.lane.b32.xlu0 %v2048, 64
    %v2225 = vpop.permute.xlu0 %2224
    %2226 = vrot.lane.b32.xlu0 %v2053, 64
    %v2227 = vpop.permute.xlu0 %2226
    %2228 = vrot.lane.b32.xlu0 %v2055, 64
    %v2229 = vpop.permute.xlu0 %2228
    %2230 = vrot.lane.b32.xlu0 %v2057, 64
    %v2231 = vpop.permute.xlu0 %2230
    %v2237 = vsel %vm1977, %v2220, 0
    %v2240 = vsel %vm1977, %v2221, 0
    %v2243 = vsel %vm1977, %v2222, 0
    %v2246 = vsel %vm1977, %v2223, 0
    %2248 = vmatprep.subr.mxu0 0.0
    %2249 = vmatpush1.msra.mxu0 0.0
    %2250 = vmatprep.subr.mxu0 0.0
    %2251 = vmatpush1.msra.mxu0 0.0
    %2252 = vmatprep.subr.mxu0 0.0
    %2253 = vmatpush1.msra.mxu0 0.0
    %2254 = vmatprep.subr.mxu0 0.0
    %2255 = vmatpush1.msra.mxu0 0.0
    %2256 = vmatprep.subr.mxu0 0.0
    %2257 = vmatpush1.msra.mxu0 0.0
    %2258 = vmatprep.subr.mxu0 0.0
    %2259 = vmatpush1.msra.mxu0 0.0
    %2260 = vmatprep.subr.mxu0 0.0
    %2261 = vmatpush1.msra.mxu0 0.0
    %2262 = vmatprep.subr.mxu0 0.0
    %2263 = vmatpush1.msra.mxu0 0.0
    %2264 = vmatprep.subr.mxu0 0.0
    %2265 = vmatpush1.msra.mxu0 0.0
    %2266 = vmatprep.subr.mxu0 0.0
    %2267 = vmatpush1.msra.mxu0 0.0
    %2268 = vmatprep.subr.mxu0 0.0
    %2269 = vmatpush1.msra.mxu0 0.0
    %2270 = vmatprep.subr.mxu0 0.0
    %2271 = vmatpush1.msra.mxu0 0.0
    %2272 = vmatprep.subr.mxu0 0.0
    %2273 = vmatpush1.msra.mxu0 %v2231
    %2274 = vmatprep.subr.mxu0 0.0
    %2275 = vmatpush1.msra.mxu0 %v2229
    %2276 = vmatprep.subr.mxu0 0.0
    %2277 = vmatpush1.msra.mxu0 %v2227
    %2278 = vmatprep.subr.mxu0 0.0
    %2279 = vmatpush1.msra.mxu0 %v2225
    %2280 = vmatprep.subr.mxu0 0.0
    %2281 = vmatpush2.msra.mxu0 0.0
    %2282 = vmatprep.subr.mxu0 0.0
    %2283 = vmatpush2.msra.mxu0 0.0
    %2284 = vmatprep.subr.mxu0 0.0
    %2285 = vmatpush2.msra.mxu0 0.0
    %2286 = vmatprep.subr.mxu0 0.0
    %2287 = vmatpush2.msra.mxu0 0.0
    %2288 = vmatprep.subr.mxu0 0.0
    %2289 = vmatpush2.msra.mxu0 0.0
    %2290 = vmatprep.subr.mxu0 0.0
    %2291 = vmatpush2.msra.mxu0 0.0
    %2292 = vmatprep.subr.mxu0 0.0
    %2293 = vmatpush2.msra.mxu0 0.0
    %2294 = vmatprep.subr.mxu0 0.0
    %2295 = vmatpush2.msra.mxu0 0.0
    %2296 = vmatprep.subr.mxu0 0.0
    %2297 = vmatpush2.msra.mxu0 0.0
    %2298 = vmatprep.subr.mxu0 0.0
    %2299 = vmatpush2.msra.mxu0 0.0
    %2300 = vmatprep.subr.mxu0 0.0
    %2301 = vmatpush2.msra.mxu0 0.0
    %2302 = vmatprep.subr.mxu0 0.0
    %2303 = vmatpush2.msra.mxu0 0.0
    %2304 = vmatprep.subr.mxu0 0.0
    %2305 = vmatpush2.msra.mxu0 0.0
    %2306 = vmatprep.subr.mxu0 0.0
    %2307 = vmatpush2.msra.mxu0 0.0
    %2308 = vmatprep.subr.mxu0 0.0
    %2309 = vmatpush2.msra.mxu0 0.0
    %2310 = vmatprep.subr.mxu0 0.0
    %2311 = vmatpush2.msra.mxu0 0.0
    %2312 = vmatprep.mubr.f32.mxu0 0.0
    %2313 = vmatmul.mubr.f32.gmra.mxu0 %v2237
    %v2314 = vpop.f32.mrf.mxu0
    %v2315 = vadd.f32 0.0, %v2314
    %v2316 = vpop.f32.mrf.mxu0
    %2317 = vmatprep.mubr.f32.mxu0 0.0
    %2318 = vmatmul.mubr.f32.gmra.mxu0 %v2240
    %v2319 = vpop.f32.mrf.mxu0
    %v2320 = vadd.f32 0.0, %v2319
    %v2321 = vpop.f32.mrf.mxu0
    %2322 = vmatprep.mubr.f32.mxu0 0.0
    %2323 = vmatmul.mubr.f32.gmra.mxu0 %v2243
    %v2324 = vpop.f32.mrf.mxu0
    %v2325 = vadd.f32 0.0, %v2324
    %v2326 = vpop.f32.mrf.mxu0
    %2327 = vmatprep.mubr.f32.mxu0 0.0
    %2328 = vmatmul.mubr.f32.gmra.mxu0 %v2246
    %v2329 = vpop.f32.mrf.mxu0
    %v2330 = vadd.f32 0.0, %v2329
    %v2331 = vpop.f32.mrf.mxu0
    %2332 = vdwg.mxu0
    %2334 = vrot.lane.b32.xlu0 %v2320, 8
    %v2335 = vpop.permute.xlu0 %2334
    %2338 = vrot.lane.b32.xlu0 %v2325, 16
    %v2339 = vpop.permute.xlu0 %2338
    %2342 = vrot.lane.b32.xlu0 %v2330, 24
    %v2343 = vpop.permute.xlu0 %2342
    %v2345 = vsel %vm2066, %v2315, %v2335
    %v2346 = vsel %vm325, %v2345, %v2339
    %vm2347 = vcmask 195584
    %v2348 = vsel %vm2347, %v2346, %v2343
    %v2349 = vld [vmem:[%s7] sm:$0xff]
    %v2350 = vld [vmem:[%s7 + $0x8] sm:$0xff]
    %v2351 = vld [vmem:[%s7 + $0x10] sm:$0xff]
    %v2352 = vld [vmem:[%s7 + $0x18] sm:$0xff]
    %v2353 = vld [vmem:[%s8] sm:$0x1]
    %v2355 = vlaneseq
    %v2356 = vshrl.u32 %v2355, 7
    %v2357 = vsub.s32 0, %v2356
    %v2358 = vrot.slane %v2353, %v2357
    %v2361 = vsel %vm1977, %v2348, 0
    %2363 = vmatprep.subr.mxu0 0.0
    %2364 = vmatpush1.msra.mxu0 0.0
    %2365 = vmatprep.subr.mxu0 0.0
    %2366 = vmatpush1.msra.mxu0 0.0
    %2367 = vmatprep.subr.mxu0 0.0
    %2368 = vmatpush1.msra.mxu0 0.0
    %2369 = vmatprep.subr.mxu0 0.0
    %2370 = vmatpush1.msra.mxu0 0.0
    %2371 = vmatprep.subr.mxu0 0.0
    %2372 = vmatpush1.msra.mxu0 0.0
    %2373 = vmatprep.subr.mxu0 0.0
    %2374 = vmatpush1.msra.mxu0 0.0
    %2375 = vmatprep.subr.mxu0 0.0
    %2376 = vmatpush1.msra.mxu0 0.0
    %2377 = vmatprep.subr.mxu0 0.0
    %2378 = vmatpush1.msra.mxu0 0.0
    %2379 = vmatprep.subr.mxu0 0.0
    %2380 = vmatpush1.msra.mxu0 0.0
    %2381 = vmatprep.subr.mxu0 0.0
    %2382 = vmatpush1.msra.mxu0 0.0
    %2383 = vmatprep.subr.mxu0 0.0
    %2384 = vmatpush1.msra.mxu0 0.0
    %2385 = vmatprep.subr.mxu0 0.0
    %2386 = vmatpush1.msra.mxu0 0.0
    %2387 = vmatprep.subr.mxu0 0.0
    %2388 = vmatpush1.msra.mxu0 %v2352
    %2389 = vmatprep.subr.mxu0 0.0
    %2390 = vmatpush1.msra.mxu0 %v2351
    %2391 = vmatprep.subr.mxu0 0.0
    %2392 = vmatpush1.msra.mxu0 %v2350
    %2393 = vmatprep.subr.mxu0 0.0
    %2394 = vmatpush1.msra.mxu0 %v2349
    %2395 = vmatprep.subr.mxu0 0.0
    %2396 = vmatpush2.msra.mxu0 0.0
    %2397 = vmatprep.subr.mxu0 0.0
    %2398 = vmatpush2.msra.mxu0 0.0
    %2399 = vmatprep.subr.mxu0 0.0
    %2400 = vmatpush2.msra.mxu0 0.0
    %2401 = vmatprep.subr.mxu0 0.0
    %2402 = vmatpush2.msra.mxu0 0.0
    %2403 = vmatprep.subr.mxu0 0.0
    %2404 = vmatpush2.msra.mxu0 0.0
    %2405 = vmatprep.subr.mxu0 0.0
    %2406 = vmatpush2.msra.mxu0 0.0
    %2407 = vmatprep.subr.mxu0 0.0
    %2408 = vmatpush2.msra.mxu0 0.0
    %2409 = vmatprep.subr.mxu0 0.0
    %2410 = vmatpush2.msra.mxu0 0.0
    %2411 = vmatprep.subr.mxu0 0.0
    %2412 = vmatpush2.msra.mxu0 0.0
    %2413 = vmatprep.subr.mxu0 0.0
    %2414 = vmatpush2.msra.mxu0 0.0
    %2415 = vmatprep.subr.mxu0 0.0
    %2416 = vmatpush2.msra.mxu0 0.0
    %2417 = vmatprep.subr.mxu0 0.0
    %2418 = vmatpush2.msra.mxu0 0.0
    %2419 = vmatprep.subr.mxu0 0.0
    %2420 = vmatpush2.msra.mxu0 0.0
    %2421 = vmatprep.subr.mxu0 0.0
    %2422 = vmatpush2.msra.mxu0 0.0
    %2423 = vmatprep.subr.mxu0 0.0
    %2424 = vmatpush2.msra.mxu0 0.0
    %2425 = vmatprep.subr.mxu0 0.0
    %2426 = vmatpush2.msra.mxu0 0.0
    %2427 = vmatprep.mubr.f32.mxu0 0.0
    %2428 = vmatmul.mubr.f32.gmra.mxu0 %v2361
    %v2429 = vpop.f32.mrf.mxu0
    %v2430 = vadd.f32 %v2358, %v2429
    %v2431 = vpop.f32.mrf.mxu0
    %2432 = vdwg.mxu0
    %v2433 = vadd.f32 %v1961, %v2430
    %v2434 = vld [vmem:[%s9] sm:$0x1]
    %v2435 = vld [vmem:[%s10] sm:$0x1]
    %v2436 = vsel %vm1977, %v2433, 0.0
    %2437 = vadd.xlane.f32.xlu0 %v2436
    %v2438 = vpop.xlane.xlu0 %2437
    %v2439 = vrcp.pop 32.0
    %v2440 = vmul.f32 %v2438, %v2439
    %v2441 = vsub.f32 %v2433, %v2440
    %v2442 = vmul.f32 %v2441, %v2441
    %v2443 = vsel %vm1977, %v2442, 0.0
    %2444 = vadd.xlane.f32.xlu0 %v2443
    %v2445 = vpop.xlane.xlu0 %2444
    %v2446 = vmul.f32 %v2445, %v2439
    %v2447 = vadd.f32 %v2446, 1e-05
    %v2448 = vrsqrt.pop %v2447
    %v2449 = vmul.f32 %v2441, %v2448
    %v2451 = vlaneseq
    %v2452 = vshrl.u32 %v2451, 7
    %v2453 = vsub.s32 0, %v2452
    %v2454 = vrot.slane %v2434, %v2453
    %v2456 = vmul.f32 %v2449, %v2454
    %v2458 = vlaneseq
    %v2459 = vshrl.u32 %v2458, 7
    %v2460 = vsub.s32 0, %v2459
    %v2461 = vrot.slane %v2435, %v2460
    %v2463 = vadd.f32 %v2456, %v2461
    %v2464 = vld [vmem:[%s11] sm:$0xff]
    %v2465 = vld [vmem:[%s11 + $0x8] sm:$0xff]
    %v2466 = vld [vmem:[%s11 + $0x10] sm:$0xff]
    %v2467 = vld [vmem:[%s11 + $0x18] sm:$0xff]
    %v2468 = vld [vmem:[%s12] sm:$0x1]
    %v2470 = vlaneseq
    %v2471 = vshrl.u32 %v2470, 7
    %v2472 = vsub.s32 0, %v2471
    %v2473 = vrot.slane %v2468, %v2472
    %v2476 = vsel %vm1977, %v2463, 0
    %2478 = vmatprep.subr.mxu0 0.0
    %2479 = vmatpush1.msra.mxu0 0.0
    %2480 = vmatprep.subr.mxu0 0.0
    %2481 = vmatpush1.msra.mxu0 0.0
    %2482 = vmatprep.subr.mxu0 0.0
    %2483 = vmatpush1.msra.mxu0 0.0
    %2484 = vmatprep.subr.mxu0 0.0
    %2485 = vmatpush1.msra.mxu0 0.0
    %2486 = vmatprep.subr.mxu0 0.0
    %2487 = vmatpush1.msra.mxu0 0.0
    %2488 = vmatprep.subr.mxu0 0.0
    %2489 = vmatpush1.msra.mxu0 0.0
    %2490 = vmatprep.subr.mxu0 0.0
    %2491 = vmatpush1.msra.mxu0 0.0
    %2492 = vmatprep.subr.mxu0 0.0
    %2493 = vmatpush1.msra.mxu0 0.0
    %2494 = vmatprep.subr.mxu0 0.0
    %2495 = vmatpush1.msra.mxu0 0.0
    %2496 = vmatprep.subr.mxu0 0.0
    %2497 = vmatpush1.msra.mxu0 0.0
    %2498 = vmatprep.subr.mxu0 0.0
    %2499 = vmatpush1.msra.mxu0 0.0
    %2500 = vmatprep.subr.mxu0 0.0
    %2501 = vmatpush1.msra.mxu0 0.0
    %2502 = vmatprep.subr.mxu0 0.0
    %2503 = vmatpush1.msra.mxu0 %v2467
    %2504 = vmatprep.subr.mxu0 0.0
    %2505 = vmatpush1.msra.mxu0 %v2466
    %2506 = vmatprep.subr.mxu0 0.0
    %2507 = vmatpush1.msra.mxu0 %v2465
    %2508 = vmatprep.subr.mxu0 0.0
    %2509 = vmatpush1.msra.mxu0 %v2464
    %2510 = vmatprep.subr.mxu0 0.0
    %2511 = vmatpush2.msra.mxu0 0.0
    %2512 = vmatprep.subr.mxu0 0.0
    %2513 = vmatpush2.msra.mxu0 0.0
    %2514 = vmatprep.subr.mxu0 0.0
    %2515 = vmatpush2.msra.mxu0 0.0
    %2516 = vmatprep.subr.mxu0 0.0
    %2517 = vmatpush2.msra.mxu0 0.0
    %2518 = vmatprep.subr.mxu0 0.0
    %2519 = vmatpush2.msra.mxu0 0.0
    %2520 = vmatprep.subr.mxu0 0.0
    %2521 = vmatpush2.msra.mxu0 0.0
    %2522 = vmatprep.subr.mxu0 0.0
    %2523 = vmatpush2.msra.mxu0 0.0
    %2524 = vmatprep.subr.mxu0 0.0
    %2525 = vmatpush2.msra.mxu0 0.0
    %2526 = vmatprep.subr.mxu0 0.0
    %2527 = vmatpush2.msra.mxu0 0.0
    %2528 = vmatprep.subr.mxu0 0.0
    %2529 = vmatpush2.msra.mxu0 0.0
    %2530 = vmatprep.subr.mxu0 0.0
    %2531 = vmatpush2.msra.mxu0 0.0
    %2532 = vmatprep.subr.mxu0 0.0
    %2533 = vmatpush2.msra.mxu0 0.0
    %2534 = vmatprep.subr.mxu0 0.0
    %2535 = vmatpush2.msra.mxu0 0.0
    %2536 = vmatprep.subr.mxu0 0.0
    %2537 = vmatpush2.msra.mxu0 0.0
    %2538 = vmatprep.subr.mxu0 0.0
    %2539 = vmatpush2.msra.mxu0 0.0
    %2540 = vmatprep.subr.mxu0 0.0
    %2541 = vmatpush2.msra.mxu0 0.0
    %2542 = vmatprep.mubr.f32.mxu0 0.0
    %2543 = vmatmul.mubr.f32.gmra.mxu0 %v2476
    %v2544 = vpop.f32.mrf.mxu0
    %v2545 = vadd.f32 %v2473, %v2544
    %v2546 = vpop.f32.mrf.mxu0
    %2547 = vdwg.mxu0
    %v2548 = vmax.f32 %v2545, 0.0
    %v2549 = vld [vmem:[%s13] sm:$0xff]
    %v2550 = vld [vmem:[%s13 + $0x8] sm:$0xff]
    %v2551 = vld [vmem:[%s13 + $0x10] sm:$0xff]
    %v2552 = vld [vmem:[%s13 + $0x18] sm:$0xff]
    %v2553 = vld [vmem:[%s13 + $0x20] sm:$0xff]
    %v2554 = vld [vmem:[%s13 + $0x28] sm:$0xff]
    %v2555 = vld [vmem:[%s13 + $0x30] sm:$0xff]
    %v2556 = vld [vmem:[%s13 + $0x38] sm:$0xff]
    %v2557 = vld [vmem:[#allocation6] sm:$0x1]
    %v2559 = vlaneseq
    %v2560 = vshrl.u32 %v2559, 7
    %v2561 = vsub.s32 0, %v2560
    %v2562 = vrot.slane %v2557, %v2561
    %v2565 = vsel %vm305, %v2548, 0
    %2567 = vmatprep.subr.mxu0 0.0
    %2568 = vmatpush1.msra.mxu0 0.0
    %2569 = vmatprep.subr.mxu0 0.0
    %2570 = vmatpush1.msra.mxu0 0.0
    %2571 = vmatprep.subr.mxu0 0.0
    %2572 = vmatpush1.msra.mxu0 0.0
    %2573 = vmatprep.subr.mxu0 0.0
    %2574 = vmatpush1.msra.mxu0 0.0
    %2575 = vmatprep.subr.mxu0 0.0
    %2576 = vmatpush1.msra.mxu0 0.0
    %2577 = vmatprep.subr.mxu0 0.0
    %2578 = vmatpush1.msra.mxu0 0.0
    %2579 = vmatprep.subr.mxu0 0.0
    %2580 = vmatpush1.msra.mxu0 0.0
    %2581 = vmatprep.subr.mxu0 0.0
    %2582 = vmatpush1.msra.mxu0 0.0
    %2583 = vmatprep.subr.mxu0 0.0
    %2584 = vmatpush1.msra.mxu0 %v2556
    %2585 = vmatprep.subr.mxu0 0.0
    %2586 = vmatpush1.msra.mxu0 %v2555
    %2587 = vmatprep.subr.mxu0 0.0
    %2588 = vmatpush1.msra.mxu0 %v2554
    %2589 = vmatprep.subr.mxu0 0.0
    %2590 = vmatpush1.msra.mxu0 %v2553
    %2591 = vmatprep.subr.mxu0 0.0
    %2592 = vmatpush1.msra.mxu0 %v2552
    %2593 = vmatprep.subr.mxu0 0.0
    %2594 = vmatpush1.msra.mxu0 %v2551
    %2595 = vmatprep.subr.mxu0 0.0
    %2596 = vmatpush1.msra.mxu0 %v2550
    %2597 = vmatprep.subr.mxu0 0.0
    %2598 = vmatpush1.msra.mxu0 %v2549
    %2599 = vmatprep.subr.mxu0 0.0
    %2600 = vmatpush2.msra.mxu0 0.0
    %2601 = vmatprep.subr.mxu0 0.0
    %2602 = vmatpush2.msra.mxu0 0.0
    %2603 = vmatprep.subr.mxu0 0.0
    %2604 = vmatpush2.msra.mxu0 0.0
    %2605 = vmatprep.subr.mxu0 0.0
    %2606 = vmatpush2.msra.mxu0 0.0
    %2607 = vmatprep.subr.mxu0 0.0
    %2608 = vmatpush2.msra.mxu0 0.0
    %2609 = vmatprep.subr.mxu0 0.0
    %2610 = vmatpush2.msra.mxu0 0.0
    %2611 = vmatprep.subr.mxu0 0.0
    %2612 = vmatpush2.msra.mxu0 0.0
    %2613 = vmatprep.subr.mxu0 0.0
    %2614 = vmatpush2.msra.mxu0 0.0
    %2615 = vmatprep.subr.mxu0 0.0
    %2616 = vmatpush2.msra.mxu0 0.0
    %2617 = vmatprep.subr.mxu0 0.0
    %2618 = vmatpush2.msra.mxu0 0.0
    %2619 = vmatprep.subr.mxu0 0.0
    %2620 = vmatpush2.msra.mxu0 0.0
    %2621 = vmatprep.subr.mxu0 0.0
    %2622 = vmatpush2.msra.mxu0 0.0
    %2623 = vmatprep.subr.mxu0 0.0
    %2624 = vmatpush2.msra.mxu0 0.0
    %2625 = vmatprep.subr.mxu0 0.0
    %2626 = vmatpush2.msra.mxu0 0.0
    %2627 = vmatprep.subr.mxu0 0.0
    %2628 = vmatpush2.msra.mxu0 0.0
    %2629 = vmatprep.subr.mxu0 0.0
    %2630 = vmatpush2.msra.mxu0 0.0
    %2631 = vmatprep.mubr.f32.mxu0 0.0
    %2632 = vmatmul.mubr.f32.gmra.mxu0 %v2565
    %v2633 = vpop.f32.mrf.mxu0
    %v2634 = vadd.f32 %v2562, %v2633
    %v2635 = vpop.f32.mrf.mxu0
    %2636 = vdwg.mxu0
    %v2637 = vadd.f32 %v2463, %v2634
    %v2638 = vld [vmem:[#allocation8] sm:$0x1]
    %v2639 = vld [vmem:[#allocation9] sm:$0x1]
    %v2640 = vsel %vm1977, %v2637, 0.0
    %2641 = vadd.xlane.f32.xlu0 %v2640
    %v2642 = vpop.xlane.xlu0 %2641
    %v2643 = vmul.f32 %v2642, %v2439
    %v2644 = vsub.f32 %v2637, %v2643
    %v2645 = vmul.f32 %v2644, %v2644
    %v2646 = vsel %vm1977, %v2645, 0.0
    %2647 = vadd.xlane.f32.xlu0 %v2646
    %v2648 = vpop.xlane.xlu0 %2647
    %v2649 = vmul.f32 %v2648, %v2439
    %v2650 = vadd.f32 %v2649, 1e-05
    %v2651 = vrsqrt.pop %v2650
    %v2652 = vmul.f32 %v2644, %v2651
    %v2654 = vlaneseq
    %v2655 = vshrl.u32 %v2654, 7
    %v2656 = vsub.s32 0, %v2655
    %v2657 = vrot.slane %v2638, %v2656
    %v2659 = vmul.f32 %v2652, %v2657
    %v2661 = vlaneseq
    %v2662 = vshrl.u32 %v2661, 7
    %v2663 = vsub.s32 0, %v2662
    %v2664 = vrot.slane %v2639, %v2663
    %v2666 = vadd.f32 %v2659, %v2664
    %s2667 = scalar_lea.vmem %s5, 32
    %v2668 = vld [vmem:[%s2667] sm:$0xff]
    %v2669 = vld [vmem:[%s2667 + $0x8] sm:$0xff]
    %v2670 = vld [vmem:[%s2667 + $0x10] sm:$0xff]
    %v2671 = vld [vmem:[%s2667 + $0x18] sm:$0xff]
    %s2672 = scalar_lea.vmem %s6, 1
    %v2673 = vld [vmem:[%s2672] sm:$0x1]
    %v2675 = vlaneseq
    %v2676 = vshrl.u32 %v2675, 7
    %v2677 = vsub.s32 0, %v2676
    %v2678 = vrot.slane %v2673, %v2677
    %v2681 = vsel %vm1977, %v2666, 0
    %2683 = vmatprep.subr.mxu0 0.0
    %2684 = vmatpush1.msra.mxu0 0.0
    %2685 = vmatprep.subr.mxu0 0.0
    %2686 = vmatpush1.msra.mxu0 0.0
    %2687 = vmatprep.subr.mxu0 0.0
    %2688 = vmatpush1.msra.mxu0 0.0
    %2689 = vmatprep.subr.mxu0 0.0
    %2690 = vmatpush1.msra.mxu0 0.0
    %2691 = vmatprep.subr.mxu0 0.0
    %2692 = vmatpush1.msra.mxu0 0.0
    %2693 = vmatprep.subr.mxu0 0.0
    %2694 = vmatpush1.msra.mxu0 0.0
    %2695 = vmatprep.subr.mxu0 0.0
    %2696 = vmatpush1.msra.mxu0 0.0
    %2697 = vmatprep.subr.mxu0 0.0
    %2698 = vmatpush1.msra.mxu0 0.0
    %2699 = vmatprep.subr.mxu0 0.0
    %2700 = vmatpush1.msra.mxu0 0.0
    %2701 = vmatprep.subr.mxu0 0.0
    %2702 = vmatpush1.msra.mxu0 0.0
    %2703 = vmatprep.subr.mxu0 0.0
    %2704 = vmatpush1.msra.mxu0 0.0
    %2705 = vmatprep.subr.mxu0 0.0
    %2706 = vmatpush1.msra.mxu0 0.0
    %2707 = vmatprep.subr.mxu0 0.0
    %2708 = vmatpush1.msra.mxu0 %v2671
    %2709 = vmatprep.subr.mxu0 0.0
    %2710 = vmatpush1.msra.mxu0 %v2670
    %2711 = vmatprep.subr.mxu0 0.0
    %2712 = vmatpush1.msra.mxu0 %v2669
    %2713 = vmatprep.subr.mxu0 0.0
    %2714 = vmatpush1.msra.mxu0 %v2668
    %2715 = vmatprep.subr.mxu0 0.0
    %2716 = vmatpush2.msra.mxu0 0.0
    %2717 = vmatprep.subr.mxu0 0.0
    %2718 = vmatpush2.msra.mxu0 0.0
    %2719 = vmatprep.subr.mxu0 0.0
    %2720 = vmatpush2.msra.mxu0 0.0
    %2721 = vmatprep.subr.mxu0 0.0
    %2722 = vmatpush2.msra.mxu0 0.0
    %2723 = vmatprep.subr.mxu0 0.0
    %2724 = vmatpush2.msra.mxu0 0.0
    %2725 = vmatprep.subr.mxu0 0.0
    %2726 = vmatpush2.msra.mxu0 0.0
    %2727 = vmatprep.subr.mxu0 0.0
    %2728 = vmatpush2.msra.mxu0 0.0
    %2729 = vmatprep.subr.mxu0 0.0
    %2730 = vmatpush2.msra.mxu0 0.0
    %2731 = vmatprep.subr.mxu0 0.0
    %2732 = vmatpush2.msra.mxu0 0.0
    %2733 = vmatprep.subr.mxu0 0.0
    %2734 = vmatpush2.msra.mxu0 0.0
    %2735 = vmatprep.subr.mxu0 0.0
    %2736 = vmatpush2.msra.mxu0 0.0
    %2737 = vmatprep.subr.mxu0 0.0
    %2738 = vmatpush2.msra.mxu0 0.0
    %2739 = vmatprep.subr.mxu0 0.0
    %2740 = vmatpush2.msra.mxu0 0.0
    %2741 = vmatprep.subr.mxu0 0.0
    %2742 = vmatpush2.msra.mxu0 0.0
    %2743 = vmatprep.subr.mxu0 0.0
    %2744 = vmatpush2.msra.mxu0 0.0
    %2745 = vmatprep.subr.mxu0 0.0
    %2746 = vmatpush2.msra.mxu0 0.0
    %2747 = vmatprep.mubr.f32.mxu0 0.0
    %2748 = vmatmul.mubr.f32.gmra.mxu0 %v2681
    %v2749 = vpop.f32.mrf.mxu0
    %v2750 = vadd.f32 %v2678, %v2749
    %v2751 = vpop.f32.mrf.mxu0
    %2752 = vdwg.mxu0
    %2754 = vrot.lane.b32.xlu0 %v2750, 120
    %v2755 = vpop.permute.xlu0 %2754
    %2756 = vrot.lane.b32.xlu0 %v2750, 112
    %v2757 = vpop.permute.xlu0 %2756
    %2758 = vrot.lane.b32.xlu0 %v2750, 104
    %v2759 = vpop.permute.xlu0 %2758
    %2760 = vrot.lane.b32.xlu0 %v2750, 96
    %v2761 = vpop.permute.xlu0 %2760
    %2762 = vrot.lane.b32.xlu0 %v2755, 96
    %v2763 = vpop.permute.xlu0 %2762
    %2764 = vrot.lane.b32.xlu0 %v2757, 96
    %v2765 = vpop.permute.xlu0 %2764
    %2766 = vrot.lane.b32.xlu0 %v2759, 96
    %v2767 = vpop.permute.xlu0 %2766
    %v2768 = vsel %vm2066, %v2750, 0
    %v2770 = vsel %vm2066, %v2755, 0
    %v2772 = vsel %vm2066, %v2757, 0
    %v2774 = vsel %vm2066, %v2759, 0
    %v2776 = vsel %vm2066, %v2761, 0
    %v2778 = vsel %vm2066, %v2763, 0
    %v2780 = vsel %vm2066, %v2765, 0
    %v2782 = vsel %vm2066, %v2767, 0
    %2784 = vmatprep.subr.mxu0 0.0
    %2785 = vmatpush1.xpose.msra.mxu0 0.0
    %2786 = vmatprep.subr.mxu0 0.0
    %2787 = vmatpush1.xpose.msra.mxu0 0.0
    %2788 = vmatprep.subr.mxu0 0.0
    %2789 = vmatpush1.xpose.msra.mxu0 0.0
    %2790 = vmatprep.subr.mxu0 0.0
    %2791 = vmatpush1.xpose.msra.mxu0 0.0
    %2792 = vmatprep.subr.mxu0 0.0
    %2793 = vmatpush1.xpose.msra.mxu0 0.0
    %2794 = vmatprep.subr.mxu0 0.0
    %2795 = vmatpush1.xpose.msra.mxu0 0.0
    %2796 = vmatprep.subr.mxu0 0.0
    %2797 = vmatpush1.xpose.msra.mxu0 0.0
    %2798 = vmatprep.subr.mxu0 0.0
    %2799 = vmatpush1.xpose.msra.mxu0 0.0
    %2800 = vmatprep.subr.mxu0 0.0
    %2801 = vmatpush1.xpose.msra.mxu0 0.0
    %2802 = vmatprep.subr.mxu0 0.0
    %2803 = vmatpush1.xpose.msra.mxu0 0.0
    %2804 = vmatprep.subr.mxu0 0.0
    %2805 = vmatpush1.xpose.msra.mxu0 0.0
    %2806 = vmatprep.subr.mxu0 0.0
    %2807 = vmatpush1.xpose.msra.mxu0 0.0
    %2808 = vmatprep.subr.mxu0 0.0
    %2809 = vmatpush1.xpose.msra.mxu0 %v2782
    %2810 = vmatprep.subr.mxu0 0.0
    %2811 = vmatpush1.xpose.msra.mxu0 %v2780
    %2812 = vmatprep.subr.mxu0 0.0
    %2813 = vmatpush1.xpose.msra.mxu0 %v2778
    %2814 = vmatprep.subr.mxu0 0.0
    %2815 = vmatpush1.xpose.msra.mxu0 %v2776
    %2816 = vmatprep.subr.mxu0 0.0
    %2817 = vmatpush2.xpose.msra.mxu0 0.0
    %2818 = vmatprep.subr.mxu0 0.0
    %2819 = vmatpush2.xpose.msra.mxu0 0.0
    %2820 = vmatprep.subr.mxu0 0.0
    %2821 = vmatpush2.xpose.msra.mxu0 0.0
    %2822 = vmatprep.subr.mxu0 0.0
    %2823 = vmatpush2.xpose.msra.mxu0 0.0
    %2824 = vmatprep.subr.mxu0 0.0
    %2825 = vmatpush2.xpose.msra.mxu0 0.0
    %2826 = vmatprep.subr.mxu0 0.0
    %2827 = vmatpush2.xpose.msra.mxu0 0.0
    %2828 = vmatprep.subr.mxu0 0.0
    %2829 = vmatpush2.xpose.msra.mxu0 0.0
    %2830 = vmatprep.subr.mxu0 0.0
    %2831 = vmatpush2.xpose.msra.mxu0 0.0
    %2832 = vmatprep.subr.mxu0 0.0
    %2833 = vmatpush2.xpose.msra.mxu0 0.0
    %2834 = vmatprep.subr.mxu0 0.0
    %2835 = vmatpush2.xpose.msra.mxu0 0.0
    %2836 = vmatprep.subr.mxu0 0.0
    %2837 = vmatpush2.xpose.msra.mxu0 0.0
    %2838 = vmatprep.subr.mxu0 0.0
    %2839 = vmatpush2.xpose.msra.mxu0 0.0
    %2840 = vmatprep.subr.mxu0 0.0
    %2841 = vmatpush2.xpose.msra.mxu0 0.0
    %2842 = vmatprep.subr.mxu0 0.0
    %2843 = vmatpush2.xpose.msra.mxu0 0.0
    %2844 = vmatprep.subr.mxu0 0.0
    %2845 = vmatpush2.xpose.msra.mxu0 0.0
    %2846 = vmatprep.subr.mxu0 0.0
    %2847 = vmatpush2.xpose.msra.mxu0 0.0
    %2848 = vmatprep.mubr.f32.mxu0 0.0
    %2849 = vmatmul.mubr.f32.gmra.mxu0 %v2768
    %v2850 = vpop.f32.mrf.mxu0
    %v2851 = vadd.f32 %v1962, %v2850
    %v2852 = vpop.f32.mrf.mxu0
    %2853 = vmatprep.mubr.f32.mxu0 0.0
    %2854 = vmatmul.mubr.f32.gmra.mxu0 %v2770
    %v2855 = vpop.f32.mrf.mxu0
    %v2856 = vadd.f32 %v1963, %v2855
    %v2857 = vpop.f32.mrf.mxu0
    %2858 = vmatprep.mubr.f32.mxu0 0.0
    %2859 = vmatmul.mubr.f32.gmra.mxu0 %v2772
    %v2860 = vpop.f32.mrf.mxu0
    %v2861 = vadd.f32 %v1964, %v2860
    %v2862 = vpop.f32.mrf.mxu0
    %2863 = vmatprep.mubr.f32.mxu0 0.0
    %2864 = vmatmul.mubr.f32.gmra.mxu0 %v2774
    %v2865 = vpop.f32.mrf.mxu0
    %v2866 = vadd.f32 %v1965, %v2865
    %v2867 = vpop.f32.mrf.mxu0
    %2868 = vdwg.mxu0
    %v2869 = vsel %vm1977, %v2851, -inf
    %2870 = vmax.xlane.f32.xlu0 %v2869
    %v2871 = vpop.xlane.xlu0 %2870
    %v2872 = vsel %vm1977, %v2856, -inf
    %2873 = vmax.xlane.f32.xlu0 %v2872
    %v2874 = vpop.xlane.xlu0 %2873
    %v2875 = vsel %vm1977, %v2861, -inf
    %2876 = vmax.xlane.f32.xlu0 %v2875
    %v2877 = vpop.xlane.xlu0 %2876
    %v2878 = vsel %vm1977, %v2866, -inf
    %2879 = vmax.xlane.f32.xlu0 %v2878
    %v2880 = vpop.xlane.xlu0 %2879
    %v2881 = vsub.f32 %v2851, %v2871
    %v2882 = vsub.f32 %v2856, %v2874
    %v2883 = vsub.f32 %v2861, %v2877
    %v2884 = vsub.f32 %v2866, %v2880
    %v2885 = vmul.f32 %v2881, 1.442695
    %v2886 = vpow.pop %v2885
    %v2887 = vmul.f32 %v2882, 1.442695
    %v2888 = vpow.pop %v2887
    %v2889 = vmul.f32 %v2883, 1.442695
    %v2890 = vpow.pop %v2889
    %v2891 = vmul.f32 %v2884, 1.442695
    %v2892 = vpow.pop %v2891
    %v2893 = vsel %vm1977, %v2886, 0.0
    %2894 = vadd.xlane.f32.xlu0 %v2893
    %v2895 = vpop.xlane.xlu0 %2894
    %v2896 = vsel %vm1977, %v2888, 0.0
    %2897 = vadd.xlane.f32.xlu0 %v2896
    %v2898 = vpop.xlane.xlu0 %2897
    %v2899 = vsel %vm1977, %v2890, 0.0
    %2900 = vadd.xlane.f32.xlu0 %v2899
    %v2901 = vpop.xlane.xlu0 %2900
    %v2902 = vsel %vm1977, %v2892, 0.0
    %2903 = vadd.xlane.f32.xlu0 %v2902
    %v2904 = vpop.xlane.xlu0 %2903
    %v2905 = vrcp.pop %v2895
    %v2906 = vrcp.pop %v2898
    %v2907 = vrcp.pop %v2901
    %v2908 = vrcp.pop %v2904
    %v2909 = vmul.f32 %v2895, %v2905
    %v2910 = vmul.f32 %v2898, %v2906
    %v2911 = vmul.f32 %v2901, %v2907
    %v2912 = vmul.f32 %v2904, %v2908
    %v2913 = vsub.f32 2.0, %v2909
    %v2914 = vsub.f32 2.0, %v2910
    %v2915 = vsub.f32 2.0, %v2911
    %v2916 = vsub.f32 2.0, %v2912
    %v2917 = vmul.f32 %v2905, %v2913
    %v2918 = vmul.f32 %v2906, %v2914
    %v2919 = vmul.f32 %v2907, %v2915
    %v2920 = vmul.f32 %v2908, %v2916
    %v2921 = vmul.f32 %v2886, %v2917
    %v2922 = vmul.f32 %v2888, %v2918
    %v2923 = vmul.f32 %v2890, %v2919
    %v2924 = vmul.f32 %v2892, %v2920
    %2925 = vrot.lane.b32.xlu0 %v2750, 64
    %v2926 = vpop.permute.xlu0 %2925
    %2927 = vrot.lane.b32.xlu0 %v2755, 64
    %v2928 = vpop.permute.xlu0 %2927
    %2929 = vrot.lane.b32.xlu0 %v2757, 64
    %v2930 = vpop.permute.xlu0 %2929
    %2931 = vrot.lane.b32.xlu0 %v2759, 64
    %v2932 = vpop.permute.xlu0 %2931
    %v2938 = vsel %vm1977, %v2921, 0
    %v2941 = vsel %vm1977, %v2922, 0
    %v2944 = vsel %vm1977, %v2923, 0
    %v2947 = vsel %vm1977, %v2924, 0
    %2949 = vmatprep.subr.mxu0 0.0
    %2950 = vmatpush1.msra.mxu0 0.0
    %2951 = vmatprep.subr.mxu0 0.0
    %2952 = vmatpush1.msra.mxu0 0.0
    %2953 = vmatprep.subr.mxu0 0.0
    %2954 = vmatpush1.msra.mxu0 0.0
    %2955 = vmatprep.subr.mxu0 0.0
    %2956 = vmatpush1.msra.mxu0 0.0
    %2957 = vmatprep.subr.mxu0 0.0
    %2958 = vmatpush1.msra.mxu0 0.0
    %2959 = vmatprep.subr.mxu0 0.0
    %2960 = vmatpush1.msra.mxu0 0.0
    %2961 = vmatprep.subr.mxu0 0.0
    %2962 = vmatpush1.msra.mxu0 0.0
    %2963 = vmatprep.subr.mxu0 0.0
    %2964 = vmatpush1.msra.mxu0 0.0
    %2965 = vmatprep.subr.mxu0 0.0
    %2966 = vmatpush1.msra.mxu0 0.0
    %2967 = vmatprep.subr.mxu0 0.0
    %2968 = vmatpush1.msra.mxu0 0.0
    %2969 = vmatprep.subr.mxu0 0.0
    %2970 = vmatpush1.msra.mxu0 0.0
    %2971 = vmatprep.subr.mxu0 0.0
    %2972 = vmatpush1.msra.mxu0 0.0
    %2973 = vmatprep.subr.mxu0 0.0
    %2974 = vmatpush1.msra.mxu0 %v2932
    %2975 = vmatprep.subr.mxu0 0.0
    %2976 = vmatpush1.msra.mxu0 %v2930
    %2977 = vmatprep.subr.mxu0 0.0
    %2978 = vmatpush1.msra.mxu0 %v2928
    %2979 = vmatprep.subr.mxu0 0.0
    %2980 = vmatpush1.msra.mxu0 %v2926
    %2981 = vmatprep.subr.mxu0 0.0
    %2982 = vmatpush2.msra.mxu0 0.0
    %2983 = vmatprep.subr.mxu0 0.0
    %2984 = vmatpush2.msra.mxu0 0.0
    %2985 = vmatprep.subr.mxu0 0.0
    %2986 = vmatpush2.msra.mxu0 0.0
    %2987 = vmatprep.subr.mxu0 0.0
    %2988 = vmatpush2.msra.mxu0 0.0
    %2989 = vmatprep.subr.mxu0 0.0
    %2990 = vmatpush2.msra.mxu0 0.0
    %2991 = vmatprep.subr.mxu0 0.0
    %2992 = vmatpush2.msra.mxu0 0.0
    %2993 = vmatprep.subr.mxu0 0.0
    %2994 = vmatpush2.msra.mxu0 0.0
    %2995 = vmatprep.subr.mxu0 0.0
    %2996 = vmatpush2.msra.mxu0 0.0
    %2997 = vmatprep.subr.mxu0 0.0
    %2998 = vmatpush2.msra.mxu0 0.0
    %2999 = vmatprep.subr.mxu0 0.0
    %3000 = vmatpush2.msra.mxu0 0.0
    %3001 = vmatprep.subr.mxu0 0.0
    %3002 = vmatpush2.msra.mxu0 0.0
    %3003 = vmatprep.subr.mxu0 0.0
    %3004 = vmatpush2.msra.mxu0 0.0
    %3005 = vmatprep.subr.mxu0 0.0
    %3006 = vmatpush2.msra.mxu0 0.0
    %3007 = vmatprep.subr.mxu0 0.0
    %3008 = vmatpush2.msra.mxu0 0.0
    %3009 = vmatprep.subr.mxu0 0.0
    %3010 = vmatpush2.msra.mxu0 0.0
    %3011 = vmatprep.subr.mxu0 0.0
    %3012 = vmatpush2.msra.mxu0 0.0
    %3013 = vmatprep.mubr.f32.mxu0 0.0
    %3014 = vmatmul.mubr.f32.gmra.mxu0 %v2938
    %v3015 = vpop.f32.mrf.mxu0
    %v3016 = vadd.f32 0.0, %v3015
    %v3017 = vpop.f32.mrf.mxu0
    %3018 = vmatprep.mubr.f32.mxu0 0.0
    %3019 = vmatmul.mubr.f32.gmra.mxu0 %v2941
    %v3020 = vpop.f32.mrf.mxu0
    %v3021 = vadd.f32 0.0, %v3020
    %v3022 = vpop.f32.mrf.mxu0
    %3023 = vmatprep.mubr.f32.mxu0 0.0
    %3024 = vmatmul.mubr.f32.gmra.mxu0 %v2944
    %v3025 = vpop.f32.mrf.mxu0
    %v3026 = vadd.f32 0.0, %v3025
    %v3027 = vpop.f32.mrf.mxu0
    %3028 = vmatprep.mubr.f32.mxu0 0.0
    %3029 = vmatmul.mubr.f32.gmra.mxu0 %v2947
    %v3030 = vpop.f32.mrf.mxu0
    %v3031 = vadd.f32 0.0, %v3030
    %v3032 = vpop.f32.mrf.mxu0
    %3033 = vdwg.mxu0
    %3035 = vrot.lane.b32.xlu0 %v3021, 8
    %v3036 = vpop.permute.xlu0 %3035
    %3039 = vrot.lane.b32.xlu0 %v3026, 16
    %v3040 = vpop.permute.xlu0 %3039
    %3043 = vrot.lane.b32.xlu0 %v3031, 24
    %v3044 = vpop.permute.xlu0 %3043
    %v3046 = vsel %vm2066, %v3016, %v3036
    %v3047 = vsel %vm325, %v3046, %v3040
    %v3048 = vsel %vm2347, %v3047, %v3044
    %s3049 = scalar_lea.vmem %s7, 32
    %v3050 = vld [vmem:[%s3049] sm:$0xff]
    %v3051 = vld [vmem:[%s3049 + $0x8] sm:$0xff]
    %v3052 = vld [vmem:[%s3049 + $0x10] sm:$0xff]
    %v3053 = vld [vmem:[%s3049 + $0x18] sm:$0xff]
    %s3054 = scalar_lea.vmem %s8, 1
    %v3055 = vld [vmem:[%s3054] sm:$0x1]
    %v3057 = vlaneseq
    %v3058 = vshrl.u32 %v3057, 7
    %v3059 = vsub.s32 0, %v3058
    %v3060 = vrot.slane %v3055, %v3059
    %v3063 = vsel %vm1977, %v3048, 0
    %3065 = vmatprep.subr.mxu0 0.0
    %3066 = vmatpush1.msra.mxu0 0.0
    %3067 = vmatprep.subr.mxu0 0.0
    %3068 = vmatpush1.msra.mxu0 0.0
    %3069 = vmatprep.subr.mxu0 0.0
    %3070 = vmatpush1.msra.mxu0 0.0
    %3071 = vmatprep.subr.mxu0 0.0
    %3072 = vmatpush1.msra.mxu0 0.0
    %3073 = vmatprep.subr.mxu0 0.0
    %3074 = vmatpush1.msra.mxu0 0.0
    %3075 = vmatprep.subr.mxu0 0.0
    %3076 = vmatpush1.msra.mxu0 0.0
    %3077 = vmatprep.subr.mxu0 0.0
    %3078 = vmatpush1.msra.mxu0 0.0
    %3079 = vmatprep.subr.mxu0 0.0
    %3080 = vmatpush1.msra.mxu0 0.0
    %3081 = vmatprep.subr.mxu0 0.0
    %3082 = vmatpush1.msra.mxu0 0.0
    %3083 = vmatprep.subr.mxu0 0.0
    %3084 = vmatpush1.msra.mxu0 0.0
    %3085 = vmatprep.subr.mxu0 0.0
    %3086 = vmatpush1.msra.mxu0 0.0
    %3087 = vmatprep.subr.mxu0 0.0
    %3088 = vmatpush1.msra.mxu0 0.0
    %3089 = vmatprep.subr.mxu0 0.0
    %3090 = vmatpush1.msra.mxu0 %v3053
    %3091 = vmatprep.subr.mxu0 0.0
    %3092 = vmatpush1.msra.mxu0 %v3052
    %3093 = vmatprep.subr.mxu0 0.0
    %3094 = vmatpush1.msra.mxu0 %v3051
    %3095 = vmatprep.subr.mxu0 0.0
    %3096 = vmatpush1.msra.mxu0 %v3050
    %3097 = vmatprep.subr.mxu0 0.0
    %3098 = vmatpush2.msra.mxu0 0.0
    %3099 = vmatprep.subr.mxu0 0.0
    %3100 = vmatpush2.msra.mxu0 0.0
    %3101 = vmatprep.subr.mxu0 0.0
    %3102 = vmatpush2.msra.mxu0 0.0
    %3103 = vmatprep.subr.mxu0 0.0
    %3104 = vmatpush2.msra.mxu0 0.0
    %3105 = vmatprep.subr.mxu0 0.0
    %3106 = vmatpush2.msra.mxu0 0.0
    %3107 = vmatprep.subr.mxu0 0.0
    %3108 = vmatpush2.msra.mxu0 0.0
    %3109 = vmatprep.subr.mxu0 0.0
    %3110 = vmatpush2.msra.mxu0 0.0
    %3111 = vmatprep.subr.mxu0 0.0
    %3112 = vmatpush2.msra.mxu0 0.0
    %3113 = vmatprep.subr.mxu0 0.0
    %3114 = vmatpush2.msra.mxu0 0.0
    %3115 = vmatprep.subr.mxu0 0.0
    %3116 = vmatpush2.msra.mxu0 0.0
    %3117 = vmatprep.subr.mxu0 0.0
    %3118 = vmatpush2.msra.mxu0 0.0
    %3119 = vmatprep.subr.mxu0 0.0
    %3120 = vmatpush2.msra.mxu0 0.0
    %3121 = vmatprep.subr.mxu0 0.0
    %3122 = vmatpush2.msra.mxu0 0.0
    %3123 = vmatprep.subr.mxu0 0.0
    %3124 = vmatpush2.msra.mxu0 0.0
    %3125 = vmatprep.subr.mxu0 0.0
    %3126 = vmatpush2.msra.mxu0 0.0
    %3127 = vmatprep.subr.mxu0 0.0
    %3128 = vmatpush2.msra.mxu0 0.0
    %3129 = vmatprep.mubr.f32.mxu0 0.0
    %3130 = vmatmul.mubr.f32.gmra.mxu0 %v3063
    %v3131 = vpop.f32.mrf.mxu0
    %v3132 = vadd.f32 %v3060, %v3131
    %v3133 = vpop.f32.mrf.mxu0
    %3134 = vdwg.mxu0
    %v3135 = vadd.f32 %v2666, %v3132
    %s3136 = scalar_lea.vmem %s9, 1
    %v3137 = vld [vmem:[%s3136] sm:$0x1]
    %s3138 = scalar_lea.vmem %s10, 1
    %v3139 = vld [vmem:[%s3138] sm:$0x1]
    %v3140 = vsel %vm1977, %v3135, 0.0
    %3141 = vadd.xlane.f32.xlu0 %v3140
    %v3142 = vpop.xlane.xlu0 %3141
    %v3143 = vmul.f32 %v3142, %v2439
    %v3144 = vsub.f32 %v3135, %v3143
    %v3145 = vmul.f32 %v3144, %v3144
    %v3146 = vsel %vm1977, %v3145, 0.0
    %3147 = vadd.xlane.f32.xlu0 %v3146
    %v3148 = vpop.xlane.xlu0 %3147
    %v3149 = vmul.f32 %v3148, %v2439
    %v3150 = vadd.f32 %v3149, 1e-05
    %v3151 = vrsqrt.pop %v3150
    %v3152 = vmul.f32 %v3144, %v3151
    %v3154 = vlaneseq
    %v3155 = vshrl.u32 %v3154, 7
    %v3156 = vsub.s32 0, %v3155
    %v3157 = vrot.slane %v3137, %v3156
    %v3159 = vmul.f32 %v3152, %v3157
    %v3161 = vlaneseq
    %v3162 = vshrl.u32 %v3161, 7
    %v3163 = vsub.s32 0, %v3162
    %v3164 = vrot.slane %v3139, %v3163
    %v3166 = vadd.f32 %v3159, %v3164
    %s3167 = scalar_lea.vmem %s11, 32
    %v3168 = vld [vmem:[%s3167] sm:$0xff]
    %v3169 = vld [vmem:[%s3167 + $0x8] sm:$0xff]
    %v3170 = vld [vmem:[%s3167 + $0x10] sm:$0xff]
    %v3171 = vld [vmem:[%s3167 + $0x18] sm:$0xff]
    %s3172 = scalar_lea.vmem %s12, 1
    %v3173 = vld [vmem:[%s3172] sm:$0x1]
    %v3175 = vlaneseq
    %v3176 = vshrl.u32 %v3175, 7
    %v3177 = vsub.s32 0, %v3176
    %v3178 = vrot.slane %v3173, %v3177
    %v3181 = vsel %vm1977, %v3166, 0
    %3183 = vmatprep.subr.mxu0 0.0
    %3184 = vmatpush1.msra.mxu0 0.0
    %3185 = vmatprep.subr.mxu0 0.0
    %3186 = vmatpush1.msra.mxu0 0.0
    %3187 = vmatprep.subr.mxu0 0.0
    %3188 = vmatpush1.msra.mxu0 0.0
    %3189 = vmatprep.subr.mxu0 0.0
    %3190 = vmatpush1.msra.mxu0 0.0
    %3191 = vmatprep.subr.mxu0 0.0
    %3192 = vmatpush1.msra.mxu0 0.0
    %3193 = vmatprep.subr.mxu0 0.0
    %3194 = vmatpush1.msra.mxu0 0.0
    %3195 = vmatprep.subr.mxu0 0.0
    %3196 = vmatpush1.msra.mxu0 0.0
    %3197 = vmatprep.subr.mxu0 0.0
    %3198 = vmatpush1.msra.mxu0 0.0
    %3199 = vmatprep.subr.mxu0 0.0
    %3200 = vmatpush1.msra.mxu0 0.0
    %3201 = vmatprep.subr.mxu0 0.0
    %3202 = vmatpush1.msra.mxu0 0.0
    %3203 = vmatprep.subr.mxu0 0.0
    %3204 = vmatpush1.msra.mxu0 0.0
    %3205 = vmatprep.subr.mxu0 0.0
    %3206 = vmatpush1.msra.mxu0 0.0
    %3207 = vmatprep.subr.mxu0 0.0
    %3208 = vmatpush1.msra.mxu0 %v3171
    %3209 = vmatprep.subr.mxu0 0.0
    %3210 = vmatpush1.msra.mxu0 %v3170
    %3211 = vmatprep.subr.mxu0 0.0
    %3212 = vmatpush1.msra.mxu0 %v3169
    %3213 = vmatprep.subr.mxu0 0.0
    %3214 = vmatpush1.msra.mxu0 %v3168
    %3215 = vmatprep.subr.mxu0 0.0
    %3216 = vmatpush2.msra.mxu0 0.0
    %3217 = vmatprep.subr.mxu0 0.0
    %3218 = vmatpush2.msra.mxu0 0.0
    %3219 = vmatprep.subr.mxu0 0.0
    %3220 = vmatpush2.msra.mxu0 0.0
    %3221 = vmatprep.subr.mxu0 0.0
    %3222 = vmatpush2.msra.mxu0 0.0
    %3223 = vmatprep.subr.mxu0 0.0
    %3224 = vmatpush2.msra.mxu0 0.0
    %3225 = vmatprep.subr.mxu0 0.0
    %3226 = vmatpush2.msra.mxu0 0.0
    %3227 = vmatprep.subr.mxu0 0.0
    %3228 = vmatpush2.msra.mxu0 0.0
    %3229 = vmatprep.subr.mxu0 0.0
    %3230 = vmatpush2.msra.mxu0 0.0
    %3231 = vmatprep.subr.mxu0 0.0
    %3232 = vmatpush2.msra.mxu0 0.0
    %3233 = vmatprep.subr.mxu0 0.0
    %3234 = vmatpush2.msra.mxu0 0.0
    %3235 = vmatprep.subr.mxu0 0.0
    %3236 = vmatpush2.msra.mxu0 0.0
    %3237 = vmatprep.subr.mxu0 0.0
    %3238 = vmatpush2.msra.mxu0 0.0
    %3239 = vmatprep.subr.mxu0 0.0
    %3240 = vmatpush2.msra.mxu0 0.0
    %3241 = vmatprep.subr.mxu0 0.0
    %3242 = vmatpush2.msra.mxu0 0.0
    %3243 = vmatprep.subr.mxu0 0.0
    %3244 = vmatpush2.msra.mxu0 0.0
    %3245 = vmatprep.subr.mxu0 0.0
    %3246 = vmatpush2.msra.mxu0 0.0
    %3247 = vmatprep.mubr.f32.mxu0 0.0
    %3248 = vmatmul.mubr.f32.gmra.mxu0 %v3181
    %v3249 = vpop.f32.mrf.mxu0
    %v3250 = vadd.f32 %v3178, %v3249
    %v3251 = vpop.f32.mrf.mxu0
    %3252 = vdwg.mxu0
    %v3253 = vmax.f32 %v3250, 0.0
    %s3254 = scalar_lea.vmem %s13, 64
    %v3255 = vld [vmem:[%s3254] sm:$0xff]
    %v3256 = vld [vmem:[%s3254 + $0x8] sm:$0xff]
    %v3257 = vld [vmem:[%s3254 + $0x10] sm:$0xff]
    %v3258 = vld [vmem:[%s3254 + $0x18] sm:$0xff]
    %v3259 = vld [vmem:[%s3254 + $0x20] sm:$0xff]
    %v3260 = vld [vmem:[%s3254 + $0x28] sm:$0xff]
    %v3261 = vld [vmem:[%s3254 + $0x30] sm:$0xff]
    %v3262 = vld [vmem:[%s3254 + $0x38] sm:$0xff]
    %s3263 = scalar_lea.vmem [#allocation6], 1
    %v3264 = vld [vmem:[%s3263] sm:$0x1]
    %v3266 = vlaneseq
    %v3267 = vshrl.u32 %v3266, 7
    %v3268 = vsub.s32 0, %v3267
    %v3269 = vrot.slane %v3264, %v3268
    %v3272 = vsel %vm305, %v3253, 0
    %3274 = vmatprep.subr.mxu0 0.0
    %3275 = vmatpush1.msra.mxu0 0.0
    %3276 = vmatprep.subr.mxu0 0.0
    %3277 = vmatpush1.msra.mxu0 0.0
    %3278 = vmatprep.subr.mxu0 0.0
    %3279 = vmatpush1.msra.mxu0 0.0
    %3280 = vmatprep.subr.mxu0 0.0
    %3281 = vmatpush1.msra.mxu0 0.0
    %3282 = vmatprep.subr.mxu0 0.0
    %3283 = vmatpush1.msra.mxu0 0.0
    %3284 = vmatprep.subr.mxu0 0.0
    %3285 = vmatpush1.msra.mxu0 0.0
    %3286 = vmatprep.subr.mxu0 0.0
    %3287 = vmatpush1.msra.mxu0 0.0
    %3288 = vmatprep.subr.mxu0 0.0
    %3289 = vmatpush1.msra.mxu0 0.0
    %3290 = vmatprep.subr.mxu0 0.0
    %3291 = vmatpush1.msra.mxu0 %v3262
    %3292 = vmatprep.subr.mxu0 0.0
    %3293 = vmatpush1.msra.mxu0 %v3261
    %3294 = vmatprep.subr.mxu0 0.0
    %3295 = vmatpush1.msra.mxu0 %v3260
    %3296 = vmatprep.subr.mxu0 0.0
    %3297 = vmatpush1.msra.mxu0 %v3259
    %3298 = vmatprep.subr.mxu0 0.0
    %3299 = vmatpush1.msra.mxu0 %v3258
    %3300 = vmatprep.subr.mxu0 0.0
    %3301 = vmatpush1.msra.mxu0 %v3257
    %3302 = vmatprep.subr.mxu0 0.0
    %3303 = vmatpush1.msra.mxu0 %v3256
    %3304 = vmatprep.subr.mxu0 0.0
    %3305 = vmatpush1.msra.mxu0 %v3255
    %3306 = vmatprep.subr.mxu0 0.0
    %3307 = vmatpush2.msra.mxu0 0.0
    %3308 = vmatprep.subr.mxu0 0.0
    %3309 = vmatpush2.msra.mxu0 0.0
    %3310 = vmatprep.subr.mxu0 0.0
    %3311 = vmatpush2.msra.mxu0 0.0
    %3312 = vmatprep.subr.mxu0 0.0
    %3313 = vmatpush2.msra.mxu0 0.0
    %3314 = vmatprep.subr.mxu0 0.0
    %3315 = vmatpush2.msra.mxu0 0.0
    %3316 = vmatprep.subr.mxu0 0.0
    %3317 = vmatpush2.msra.mxu0 0.0
    %3318 = vmatprep.subr.mxu0 0.0
    %3319 = vmatpush2.msra.mxu0 0.0
    %3320 = vmatprep.subr.mxu0 0.0
    %3321 = vmatpush2.msra.mxu0 0.0
    %3322 = vmatprep.subr.mxu0 0.0
    %3323 = vmatpush2.msra.mxu0 0.0
    %3324 = vmatprep.subr.mxu0 0.0
    %3325 = vmatpush2.msra.mxu0 0.0
    %3326 = vmatprep.subr.mxu0 0.0
    %3327 = vmatpush2.msra.mxu0 0.0
    %3328 = vmatprep.subr.mxu0 0.0
    %3329 = vmatpush2.msra.mxu0 0.0
    %3330 = vmatprep.subr.mxu0 0.0
    %3331 = vmatpush2.msra.mxu0 0.0
    %3332 = vmatprep.subr.mxu0 0.0
    %3333 = vmatpush2.msra.mxu0 0.0
    %3334 = vmatprep.subr.mxu0 0.0
    %3335 = vmatpush2.msra.mxu0 0.0
    %3336 = vmatprep.subr.mxu0 0.0
    %3337 = vmatpush2.msra.mxu0 0.0
    %3338 = vmatprep.mubr.f32.mxu0 0.0
    %3339 = vmatmul.mubr.f32.gmra.mxu0 %v3272
    %v3340 = vpop.f32.mrf.mxu0
    %v3341 = vadd.f32 %v3269, %v3340
    %v3342 = vpop.f32.mrf.mxu0
    %3343 = vdwg.mxu0
    %v3344 = vadd.f32 %v3166, %v3341
    %s3345 = scalar_lea.vmem [#allocation8], 1
    %v3346 = vld [vmem:[%s3345] sm:$0x1]
    %s3347 = scalar_lea.vmem [#allocation9], 1
    %v3348 = vld [vmem:[%s3347] sm:$0x1]
    %v3349 = vsel %vm1977, %v3344, 0.0
    %3350 = vadd.xlane.f32.xlu0 %v3349
    %v3351 = vpop.xlane.xlu0 %3350
    %v3352 = vmul.f32 %v3351, %v2439
    %v3353 = vsub.f32 %v3344, %v3352
    %v3354 = vmul.f32 %v3353, %v3353
    %v3355 = vsel %vm1977, %v3354, 0.0
    %3356 = vadd.xlane.f32.xlu0 %v3355
    %v3357 = vpop.xlane.xlu0 %3356
    %v3358 = vmul.f32 %v3357, %v2439
    %v3359 = vadd.f32 %v3358, 1e-05
    %v3360 = vrsqrt.pop %v3359
    %v3361 = vmul.f32 %v3353, %v3360
    %v3363 = vlaneseq
    %v3364 = vshrl.u32 %v3363, 7
    %v3365 = vsub.s32 0, %v3364
    %v3366 = vrot.slane %v3346, %v3365
    %v3368 = vmul.f32 %v3361, %v3366
    %v3370 = vlaneseq
    %v3371 = vshrl.u32 %v3370, 7
    %v3372 = vsub.s32 0, %v3371
    %v3373 = vrot.slane %v3348, %v3372
    %v3375 = vadd.f32 %v3368, %v3373
    %v3376 = vld [vmem:[%s17] sm:$0xff]
    %v3377 = vld [vmem:[%s17 + $0x8] sm:$0xff]
    %v3378 = vld [vmem:[%s17 + $0x10] sm:$0xff]
    %v3379 = vld [vmem:[%s17 + $0x18] sm:$0xff]
    %v3380 = vld [vmem:[#allocation11] sm:$0x1]
    %v3382 = vlaneseq
    %v3383 = vshrl.u32 %v3382, 7
    %v3384 = vsub.s32 0, %v3383
    %v3385 = vrot.slane %v3380, %v3384
    %v3388 = vsel %vm1977, %v3375, 0
    %3390 = vmatprep.subr.mxu0 0.0
    %3391 = vmatpush1.msra.mxu0 0.0
    %3392 = vmatprep.subr.mxu0 0.0
    %3393 = vmatpush1.msra.mxu0 0.0
    %3394 = vmatprep.subr.mxu0 0.0
    %3395 = vmatpush1.msra.mxu0 0.0
    %3396 = vmatprep.subr.mxu0 0.0
    %3397 = vmatpush1.msra.mxu0 0.0
    %3398 = vmatprep.subr.mxu0 0.0
    %3399 = vmatpush1.msra.mxu0 0.0
    %3400 = vmatprep.subr.mxu0 0.0
    %3401 = vmatpush1.msra.mxu0 0.0
    %3402 = vmatprep.subr.mxu0 0.0
    %3403 = vmatpush1.msra.mxu0 0.0
    %3404 = vmatprep.subr.mxu0 0.0
    %3405 = vmatpush1.msra.mxu0 0.0
    %3406 = vmatprep.subr.mxu0 0.0
    %3407 = vmatpush1.msra.mxu0 0.0
    %3408 = vmatprep.subr.mxu0 0.0
    %3409 = vmatpush1.msra.mxu0 0.0
    %3410 = vmatprep.subr.mxu0 0.0
    %3411 = vmatpush1.msra.mxu0 0.0
    %3412 = vmatprep.subr.mxu0 0.0
    %3413 = vmatpush1.msra.mxu0 0.0
    %3414 = vmatprep.subr.mxu0 0.0
    %3415 = vmatpush1.msra.mxu0 %v3379
    %3416 = vmatprep.subr.mxu0 0.0
    %3417 = vmatpush1.msra.mxu0 %v3378
    %3418 = vmatprep.subr.mxu0 0.0
    %3419 = vmatpush1.msra.mxu0 %v3377
    %3420 = vmatprep.subr.mxu0 0.0
    %3421 = vmatpush1.msra.mxu0 %v3376
    %3422 = vmatprep.subr.mxu0 0.0
    %3423 = vmatpush2.msra.mxu0 0.0
    %3424 = vmatprep.subr.mxu0 0.0
    %3425 = vmatpush2.msra.mxu0 0.0
    %3426 = vmatprep.subr.mxu0 0.0
    %3427 = vmatpush2.msra.mxu0 0.0
    %3428 = vmatprep.subr.mxu0 0.0
    %3429 = vmatpush2.msra.mxu0 0.0
    %3430 = vmatprep.subr.mxu0 0.0
    %3431 = vmatpush2.msra.mxu0 0.0
    %3432 = vmatprep.subr.mxu0 0.0
    %3433 = vmatpush2.msra.mxu0 0.0
    %3434 = vmatprep.subr.mxu0 0.0
    %3435 = vmatpush2.msra.mxu0 0.0
    %3436 = vmatprep.subr.mxu0 0.0
    %3437 = vmatpush2.msra.mxu0 0.0
    %3438 = vmatprep.subr.mxu0 0.0
    %3439 = vmatpush2.msra.mxu0 0.0
    %3440 = vmatprep.subr.mxu0 0.0
    %3441 = vmatpush2.msra.mxu0 0.0
    %3442 = vmatprep.subr.mxu0 0.0
    %3443 = vmatpush2.msra.mxu0 0.0
    %3444 = vmatprep.subr.mxu0 0.0
    %3445 = vmatpush2.msra.mxu0 0.0
    %3446 = vmatprep.subr.mxu0 0.0
    %3447 = vmatpush2.msra.mxu0 0.0
    %3448 = vmatprep.subr.mxu0 0.0
    %3449 = vmatpush2.msra.mxu0 0.0
    %3450 = vmatprep.subr.mxu0 0.0
    %3451 = vmatpush2.msra.mxu0 0.0
    %3452 = vmatprep.subr.mxu0 0.0
    %3453 = vmatpush2.msra.mxu0 0.0
    %3454 = vmatprep.mubr.f32.mxu0 0.0
    %3455 = vmatmul.mubr.f32.gmra.mxu0 %v3388
    %v3456 = vpop.f32.mrf.mxu0
    %v3457 = vadd.f32 %v3385, %v3456
    %v3458 = vpop.f32.mrf.mxu0
    %3459 = vdwg.mxu0
    %v3460 = vmax.f32 %v3457, 0.0
    %v3461 = vld [vmem:[%s19] sm:$0xff]
    %v3462 = vld [vmem:[%s19 + $0x8] sm:$0xff]
    %v3463 = vld [vmem:[#allocation12] sm:$0x1]
    %v3465 = vlaneseq
    %v3466 = vshrl.u32 %v3465, 7
    %v3467 = vsub.s32 0, %v3466
    %v3468 = vrot.slane %v3463, %v3467
    %v3471 = vsel %vm325, %v3460, 0
    %3473 = vmatprep.subr.mxu0 0.0
    %3474 = vmatpush1.msra.mxu0 0.0
    %3475 = vmatprep.subr.mxu0 0.0
    %3476 = vmatpush1.msra.mxu0 0.0
    %3477 = vmatprep.subr.mxu0 0.0
    %3478 = vmatpush1.msra.mxu0 0.0
    %3479 = vmatprep.subr.mxu0 0.0
    %3480 = vmatpush1.msra.mxu0 0.0
    %3481 = vmatprep.subr.mxu0 0.0
    %3482 = vmatpush1.msra.mxu0 0.0
    %3483 = vmatprep.subr.mxu0 0.0
    %3484 = vmatpush1.msra.mxu0 0.0
    %3485 = vmatprep.subr.mxu0 0.0
    %3486 = vmatpush1.msra.mxu0 0.0
    %3487 = vmatprep.subr.mxu0 0.0
    %3488 = vmatpush1.msra.mxu0 0.0
    %3489 = vmatprep.subr.mxu0 0.0
    %3490 = vmatpush1.msra.mxu0 0.0
    %3491 = vmatprep.subr.mxu0 0.0
    %3492 = vmatpush1.msra.mxu0 0.0
    %3493 = vmatprep.subr.mxu0 0.0
    %3494 = vmatpush1.msra.mxu0 0.0
    %3495 = vmatprep.subr.mxu0 0.0
    %3496 = vmatpush1.msra.mxu0 0.0
    %3497 = vmatprep.subr.mxu0 0.0
    %3498 = vmatpush1.msra.mxu0 0.0
    %3499 = vmatprep.subr.mxu0 0.0
    %3500 = vmatpush1.msra.mxu0 0.0
    %3501 = vmatprep.subr.mxu0 0.0
    %3502 = vmatpush1.msra.mxu0 %v3462
    %3503 = vmatprep.subr.mxu0 0.0
    %3504 = vmatpush1.msra.mxu0 %v3461
    %3505 = vmatprep.subr.mxu0 0.0
    %3506 = vmatpush2.msra.mxu0 0.0
    %3507 = vmatprep.subr.mxu0 0.0
    %3508 = vmatpush2.msra.mxu0 0.0
    %3509 = vmatprep.subr.mxu0 0.0
    %3510 = vmatpush2.msra.mxu0 0.0
    %3511 = vmatprep.subr.mxu0 0.0
    %3512 = vmatpush2.msra.mxu0 0.0
    %3513 = vmatprep.subr.mxu0 0.0
    %3514 = vmatpush2.msra.mxu0 0.0
    %3515 = vmatprep.subr.mxu0 0.0
    %3516 = vmatpush2.msra.mxu0 0.0
    %3517 = vmatprep.subr.mxu0 0.0
    %3518 = vmatpush2.msra.mxu0 0.0
    %3519 = vmatprep.subr.mxu0 0.0
    %3520 = vmatpush2.msra.mxu0 0.0
    %3521 = vmatprep.subr.mxu0 0.0
    %3522 = vmatpush2.msra.mxu0 0.0
    %3523 = vmatprep.subr.mxu0 0.0
    %3524 = vmatpush2.msra.mxu0 0.0
    %3525 = vmatprep.subr.mxu0 0.0
    %3526 = vmatpush2.msra.mxu0 0.0
    %3527 = vmatprep.subr.mxu0 0.0
    %3528 = vmatpush2.msra.mxu0 0.0
    %3529 = vmatprep.subr.mxu0 0.0
    %3530 = vmatpush2.msra.mxu0 0.0
    %3531 = vmatprep.subr.mxu0 0.0
    %3532 = vmatpush2.msra.mxu0 0.0
    %3533 = vmatprep.subr.mxu0 0.0
    %3534 = vmatpush2.msra.mxu0 0.0
    %3535 = vmatprep.subr.mxu0 0.0
    %3536 = vmatpush2.msra.mxu0 0.0
    %3537 = vmatprep.mubr.f32.mxu0 0.0
    %3538 = vmatmul.mubr.f32.gmra.mxu0 %v3471
    %v3539 = vpop.f32.mrf.mxu0
    %v3540 = vadd.f32 %v3468, %v3539
    %v3541 = vpop.f32.mrf.mxu0
    %3542 = vdwg.mxu0
    %v3544 = vrot.slane %v3540, 3
    %v3546 = vrot.slane %v3540, 6
    %vm3548 = vcmask 1040384
    %v3549 = vsel %vm3548, %v3544, %v3546
    %vm3550 = vcmask 9216
    %3551 = vst.msk [vmem:[#allocation14] sm:$0x3] %vm3550, %v3549
    // Predicated region
    $region110: #{forward_pallas.1} parent=1 // pred_check
      _
    $region111: #{forward_pallas.1} parent=1 // pred_check_branch
      %3553 = sbr.rel (0) target = $region113
    $region112: #{forward_pallas.1} parent=1 // pred_region
      %s3555 = ssub.s32 32, 32
      %3556 = vsyncadd [#allocation5], %s3555
      %s3558 = sshll.u32 [#allocation14], 4
      %s3559 = int_to_ptr.vmem [resolvable:$true] %s3558
      %3561 = dma.vmem_to_hbm [thread:$0]  %s3559, 32, %s21, [#allocation5]
    $region113: #{forward_pallas.1} parent=1 // pred_fallthru
      _
    // Predicated region
    $region114: #{forward_pallas.1} parent=1 // pred_check
      _
    $region115: #{forward_pallas.1} parent=1 // pred_check_branch
      %3563 = sbr.rel (0) target = $region117
    $region116: #{forward_pallas.1} parent=1 // pred_region
      %3564 = dma.done [#allocation5], 32
    $region117: #{forward_pallas.1} parent=1 // pred_fallthru
      _
    %3565 = vsyncpa [#allocation4], 1
    %3566 = vsyncpa [#allocation7], 1
    %3567 = vsyncpa [#allocation10], 1
    %3568 = vsyncpa [#allocation13], 1
    %3569 = vsyncpa [#allocation5], 1

</llo_original>
